<compile_context>
chip_gen: v7x
topology: tpu7x:2x2x1
jax: 0.10.0
libtpu: 0.0.40
codegen_flags: <defaults>
</compile_context>

<pallas_src>
import functools
import numpy as np

import jax
import jax.numpy as jnp
from jax import lax
from jax.experimental import pallas as pl
from jax.experimental.pallas import tpu as pltpu

NEG = -1e9  # stands in for float('-inf') in the shifted-window masks (same softmax result)


# ----------------------------------------------------------------------------
# helpers: masks / relative position bias (precomputed outside the kernel)
# ----------------------------------------------------------------------------
def create_mask_np(window_size, displacement, upper_lower, left_right):
    ws = window_size
    mask = np.zeros((ws * ws, ws * ws), dtype=np.float32)
    if upper_lower:
        mask[-displacement * ws:, :-displacement * ws] = NEG
        mask[:-displacement * ws, -displacement * ws:] = NEG
    if left_right:
        m = mask.reshape(ws, ws, ws, ws)
        m[:, -displacement:, :, :-displacement] = NEG
        m[:, :-displacement, :, -displacement:] = NEG
        mask = m.reshape(ws * ws, ws * ws)
    return mask


def make_relative_pos_bias(pos_embedding, window_size):
    ws = window_size
    idx = np.array([[x, y] for x in range(ws) for y in range(ws)])
    rel = idx[None, :, :] - idx[:, None, :] + ws - 1          # (L, L, 2)
    return pos_embedding[rel[..., 0], rel[..., 1]]            # (L, L)


def make_attn_bias(pos_bias, window_size, nw_h, nw_w, shifted):
    """Per-window additive bias (relative-pos bias + shifted-window masks)."""
    nw = nw_h * nw_w
    bias = jnp.tile(pos_bias[None], (nw, 1, 1))
    ul = lr = None
    if shifted:
        disp = window_size // 2
        ul = jnp.asarray(create_mask_np(window_size, disp, True, False))
        lr = jnp.asarray(create_mask_np(window_size, disp, False, True))
        bias = bias.at[-nw_w:].add(ul)             # windows in the last window-row
        bias = bias.at[nw_w - 1::nw_w].add(lr)     # windows in the last window-column
    return bias, ul, lr


# ----------------------------------------------------------------------------
# the fused Pallas kernel
# ----------------------------------------------------------------------------
def _swin_block_kernel(x_ref, mod_ref, wq_ref, wk_ref, wv_ref, wout_ref, bout_ref,
                       w1_ref, b1_ref, w2_ref, b2_ref, bias_ref, o_ref,
                       *, nheads, head_dim, eps):
    """One window-group of one batch element: full adaLN Swin block, fused."""
    nwg, L, D = x_ref.shape[1], x_ref.shape[2], x_ref.shape[3]
    N = nwg * L                       # tokens in this grid step
    G = nheads * nwg                  # merged (head, window) leading batch dim
    mxu = wq_ref.dtype                # bf16 MXU operands, f32 accumulation

    x = x_ref[0].reshape(N, D).astype(jnp.float32)            # (N, D)
    mod = mod_ref[0].astype(jnp.float32)                      # (6, D): sh/sc/g msa, sh/sc/g mlp

    # ---- LayerNorm 1 (no affine, eps=1e-6) + adaLN modulate, f32 ----
    mu = jnp.mean(x, axis=-1, keepdims=True)
    xc = x - mu
    var = jnp.mean(xc * xc, axis=-1, keepdims=True)
    xn = xc * lax.rsqrt(var + eps)
    xm = xn * (1.0 + mod[1:2]) + mod[0:1]                      # (N, D)

    # ---- head-batched Q/K/V projections (single LEADING batch dim = heads) ----
    # Broadcasting xm along heads avoids any in-kernel transpose / sub-128-lane slice.
    xm_b = jnp.broadcast_to(xm.astype(mxu)[None], (nheads, N, D))
    q = jnp.einsum('hnd,hde->hne', xm_b, wq_ref[...], preferred_element_type=jnp.float32)
    k = jnp.einsum('hnd,hde->hne', xm_b, wk_ref[...], preferred_element_type=jnp.float32)
    v = jnp.einsum('hnd,hde->hne', xm_b, wv_ref[...], preferred_element_type=jnp.float32)

    # scale folded into q (N x hd) instead of the (G x L x L) score tensor
    qw = (q * (head_dim ** -0.5)).astype(mxu).reshape(G, L, head_dim)
    kw = k.astype(mxu).reshape(G, L, head_dim)
    vw = v.astype(mxu).reshape(G, L, head_dim)

    # per-window bias shared across heads -> tile along the head-major leading dim
    bias = bias_ref[...].astype(jnp.float32)                   # (nwg, L, L)
    bias_g = jnp.broadcast_to(bias[None], (nheads, nwg, L, L)).reshape(G, L, L)

    # ---- scores + softmax (f32 math, bf16 MXU operands) ----
    dots = jnp.einsum('gid,gjd->gij', qw, kw,
                      preferred_element_type=jnp.float32) + bias_g
    m = jnp.max(dots, axis=-1, keepdims=True)
    p = jnp.exp(dots - m)
    attn = p * pl.reciprocal(jnp.sum(p, axis=-1, keepdims=True), approx=True)

    # ---- apply to V, head-batched out-projection (no scratch, no lane slices) ----
    ow = jnp.einsum('gij,gjd->gid', attn.astype(mxu), vw,
                    preferred_element_type=jnp.float32)        # (G, L, hd)
    oh = ow.reshape(nheads, N, head_dim).astype(mxu)           # (heads, N, hd)
    proj = jnp.einsum('hnd,hdo->hno', oh, wout_ref[...],
                      preferred_element_type=jnp.float32)      # (heads, N, D)
    attn_out = jnp.sum(proj, axis=0) + bout_ref[...]           # (N, D), bias added once

    y1 = x + mod[2:3] * attn_out                               # gated residual (gate_msa)

    # ---- LayerNorm 2 + modulate + MLP (fused, per-token) ----
    mu2 = jnp.mean(y1, axis=-1, keepdims=True)
    yc = y1 - mu2
    var2 = jnp.mean(yc * yc, axis=-1, keepdims=True)
    yn = yc * lax.rsqrt(var2 + eps)
    ym = yn * (1.0 + mod[4:5]) + mod[3:4]

    h = jnp.dot(ym.astype(mxu), w1_ref[...],
                preferred_element_type=jnp.float32) + b1_ref[...]
    h = 0.5 * h * (1.0 + lax.erf(h * (2.0 ** -0.5)))           # exact GELU (PyTorch default), f32
    o = jnp.dot(h.astype(mxu), w2_ref[...],
                preferred_element_type=jnp.float32) + b2_ref[...]

    y2 = y1 + mod[5:6] * o                                     # gated residual (gate_mlp)
    o_ref[0] = y2.reshape(nwg, L, D).astype(o_ref.dtype)


# ----------------------------------------------------------------------------
# wrapper
# ----------------------------------------------------------------------------
def _vmem_limit_bytes():
    cap = None
    try:
        cap = pltpu.get_tpu_info().vmem_capacity_bytes     # generation aware (v7x = 64 MiB)
    except Exception:
        cap = None
    if not cap:
        cap = 64 * 1024 * 1024
    return int(min(max(cap * 3 // 4, 32 * 1024 * 1024), 96 * 1024 * 1024))


def swin_adaln_block(x, t, params, *, nheads, window_size, shifted,
                     mxu_dtype=jnp.bfloat16, windows_per_step=None):
    B, Hs, Ws, D = x.shape
    ws = window_size
    assert D % nheads == 0
    hd = D // nheads
    nw_h, nw_w = Hs // ws, Ws // ws
    nw = nw_h * nw_w
    L = ws * ws
    hidden = params["w1"].shape[1]

    # window-group tiling: >=2 parallel grid steps (v7x: 2 TCs), and a knob to bound the
    # per-step working set (v7x: 64 MiB VMEM at production sizes).
    if windows_per_step is None:
        windows_per_step = nw
        while (B * (nw // windows_per_step) < 2 or windows_per_step * L > 4096) \
                and windows_per_step % 2 == 0 and windows_per_step > 1:
            windows_per_step //= 2
    assert nw % windows_per_step == 0
    n_wgrp = nw // windows_per_step

    # adaLN modulation (tiny matmul; plain-JAX glue).  Row order matches torch.chunk(6):
    # shift_msa, scale_msa, gate_msa, shift_mlp, scale_mlp, gate_mlp.
    t_act = t * jax.nn.sigmoid(t)
    mod = (t_act @ params["w_ada"] + params["b_ada"]).reshape(B, 6, D)

    # head-split weights (free, parameter-side): leading `heads` dim so the kernel never
    # slices sub-128-lane columns or transposes activations.
    w_qkv = params["w_qkv"]
    w_q = w_qkv[:, :D].reshape(D, nheads, hd).transpose(1, 0, 2).astype(mxu_dtype)        # (H,D,hd)
    w_k = w_qkv[:, D:2 * D].reshape(D, nheads, hd).transpose(1, 0, 2).astype(mxu_dtype)   # (H,D,hd)
    w_v = w_qkv[:, 2 * D:].reshape(D, nheads, hd).transpose(1, 0, 2).astype(mxu_dtype)    # (H,D,hd)
    w_out = params["w_out"].reshape(nheads, hd, D).astype(mxu_dtype)                      # (H,hd,D)
    w1 = params["w1"].astype(mxu_dtype)
    w2 = params["w2"].astype(mxu_dtype)
    b_out = params["b_out"][None, :]
    b1 = params["b1"][None, :]
    b2 = params["b2"][None, :]

    cp = pltpu.CompilerParams(dimension_semantics=("parallel", "parallel"),
                              vmem_limit_bytes=_vmem_limit_bytes())

    # cyclic shift + window partition (permutations; undone once on the final output)
    disp = ws // 2
    xs = jnp.roll(x, (-disp, -disp), axis=(1, 2)) if shifted else x
    xw = xs.reshape(B, nw_h, ws, nw_w, ws, D).transpose(0, 1, 3, 2, 4, 5).reshape(B, nw, L, D)

    kern = functools.partial(_swin_block_kernel, nheads=nheads, head_dim=hd, eps=1e-6)
    yw = pl.pallas_call(
        kern,
        out_shape=jax.ShapeDtypeStruct((B, nw, L, D), x.dtype),
        grid=(B, n_wgrp),
        in_specs=[
            pl.BlockSpec((1, windows_per_step, L, D), lambda b, g: (b, g, 0, 0)),  # tokens
            pl.BlockSpec((1, 6, D), lambda b, g: (b, 0, 0)),                       # adaLN mod
            pl.BlockSpec((nheads, D, hd), lambda b, g: (0, 0, 0)),                 # W_q (bf16)
            pl.BlockSpec((nheads, D, hd), lambda b, g: (0, 0, 0)),                 # W_k (bf16)
            pl.BlockSpec((nheads, D, hd), lambda b, g: (0, 0, 0)),                 # W_v (bf16)
            pl.BlockSpec((nheads, hd, D), lambda b, g: (0, 0, 0)),                 # W_out (bf16)
            pl.BlockSpec((1, D), lambda b, g: (0, 0)),                             # b_out
            pl.BlockSpec((D, hidden), lambda b, g: (0, 0)),                        # W1 (bf16)
            pl.BlockSpec((1, hidden), lambda b, g: (0, 0)),                        # b1
            pl.BlockSpec((hidden, D), lambda b, g: (0, 0)),                        # W2 (bf16)
            pl.BlockSpec((1, D), lambda b, g: (0, 0)),                             # b2
            pl.BlockSpec((windows_per_step, L, L), lambda b, g: (g, 0, 0)),        # attn bias
        ],
        out_specs=pl.BlockSpec((1, windows_per_step, L, D), lambda b, g: (b, g, 0, 0)),
        compiler_params=cp,
    )(xw, mod, w_q, w_k, w_v, w_out, b_out, w1, b1, w2, b2, params["attn_bias"])

    # single window de-partition + inverse roll on the final block output
    ys = yw.reshape(B, nw_h, nw_w, ws, ws, D).transpose(0, 1, 3, 2, 4, 5).reshape(B, Hs, Ws, D)
    return jnp.roll(ys, (disp, disp), axis=(1, 2)) if shifted else ys


# ----------------------------------------------------------------------------
# pure-JAX f32 reference (mirrors the PyTorch forward) for correctness checking
# ----------------------------------------------------------------------------
def reference_forward(x, t, params, *, nheads, window_size, shifted, ul_mask, lr_mask, pos_bias):
    B, Hs, Ws, D = x.shape
    ws = window_size
    hd = D // nheads
    nw_h, nw_w = Hs // ws, Ws // ws

    t_act = t * jax.nn.sigmoid(t)
    mod = t_act @ params["w_ada"] + params["b_ada"]
    s_msa, sc_msa, g_msa, s_mlp, sc_mlp, g_mlp = jnp.split(mod, 6, axis=1)

    def ln(z):
        mu = z.mean(-1, keepdims=True)
        v = ((z - mu) ** 2).mean(-1, keepdims=True)
        return (z - mu) / jnp.sqrt(v + 1e-6)

    def modulate(z, sh, sc):
        return z * (1 + sc[:, None, None, :]) + sh[:, None, None, :]

    # attention
    a_in = modulate(ln(x), s_msa, sc_msa)
    disp = ws // 2
    if shifted:
        a_in = jnp.roll(a_in, (-disp, -disp), axis=(1, 2))
    qkv = a_in @ params["w_qkv"]
    q, k, v = jnp.split(qkv, 3, axis=-1)

    def to_windows(z):
        z = z.reshape(B, nw_h, ws, nw_w, ws, nheads, hd)
        return z.transpose(0, 5, 1, 3, 2, 4, 6).reshape(B, nheads, nw_h * nw_w, ws * ws, hd)

    q, k, v = map(to_windows, (q, k, v))
    dots = jnp.einsum("bhwid,bhwjd->bhwij", q, k) * (hd ** -0.5)
    dots = dots + pos_bias[None, None, None]
    if shifted:
        dots = dots.at[:, :, -nw_w:].add(ul_mask)
        dots = dots.at[:, :, nw_w - 1::nw_w].add(lr_mask)
    attn = jax.nn.softmax(dots, axis=-1)
    out = jnp.einsum("bhwij,bhwjd->bhwid", attn, v)
    out = out.reshape(B, nheads, nw_h, nw_w, ws, ws, hd).transpose(0, 2, 4, 3, 5, 1, 6)
    out = out.reshape(B, Hs, Ws, D)
    out = out @ params["w_out"] + params["b_out"]
    if shifted:
        out = jnp.roll(out, (disp, disp), axis=(1, 2))
    x = x + g_msa[:, None, None, :] * out

    # MLP
    m_in = modulate(ln(x), s_mlp, sc_mlp)
    h = m_in @ params["w1"] + params["b1"]
    h = 0.5 * h * (1.0 + lax.erf(h * (2.0 ** -0.5)))
    m_out = h @ params["w2"] + params["b2"]
    x = x + g_mlp[:, None, None, :] * m_out
    return x


# ----------------------------------------------------------------------------
# main
# ----------------------------------------------------------------------------
if __name__ == "__main__":
    B = 2
    dim = 32
    nheads = 4
    window_size = 4
    Hs = Ws = 8
    mlp_ratio = 4
    shifted = True

    nw_h, nw_w = Hs // window_size, Ws // window_size

    key = jax.random.PRNGKey(0)
    ks = jax.random.split(key, 12)

    params = {
        "w_qkv": 0.1 * jax.random.normal(ks[0], (dim, 3 * dim), jnp.float32),
        "w_out": 0.1 * jax.random.normal(ks[1], (dim, dim), jnp.float32),
        "b_out": 0.1 * jax.random.normal(ks[2], (dim,), jnp.float32),
        "w1": 0.1 * jax.random.normal(ks[3], (dim, mlp_ratio * dim), jnp.float32),
        "b1": 0.1 * jax.random.normal(ks[4], (mlp_ratio * dim,), jnp.float32),
        "w2": 0.1 * jax.random.normal(ks[5], (mlp_ratio * dim, dim), jnp.float32),
        "b2": 0.1 * jax.random.normal(ks[6], (dim,), jnp.float32),
        "w_ada": 0.1 * jax.random.normal(ks[7], (dim, 6 * dim), jnp.float32),
        "b_ada": 0.1 * jax.random.normal(ks[8], (6 * dim,), jnp.float32),
    }

    # relative position embedding table (2*ws-1, 2*ws-1) -> gathered (L, L) bias
    pos_embedding = jax.random.normal(ks[9], (2 * window_size - 1, 2 * window_size - 1),
                                      jnp.float32)
    pos_bias = jnp.asarray(make_relative_pos_bias(np.asarray(pos_embedding), window_size))
    attn_bias, ul_mask, lr_mask = make_attn_bias(pos_bias, window_size, nw_h, nw_w, shifted)
    params["attn_bias"] = attn_bias

    x = jax.random.normal(ks[10], (B, Hs, Ws, dim), jnp.float32)
    t = jax.random.normal(ks[11], (B, dim), jnp.float32)

    # windows_per_step=2 exercises the window-group grid axis (grid=(2, 2)).
    fwd = jax.jit(functools.partial(swin_adaln_block, nheads=nheads,
                                    window_size=window_size, shifted=shifted,
                                    windows_per_step=2))
    out = jax.block_until_ready(fwd(x, t, params))

    ref = reference_forward(x, t, params, nheads=nheads, window_size=window_size,
                            shifted=shifted, ul_mask=ul_mask, lr_mask=lr_mask,
                            pos_bias=pos_bias)
    ref = jax.block_until_ready(ref)

    assert out.shape == (B, Hs, Ws, dim)
    # bf16 MXU operands with f32 accumulation + approx reciprocal vs. a full-f32
    # reference: 2e-2 tolerance.
    np.testing.assert_allclose(np.asarray(out), np.asarray(ref), rtol=2e-2, atol=2e-2)

    print("KERNEL_OK")
</pallas_src>

<mosaic_0001>
module attributes {stable_mosaic.version = 11 : i64} {
  func.func @_swin_block_kernel(%arg0: i32, %arg1: i32, %arg2: memref<1x2x16x32xf32, #tpu.memory_space<vmem>>, %arg3: memref<1x6x32xf32, #tpu.memory_space<vmem>>, %arg4: memref<4x32x8xbf16, #tpu.memory_space<vmem>>, %arg5: memref<4x32x8xbf16, #tpu.memory_space<vmem>>, %arg6: memref<4x32x8xbf16, #tpu.memory_space<vmem>>, %arg7: memref<4x8x32xbf16, #tpu.memory_space<vmem>>, %arg8: memref<1x32xf32, #tpu.memory_space<vmem>>, %arg9: memref<32x128xbf16, #tpu.memory_space<vmem>>, %arg10: memref<1x128xf32, #tpu.memory_space<vmem>>, %arg11: memref<128x32xbf16, #tpu.memory_space<vmem>>, %arg12: memref<1x32xf32, #tpu.memory_space<vmem>>, %arg13: memref<2x16x16xf32, #tpu.memory_space<vmem>>, %arg14: memref<1x2x16x32xf32, #tpu.memory_space<vmem>>) attributes {dimension_semantics = [#tpu.dimension_semantics<parallel>, #tpu.dimension_semantics<parallel>], iteration_bounds = array<i64: 2, 2>, scalar_prefetch = 0 : i64, scratch_operands = 0 : i64, tpu.core_type = #tpu.core_type<tc>, window_params = [{transform_indices = @transform_0, window_bounds = array<i64: 1, 2, 16, 32>}, {transform_indices = @transform_1, window_bounds = array<i64: 1, 6, 32>}, {pipeline_mode = #tpu.pipeline_mode<synchronous>, transform_indices = @transform_2, window_bounds = array<i64: 4, 32, 8>}, {pipeline_mode = #tpu.pipeline_mode<synchronous>, transform_indices = @transform_3, window_bounds = array<i64: 4, 32, 8>}, {pipeline_mode = #tpu.pipeline_mode<synchronous>, transform_indices = @transform_4, window_bounds = array<i64: 4, 32, 8>}, {pipeline_mode = #tpu.pipeline_mode<synchronous>, transform_indices = @transform_5, window_bounds = array<i64: 4, 8, 32>}, {pipeline_mode = #tpu.pipeline_mode<synchronous>, transform_indices = @transform_6, window_bounds = array<i64: 1, 32>}, {pipeline_mode = #tpu.pipeline_mode<synchronous>, transform_indices = @transform_7, window_bounds = array<i64: 32, 128>}, {pipeline_mode = #tpu.pipeline_mode<synchronous>, transform_indices = @transform_8, window_bounds = array<i64: 1, 128>}, {pipeline_mode = #tpu.pipeline_mode<synchronous>, transform_indices = @transform_9, window_bounds = array<i64: 128, 32>}, {pipeline_mode = #tpu.pipeline_mode<synchronous>, transform_indices = @transform_10, window_bounds = array<i64: 1, 32>}, {transform_indices = @transform_11, window_bounds = array<i64: 2, 16, 16>}, {transform_indices = @transform_12, window_bounds = array<i64: 1, 2, 16, 32>}]} {
    %c0 = arith.constant 0 : index
    %c0_0 = arith.constant 0 : index
    %c0_1 = arith.constant 0 : index
    %c0_2 = arith.constant 0 : index
    %0 = vector.load %arg2[%c0, %c0_0, %c0_1, %c0_2] : memref<1x2x16x32xf32, #tpu.memory_space<vmem>>, vector<1x2x16x32xf32>
    %1 = vector.shape_cast %0 : vector<1x2x16x32xf32> to vector<2x16x32xf32>
    %2 = vector.shape_cast %1 : vector<2x16x32xf32> to vector<32x32xf32>
    %c0_3 = arith.constant 0 : index
    %c0_4 = arith.constant 0 : index
    %c0_5 = arith.constant 0 : index
    %3 = vector.load %arg3[%c0_3, %c0_4, %c0_5] : memref<1x6x32xf32, #tpu.memory_space<vmem>>, vector<1x6x32xf32>
    %4 = vector.shape_cast %3 : vector<1x6x32xf32> to vector<6x32xf32>
    %cst = arith.constant dense<0.000000e+00> : vector<32xf32>
    %5 = vector.multi_reduction <add>, %2, %cst [1] : vector<32x32xf32> to vector<32xf32>
    %6 = vector.shape_cast %5 : vector<32xf32> to vector<32x1xf32>
    %cst_6 = arith.constant 3.200000e+01 : f32
    %7 = vector.broadcast %cst_6 : f32 to vector<32x1xf32>
    %8 = arith.divf %6, %7 : vector<32x1xf32>
    %9 = vector.broadcast %8 : vector<32x1xf32> to vector<32x32xf32>
    %10 = arith.subf %2, %9 : vector<32x32xf32>
    %11 = arith.mulf %10, %10 : vector<32x32xf32>
    %cst_7 = arith.constant dense<0.000000e+00> : vector<32xf32>
    %12 = vector.multi_reduction <add>, %11, %cst_7 [1] : vector<32x32xf32> to vector<32xf32>
    %13 = vector.shape_cast %12 : vector<32xf32> to vector<32x1xf32>
    %cst_8 = arith.constant 3.200000e+01 : f32
    %14 = vector.broadcast %cst_8 : f32 to vector<32x1xf32>
    %15 = arith.divf %13, %14 : vector<32x1xf32>
    %cst_9 = arith.constant 9.99999997E-7 : f32
    %16 = vector.broadcast %cst_9 : f32 to vector<32x1xf32>
    %17 = arith.addf %15, %16 : vector<32x1xf32>
    %18 = math.rsqrt %17 : vector<32x1xf32>
    %19 = vector.broadcast %18 : vector<32x1xf32> to vector<32x32xf32>
    %20 = arith.mulf %10, %19 : vector<32x32xf32>
    %21 = vector.extract_strided_slice %4 {offsets = [1, 0], sizes = [1, 32], strides = [1, 1]} : vector<6x32xf32> to vector<1x32xf32>
    %cst_10 = arith.constant 1.000000e+00 : f32
    %22 = vector.broadcast %cst_10 : f32 to vector<1x32xf32>
    %23 = arith.addf %22, %21 : vector<1x32xf32>
    %24 = vector.broadcast %23 : vector<1x32xf32> to vector<32x32xf32>
    %25 = arith.mulf %20, %24 : vector<32x32xf32>
    %26 = vector.extract_strided_slice %4 {offsets = [0, 0], sizes = [1, 32], strides = [1, 1]} : vector<6x32xf32> to vector<1x32xf32>
    %27 = vector.broadcast %26 : vector<1x32xf32> to vector<32x32xf32>
    %28 = arith.addf %25, %27 : vector<32x32xf32>
    %29 = arith.truncf %28 : vector<32x32xf32> to vector<32x32xbf16>
    %30 = vector.shape_cast %29 : vector<32x32xbf16> to vector<1x32x32xbf16>
    %31 = vector.shape_cast %30 : vector<1x32x32xbf16> to vector<1x32x32xbf16>
    %32 = vector.broadcast %31 : vector<1x32x32xbf16> to vector<4x32x32xbf16>
    %c0_11 = arith.constant 0 : index
    %c0_12 = arith.constant 0 : index
    %c0_13 = arith.constant 0 : index
    %33 = vector.load %arg4[%c0_11, %c0_12, %c0_13] : memref<4x32x8xbf16, #tpu.memory_space<vmem>>, vector<4x32x8xbf16>
    "tpu.trace_start"() <{level = 10 : i32, message = "hnd,hde->hne"}> : () -> ()
    %cst_14 = arith.constant dense<0.000000e+00> : vector<4x32x8xf32>
    %34 = tpu.matmul %32, %33, %cst_14 {dimension_numbers = #tpu.dot_dimension_numbers<[2], [1], [1], [2], [0, 0, 0, 1, 1, 2], [0], [0]>} : vector<4x32x32xbf16>, vector<4x32x8xbf16>, vector<4x32x8xf32> -> vector<4x32x8xf32>
    "tpu.trace_stop"() : () -> ()
    %c0_15 = arith.constant 0 : index
    %c0_16 = arith.constant 0 : index
    %c0_17 = arith.constant 0 : index
    %35 = vector.load %arg5[%c0_15, %c0_16, %c0_17] : memref<4x32x8xbf16, #tpu.memory_space<vmem>>, vector<4x32x8xbf16>
    "tpu.trace_start"() <{level = 10 : i32, message = "hnd,hde->hne"}> : () -> ()
    %cst_18 = arith.constant dense<0.000000e+00> : vector<4x32x8xf32>
    %36 = tpu.matmul %32, %35, %cst_18 {dimension_numbers = #tpu.dot_dimension_numbers<[2], [1], [1], [2], [0, 0, 0, 1, 1, 2], [0], [0]>} : vector<4x32x32xbf16>, vector<4x32x8xbf16>, vector<4x32x8xf32> -> vector<4x32x8xf32>
    "tpu.trace_stop"() : () -> ()
    %c0_19 = arith.constant 0 : index
    %c0_20 = arith.constant 0 : index
    %c0_21 = arith.constant 0 : index
    %37 = vector.load %arg6[%c0_19, %c0_20, %c0_21] : memref<4x32x8xbf16, #tpu.memory_space<vmem>>, vector<4x32x8xbf16>
    "tpu.trace_start"() <{level = 10 : i32, message = "hnd,hde->hne"}> : () -> ()
    %cst_22 = arith.constant dense<0.000000e+00> : vector<4x32x8xf32>
    %38 = tpu.matmul %32, %37, %cst_22 {dimension_numbers = #tpu.dot_dimension_numbers<[2], [1], [1], [2], [0, 0, 0, 1, 1, 2], [0], [0]>} : vector<4x32x32xbf16>, vector<4x32x8xbf16>, vector<4x32x8xf32> -> vector<4x32x8xf32>
    "tpu.trace_stop"() : () -> ()
    %cst_23 = arith.constant 0.353553385 : f32
    %39 = vector.broadcast %cst_23 : f32 to vector<4x32x8xf32>
    %40 = arith.mulf %34, %39 : vector<4x32x8xf32>
    %41 = arith.truncf %40 : vector<4x32x8xf32> to vector<4x32x8xbf16>
    %42 = vector.shape_cast %41 : vector<4x32x8xbf16> to vector<8x16x8xbf16>
    %43 = arith.truncf %36 : vector<4x32x8xf32> to vector<4x32x8xbf16>
    %44 = vector.shape_cast %43 : vector<4x32x8xbf16> to vector<8x16x8xbf16>
    %45 = arith.truncf %38 : vector<4x32x8xf32> to vector<4x32x8xbf16>
    %46 = vector.shape_cast %45 : vector<4x32x8xbf16> to vector<8x16x8xbf16>
    %c0_24 = arith.constant 0 : index
    %c0_25 = arith.constant 0 : index
    %c0_26 = arith.constant 0 : index
    %47 = vector.load %arg13[%c0_24, %c0_25, %c0_26] : memref<2x16x16xf32, #tpu.memory_space<vmem>>, vector<2x16x16xf32>
    %48 = vector.shape_cast %47 : vector<2x16x16xf32> to vector<1x2x16x16xf32>
    %49 = vector.shape_cast %48 : vector<1x2x16x16xf32> to vector<1x2x16x16xf32>
    %50 = vector.broadcast %49 : vector<1x2x16x16xf32> to vector<4x2x16x16xf32>
    %51 = vector.shape_cast %50 : vector<4x2x16x16xf32> to vector<8x16x16xf32>
    "tpu.trace_start"() <{level = 10 : i32, message = "gid,gjd->gij"}> : () -> ()
    %cst_27 = arith.constant dense<0.000000e+00> : vector<8x16x16xf32>
    %52 = tpu.matmul %42, %44, %cst_27 {dimension_numbers = #tpu.dot_dimension_numbers<[2], [2], [1], [1], [0, 0, 0, 1, 1, 1], [0], [0]>} : vector<8x16x8xbf16>, vector<8x16x8xbf16>, vector<8x16x16xf32> -> vector<8x16x16xf32>
    "tpu.trace_stop"() : () -> ()
    %53 = arith.addf %52, %51 : vector<8x16x16xf32>
    %cst_28 = arith.constant dense<0xFF800000> : vector<8x16xf32>
    %54 = vector.multi_reduction <maximumf>, %53, %cst_28 [2] : vector<8x16x16xf32> to vector<8x16xf32>
    %55 = vector.shape_cast %54 : vector<8x16xf32> to vector<8x16x1xf32>
    %56 = vector.broadcast %55 : vector<8x16x1xf32> to vector<8x16x16xf32>
    %57 = arith.subf %53, %56 : vector<8x16x16xf32>
    %58 = math.exp %57 : vector<8x16x16xf32>
    %cst_29 = arith.constant dense<0.000000e+00> : vector<8x16xf32>
    %59 = vector.multi_reduction <add>, %58, %cst_29 [2] : vector<8x16x16xf32> to vector<8x16xf32>
    %60 = vector.shape_cast %59 : vector<8x16xf32> to vector<8x16x1xf32>
    %61 = tpu.reciprocal %60 {approx = true} : vector<8x16x1xf32> -> vector<8x16x1xf32>
    %62 = vector.broadcast %61 : vector<8x16x1xf32> to vector<8x16x16xf32>
    %63 = arith.mulf %58, %62 : vector<8x16x16xf32>
    %64 = arith.truncf %63 : vector<8x16x16xf32> to vector<8x16x16xbf16>
    "tpu.trace_start"() <{level = 10 : i32, message = "gij,gjd->gid"}> : () -> ()
    %cst_30 = arith.constant dense<0.000000e+00> : vector<8x16x8xf32>
    %65 = tpu.matmul %64, %46, %cst_30 {dimension_numbers = #tpu.dot_dimension_numbers<[2], [1], [1], [2], [0, 0, 0, 1, 1, 2], [0], [0]>} : vector<8x16x16xbf16>, vector<8x16x8xbf16>, vector<8x16x8xf32> -> vector<8x16x8xf32>
    "tpu.trace_stop"() : () -> ()
    %66 = vector.shape_cast %65 : vector<8x16x8xf32> to vector<4x32x8xf32>
    %67 = arith.truncf %66 : vector<4x32x8xf32> to vector<4x32x8xbf16>
    %c0_31 = arith.constant 0 : index
    %c0_32 = arith.constant 0 : index
    %c0_33 = arith.constant 0 : index
    %68 = vector.load %arg7[%c0_31, %c0_32, %c0_33] : memref<4x8x32xbf16, #tpu.memory_space<vmem>>, vector<4x8x32xbf16>
    "tpu.trace_start"() <{level = 10 : i32, message = "hnd,hdo->hno"}> : () -> ()
    %cst_34 = arith.constant dense<0.000000e+00> : vector<4x32x32xf32>
    %69 = tpu.matmul %67, %68, %cst_34 {dimension_numbers = #tpu.dot_dimension_numbers<[2], [1], [1], [2], [0, 0, 0, 1, 1, 2], [0], [0]>} : vector<4x32x8xbf16>, vector<4x8x32xbf16>, vector<4x32x32xf32> -> vector<4x32x32xf32>
    "tpu.trace_stop"() : () -> ()
    %cst_35 = arith.constant dense<0.000000e+00> : vector<32x32xf32>
    %70 = vector.multi_reduction <add>, %69, %cst_35 [0] : vector<4x32x32xf32> to vector<32x32xf32>
    %c0_36 = arith.constant 0 : index
    %c0_37 = arith.constant 0 : index
    %71 = vector.load %arg8[%c0_36, %c0_37] : memref<1x32xf32, #tpu.memory_space<vmem>>, vector<1x32xf32>
    %72 = vector.broadcast %71 : vector<1x32xf32> to vector<32x32xf32>
    %73 = arith.addf %70, %72 : vector<32x32xf32>
    %74 = vector.extract_strided_slice %4 {offsets = [2, 0], sizes = [1, 32], strides = [1, 1]} : vector<6x32xf32> to vector<1x32xf32>
    %75 = vector.broadcast %74 : vector<1x32xf32> to vector<32x32xf32>
    %76 = arith.mulf %75, %73 : vector<32x32xf32>
    %77 = arith.addf %2, %76 : vector<32x32xf32>
    %cst_38 = arith.constant dense<0.000000e+00> : vector<32xf32>
    %78 = vector.multi_reduction <add>, %77, %cst_38 [1] : vector<32x32xf32> to vector<32xf32>
    %79 = vector.shape_cast %78 : vector<32xf32> to vector<32x1xf32>
    %cst_39 = arith.constant 3.200000e+01 : f32
    %80 = vector.broadcast %cst_39 : f32 to vector<32x1xf32>
    %81 = arith.divf %79, %80 : vector<32x1xf32>
    %82 = vector.broadcast %81 : vector<32x1xf32> to vector<32x32xf32>
    %83 = arith.subf %77, %82 : vector<32x32xf32>
    %84 = arith.mulf %83, %83 : vector<32x32xf32>
    %cst_40 = arith.constant dense<0.000000e+00> : vector<32xf32>
    %85 = vector.multi_reduction <add>, %84, %cst_40 [1] : vector<32x32xf32> to vector<32xf32>
    %86 = vector.shape_cast %85 : vector<32xf32> to vector<32x1xf32>
    %cst_41 = arith.constant 3.200000e+01 : f32
    %87 = vector.broadcast %cst_41 : f32 to vector<32x1xf32>
    %88 = arith.divf %86, %87 : vector<32x1xf32>
    %cst_42 = arith.constant 9.99999997E-7 : f32
    %89 = vector.broadcast %cst_42 : f32 to vector<32x1xf32>
    %90 = arith.addf %88, %89 : vector<32x1xf32>
    %91 = math.rsqrt %90 : vector<32x1xf32>
    %92 = vector.broadcast %91 : vector<32x1xf32> to vector<32x32xf32>
    %93 = arith.mulf %83, %92 : vector<32x32xf32>
    %94 = vector.extract_strided_slice %4 {offsets = [4, 0], sizes = [1, 32], strides = [1, 1]} : vector<6x32xf32> to vector<1x32xf32>
    %cst_43 = arith.constant 1.000000e+00 : f32
    %95 = vector.broadcast %cst_43 : f32 to vector<1x32xf32>
    %96 = arith.addf %95, %94 : vector<1x32xf32>
    %97 = vector.broadcast %96 : vector<1x32xf32> to vector<32x32xf32>
    %98 = arith.mulf %93, %97 : vector<32x32xf32>
    %99 = vector.extract_strided_slice %4 {offsets = [3, 0], sizes = [1, 32], strides = [1, 1]} : vector<6x32xf32> to vector<1x32xf32>
    %100 = vector.broadcast %99 : vector<1x32xf32> to vector<32x32xf32>
    %101 = arith.addf %98, %100 : vector<32x32xf32>
    %102 = arith.truncf %101 : vector<32x32xf32> to vector<32x32xbf16>
    %c0_44 = arith.constant 0 : index
    %c0_45 = arith.constant 0 : index
    %103 = vector.load %arg9[%c0_44, %c0_45] : memref<32x128xbf16, #tpu.memory_space<vmem>>, vector<32x128xbf16>
    %cst_46 = arith.constant dense<0.000000e+00> : vector<32x128xf32>
    %104 = tpu.matmul %102, %103, %cst_46 {dimension_numbers = #tpu.dot_dimension_numbers<[1], [0], [0], [1], [0, 0, 1, 1], [], []>} : vector<32x32xbf16>, vector<32x128xbf16>, vector<32x128xf32> -> vector<32x128xf32>
    %c0_47 = arith.constant 0 : index
    %c0_48 = arith.constant 0 : index
    %105 = vector.load %arg10[%c0_47, %c0_48] : memref<1x128xf32, #tpu.memory_space<vmem>>, vector<1x128xf32>
    %106 = vector.broadcast %105 : vector<1x128xf32> to vector<32x128xf32>
    %107 = arith.addf %104, %106 : vector<32x128xf32>
    %cst_49 = arith.constant 5.000000e-01 : f32
    %108 = vector.broadcast %cst_49 : f32 to vector<32x128xf32>
    %109 = arith.mulf %108, %107 : vector<32x128xf32>
    %cst_50 = arith.constant 0.707106769 : f32
    %110 = vector.broadcast %cst_50 : f32 to vector<32x128xf32>
    %111 = arith.mulf %107, %110 : vector<32x128xf32>
    %112 = math.erf %111 : vector<32x128xf32>
    %cst_51 = arith.constant 1.000000e+00 : f32
    %113 = vector.broadcast %cst_51 : f32 to vector<32x128xf32>
    %114 = arith.addf %113, %112 : vector<32x128xf32>
    %115 = arith.mulf %109, %114 : vector<32x128xf32>
    %116 = arith.truncf %115 : vector<32x128xf32> to vector<32x128xbf16>
    %c0_52 = arith.constant 0 : index
    %c0_53 = arith.constant 0 : index
    %117 = vector.load %arg11[%c0_52, %c0_53] : memref<128x32xbf16, #tpu.memory_space<vmem>>, vector<128x32xbf16>
    %cst_54 = arith.constant dense<0.000000e+00> : vector<32x32xf32>
    %118 = tpu.matmul %116, %117, %cst_54 {dimension_numbers = #tpu.dot_dimension_numbers<[1], [0], [0], [1], [0, 0, 1, 1], [], []>} : vector<32x128xbf16>, vector<128x32xbf16>, vector<32x32xf32> -> vector<32x32xf32>
    %c0_55 = arith.constant 0 : index
    %c0_56 = arith.constant 0 : index
    %119 = vector.load %arg12[%c0_55, %c0_56] : memref<1x32xf32, #tpu.memory_space<vmem>>, vector<1x32xf32>
    %120 = vector.broadcast %119 : vector<1x32xf32> to vector<32x32xf32>
    %121 = arith.addf %118, %120 : vector<32x32xf32>
    %122 = vector.extract_strided_slice %4 {offsets = [5, 0], sizes = [1, 32], strides = [1, 1]} : vector<6x32xf32> to vector<1x32xf32>
    %123 = vector.broadcast %122 : vector<1x32xf32> to vector<32x32xf32>
    %124 = arith.mulf %123, %121 : vector<32x32xf32>
    %125 = arith.addf %77, %124 : vector<32x32xf32>
    %126 = vector.shape_cast %125 : vector<32x32xf32> to vector<2x16x32xf32>
    %c0_57 = arith.constant 0 : index
    %c0_58 = arith.constant 0 : index
    %c0_59 = arith.constant 0 : index
    %c0_60 = arith.constant 0 : index
    %127 = vector.load %arg14[%c0_57, %c0_58, %c0_59, %c0_60] : memref<1x2x16x32xf32, #tpu.memory_space<vmem>>, vector<1x2x16x32xf32>
    %128 = vector.shape_cast %127 : vector<1x2x16x32xf32> to vector<2x16x32xf32>
    %129 = vector.shape_cast %126 : vector<2x16x32xf32> to vector<1x2x16x32xf32>
    tpu.vector_store %arg14[%c0_57, %c0_58, %c0_59, %c0_60], %129 {strides = array<i32>} : memref<1x2x16x32xf32, #tpu.memory_space<vmem>>, vector<1x2x16x32xf32>,
    return
  }
  func.func @transform_0(%arg0: i32, %arg1: i32) -> (i32, i32, i32, i32) {
    %c0_i32 = arith.constant 0 : i32
    %c0_i32_0 = arith.constant 0 : i32
    %c0_i32_1 = arith.constant 0 : i32
    return %arg0, %arg1, %c0_i32, %c0_i32_0 : i32, i32, i32, i32
  }
  func.func @transform_1(%arg0: i32, %arg1: i32) -> (i32, i32, i32) {
    %c0_i32 = arith.constant 0 : i32
    %c0_i32_0 = arith.constant 0 : i32
    %c0_i32_1 = arith.constant 0 : i32
    return %arg0, %c0_i32, %c0_i32_0 : i32, i32, i32
  }
  func.func @transform_2(%arg0: i32, %arg1: i32) -> (i32, i32, i32) {
    %c0_i32 = arith.constant 0 : i32
    %c0_i32_0 = arith.constant 0 : i32
    %c0_i32_1 = arith.constant 0 : i32
    %c0_i32_2 = arith.constant 0 : i32
    return %c0_i32, %c0_i32_0, %c0_i32_1 : i32, i32, i32
  }
  func.func @transform_3(%arg0: i32, %arg1: i32) -> (i32, i32, i32) {
    %c0_i32 = arith.constant 0 : i32
    %c0_i32_0 = arith.constant 0 : i32
    %c0_i32_1 = arith.constant 0 : i32
    %c0_i32_2 = arith.constant 0 : i32
    return %c0_i32, %c0_i32_0, %c0_i32_1 : i32, i32, i32
  }
  func.func @transform_4(%arg0: i32, %arg1: i32) -> (i32, i32, i32) {
    %c0_i32 = arith.constant 0 : i32
    %c0_i32_0 = arith.constant 0 : i32
    %c0_i32_1 = arith.constant 0 : i32
    %c0_i32_2 = arith.constant 0 : i32
    return %c0_i32, %c0_i32_0, %c0_i32_1 : i32, i32, i32
  }
  func.func @transform_5(%arg0: i32, %arg1: i32) -> (i32, i32, i32) {
    %c0_i32 = arith.constant 0 : i32
    %c0_i32_0 = arith.constant 0 : i32
    %c0_i32_1 = arith.constant 0 : i32
    %c0_i32_2 = arith.constant 0 : i32
    return %c0_i32, %c0_i32_0, %c0_i32_1 : i32, i32, i32
  }
  func.func @transform_6(%arg0: i32, %arg1: i32) -> (i32, i32) {
    %c0_i32 = arith.constant 0 : i32
    %c0_i32_0 = arith.constant 0 : i32
    %c0_i32_1 = arith.constant 0 : i32
    return %c0_i32, %c0_i32_0 : i32, i32
  }
  func.func @transform_7(%arg0: i32, %arg1: i32) -> (i32, i32) {
    %c0_i32 = arith.constant 0 : i32
    %c0_i32_0 = arith.constant 0 : i32
    %c0_i32_1 = arith.constant 0 : i32
    return %c0_i32, %c0_i32_0 : i32, i32
  }
  func.func @transform_8(%arg0: i32, %arg1: i32) -> (i32, i32) {
    %c0_i32 = arith.constant 0 : i32
    %c0_i32_0 = arith.constant 0 : i32
    %c0_i32_1 = arith.constant 0 : i32
    return %c0_i32, %c0_i32_0 : i32, i32
  }
  func.func @transform_9(%arg0: i32, %arg1: i32) -> (i32, i32) {
    %c0_i32 = arith.constant 0 : i32
    %c0_i32_0 = arith.constant 0 : i32
    %c0_i32_1 = arith.constant 0 : i32
    return %c0_i32, %c0_i32_0 : i32, i32
  }
  func.func @transform_10(%arg0: i32, %arg1: i32) -> (i32, i32) {
    %c0_i32 = arith.constant 0 : i32
    %c0_i32_0 = arith.constant 0 : i32
    %c0_i32_1 = arith.constant 0 : i32
    return %c0_i32, %c0_i32_0 : i32, i32
  }
  func.func @transform_11(%arg0: i32, %arg1: i32) -> (i32, i32, i32) {
    %c0_i32 = arith.constant 0 : i32
    %c0_i32_0 = arith.constant 0 : i32
    %c0_i32_1 = arith.constant 0 : i32
    return %arg1, %c0_i32, %c0_i32_0 : i32, i32, i32
  }
  func.func @transform_12(%arg0: i32, %arg1: i32) -> (i32, i32, i32, i32) {
    %c0_i32 = arith.constant 0 : i32
    %c0_i32_0 = arith.constant 0 : i32
    %c0_i32_1 = arith.constant 0 : i32
    return %arg0, %arg1, %c0_i32, %c0_i32_0 : i32, i32, i32, i32
  }
}

</mosaic_0001>

<llo_original>
// kernel: swin_adaln_block.1
$region0: #{swin_adaln_block.1}
  #allocation0 [shape = 'u32[]', space=smem, size = 0x4, offset = 0x4, fixed_abs, tag = 'smem constant byte address 0x4 - core index']
  #allocation1 [shape = 'u32[144,128]{1,0:T(1,128)}', space=vmem, size = 0x12000, scoped, tag = 'internal scratch']
  %s0 = inlined_call_operand.vmem [shape: f32[2,4,16,32], index: 0, kind: input, shape index: {}]
  %s1 = inlined_call_operand.vmem [shape: f32[2,6,32], index: 1, kind: input, shape index: {}]
  %s2 = inlined_call_operand.vmem [shape: bf16[4,32,8], index: 2, kind: input, shape index: {}]
  %s3 = inlined_call_operand.vmem [shape: bf16[4,32,8], index: 3, kind: input, shape index: {}]
  %s4 = inlined_call_operand.vmem [shape: bf16[4,32,8], index: 4, kind: input, shape index: {}]
  %s5 = inlined_call_operand.vmem [shape: bf16[4,8,32], index: 5, kind: input, shape index: {}]
  %s6 = inlined_call_operand.vmem [shape: f32[1,32], index: 6, kind: input, shape index: {}]
  %s7 = inlined_call_operand.vmem [shape: bf16[32,128], index: 7, kind: input, shape index: {}]
  %s8 = inlined_call_operand.vmem [shape: f32[1,128], index: 8, kind: input, shape index: {}]
  %s9 = inlined_call_operand.vmem [shape: bf16[128,32], index: 9, kind: input, shape index: {}]
  %s10 = inlined_call_operand.vmem [shape: f32[1,32], index: 10, kind: input, shape index: {}]
  %s11 = inlined_call_operand.vmem [shape: f32[4,16,16], index: 11, kind: input, shape index: {}]
  %s12 = inlined_call_operand.vmem [shape: f32[2,4,16,32], index: 12, kind: output, shape index: {}]
  %s13 = sld [smem:[#allocation0]]
  $region81: #{swin_adaln_block.1} parent=0
    _
  %s15 = ssub.s32 1, %s13
  %s16 = scalar_select 0, %s15, %s13
  loop: start=0, step=1, limit=6
  $region2: #{swin_adaln_block.1} parent=0 // loop_pre_header
    _
  $region3: #{swin_adaln_block.1} parent=0 // loop_header
    %s18 = sphi 0, %s22
    %p19 = scmp.ge.s32.totalorder %s18, 6
    %s25 = sphi 0, %s37
    %s26 = sphi 0, %s33
    %s27 = sphi 0, %s25
    %s28 = sphi 0, %s26
    %s29 = sphi 0, %s27
    %s30 = sphi 0, %s28
    %s42 = sphi 0, %s44
    %s45 = sphi 0, %s42
    %s46 = sphi 0, %s45
    %s62 = sphi 0, %s46
    %s68 = sphi 0, %s70
    %s71 = sphi 0, %s68
    %s72 = sphi 0, %s71
    %s88 = sphi 0, %s72
    %s92 = sphi 0, %s92
    %s94 = sphi 0, %s92
    %s95 = sphi 0, %s94
    %s109 = sphi 0, %s95
    %s113 = sphi 0, %s113
    %s115 = sphi 0, %s113
    %s116 = sphi 0, %s115
    %s130 = sphi 0, %s116
    %s134 = sphi 0, %s134
    %s136 = sphi 0, %s134
    %s137 = sphi 0, %s136
    %s151 = sphi 0, %s137
    %s155 = sphi 0, %s155
    %s157 = sphi 0, %s155
    %s158 = sphi 0, %s157
    %s172 = sphi 0, %s158
    %s176 = sphi 0, %s176
    %s178 = sphi 0, %s176
    %s179 = sphi 0, %s178
    %s193 = sphi 0, %s179
    %s197 = sphi 0, %s197
    %s199 = sphi 0, %s197
    %s200 = sphi 0, %s199
    %s214 = sphi 0, %s200
    %s218 = sphi 0, %s218
    %s220 = sphi 0, %s218
    %s221 = sphi 0, %s220
    %s235 = sphi 0, %s221
    %s239 = sphi 0, %s239
    %s241 = sphi 0, %s239
    %s242 = sphi 0, %s241
    %s256 = sphi 0, %s242
    %s260 = sphi 0, %s260
    %s262 = sphi 0, %s260
    %s263 = sphi 0, %s262
    %s277 = sphi 0, %s263
    %s283 = sphi 0, %s285
    %s286 = sphi 0, %s283
    %s287 = sphi 0, %s286
    %s303 = sphi 0, %s287
    %s311 = sphi 0, %s313
    %s314 = sphi 0, %s311
    %s315 = sphi 0, %s314
    %s331 = sphi 0, %s315
  $region4: #{swin_adaln_block.1} parent=0 // loop_header_branch
    %21 = sbr.rel (%p19) target = $region8
  $region5: #{swin_adaln_block.1} parent=0 // loop_body
    %s23 = ssub.s32 %s18, 1
    %s24 = ssub.s32 %s18, 2
    %s31 = sadd.s32 1, %s26
    %p32 = scmp.ge.s32.totalorder %s31, 2
    %s33 = scalar_select %p32, 0, %s31
    %s34 = sadd.s32 1, %s25
    %s35 = scalar_select %p32, %s34, %s25
    %p36 = scmp.ge.s32.totalorder %s35, 2
    %s37 = scalar_select %p36, 0, %s35
    %s38 = ssub.s32 %s25, %s37
    %s39 = ssub.s32 %s26, %s33
    %s40 = sor.u32 %s38, %s39
    %p41 = scmp.eq.s32.totalorder %s40, 0
    %s43 = sadd.s32 %s42, 1
    %s44 = scalar_select %p41, %s42, %s43
    %p47 = pneg %p41
    %p48 = scmp.eq.s32.totalorder %s18, 3
    %p49 = por %p47, %p48
    %p50 = scmp.ne.s32.totalorder %s42, %s45
    %p51 = scmp.eq.s32.totalorder %s18, 0
    %p52 = por %p50, %p51
    %p53 = scmp.ne.s32.totalorder %s42, %s45
    %p54 = scmp.eq.s32.totalorder %s23, 3
    %p55 = por %p53, %p54
    %p56 = scmp.ne.s32.totalorder %s45, %s46
    %p57 = scmp.eq.s32.totalorder %s23, 0
    %p58 = por %p56, %p57
    %p59 = scmp.ne.s32.totalorder %s45, %s46
    %p60 = scmp.eq.s32.totalorder %s24, 3
    %p61 = por %p59, %p60
    %p63 = scmp.ne.s32.totalorder %s46, %s62
    %p64 = scmp.eq.s32.totalorder %s24, 0
    %p65 = por %p63, %p64
    %s66 = ssub.s32 %s25, %s37
    %p67 = scmp.eq.s32.totalorder %s66, 0
    %s69 = sadd.s32 %s68, 1
    %s70 = scalar_select %p67, %s68, %s69
    %p73 = pneg %p67
    %p74 = scmp.eq.s32.totalorder %s18, 3
    %p75 = por %p73, %p74
    %p76 = scmp.ne.s32.totalorder %s68, %s71
    %p77 = scmp.eq.s32.totalorder %s18, 0
    %p78 = por %p76, %p77
    %p79 = scmp.ne.s32.totalorder %s68, %s71
    %p80 = scmp.eq.s32.totalorder %s23, 3
    %p81 = por %p79, %p80
    %p82 = scmp.ne.s32.totalorder %s71, %s72
    %p83 = scmp.eq.s32.totalorder %s23, 0
    %p84 = por %p82, %p83
    %p85 = scmp.ne.s32.totalorder %s71, %s72
    %p86 = scmp.eq.s32.totalorder %s24, 3
    %p87 = por %p85, %p86
    %p89 = scmp.ne.s32.totalorder %s72, %s88
    %p90 = scmp.eq.s32.totalorder %s24, 0
    %p91 = por %p89, %p90
    %s93 = sadd.s32 %s92, 1
    %p96 = scmp.eq.s32.totalorder %s18, 3
    %p97 = scmp.ne.s32.totalorder %s92, %s94
    %p98 = scmp.eq.s32.totalorder %s18, 0
    %p99 = por %p97, %p98
    %p100 = scmp.ne.s32.totalorder %s92, %s94
    %p101 = scmp.eq.s32.totalorder %s23, 3
    %p102 = por %p100, %p101
    %p103 = scmp.ne.s32.totalorder %s94, %s95
    %p104 = scmp.eq.s32.totalorder %s23, 0
    %p105 = por %p103, %p104
    %p106 = scmp.ne.s32.totalorder %s94, %s95
    %p107 = scmp.eq.s32.totalorder %s24, 3
    %p108 = por %p106, %p107
    %p110 = scmp.ne.s32.totalorder %s95, %s109
    %p111 = scmp.eq.s32.totalorder %s24, 0
    %p112 = por %p110, %p111
    %s114 = sadd.s32 %s113, 1
    %p117 = scmp.eq.s32.totalorder %s18, 3
    %p118 = scmp.ne.s32.totalorder %s113, %s115
    %p119 = scmp.eq.s32.totalorder %s18, 0
    %p120 = por %p118, %p119
    %p121 = scmp.ne.s32.totalorder %s113, %s115
    %p122 = scmp.eq.s32.totalorder %s23, 3
    %p123 = por %p121, %p122
    %p124 = scmp.ne.s32.totalorder %s115, %s116
    %p125 = scmp.eq.s32.totalorder %s23, 0
    %p126 = por %p124, %p125
    %p127 = scmp.ne.s32.totalorder %s115, %s116
    %p128 = scmp.eq.s32.totalorder %s24, 3
    %p129 = por %p127, %p128
    %p131 = scmp.ne.s32.totalorder %s116, %s130
    %p132 = scmp.eq.s32.totalorder %s24, 0
    %p133 = por %p131, %p132
    %s135 = sadd.s32 %s134, 1
    %p138 = scmp.eq.s32.totalorder %s18, 3
    %p139 = scmp.ne.s32.totalorder %s134, %s136
    %p140 = scmp.eq.s32.totalorder %s18, 0
    %p141 = por %p139, %p140
    %p142 = scmp.ne.s32.totalorder %s134, %s136
    %p143 = scmp.eq.s32.totalorder %s23, 3
    %p144 = por %p142, %p143
    %p145 = scmp.ne.s32.totalorder %s136, %s137
    %p146 = scmp.eq.s32.totalorder %s23, 0
    %p147 = por %p145, %p146
    %p148 = scmp.ne.s32.totalorder %s136, %s137
    %p149 = scmp.eq.s32.totalorder %s24, 3
    %p150 = por %p148, %p149
    %p152 = scmp.ne.s32.totalorder %s137, %s151
    %p153 = scmp.eq.s32.totalorder %s24, 0
    %p154 = por %p152, %p153
    %s156 = sadd.s32 %s155, 1
    %p159 = scmp.eq.s32.totalorder %s18, 3
    %p160 = scmp.ne.s32.totalorder %s155, %s157
    %p161 = scmp.eq.s32.totalorder %s18, 0
    %p162 = por %p160, %p161
    %p163 = scmp.ne.s32.totalorder %s155, %s157
    %p164 = scmp.eq.s32.totalorder %s23, 3
    %p165 = por %p163, %p164
    %p166 = scmp.ne.s32.totalorder %s157, %s158
    %p167 = scmp.eq.s32.totalorder %s23, 0
    %p168 = por %p166, %p167
    %p169 = scmp.ne.s32.totalorder %s157, %s158
    %p170 = scmp.eq.s32.totalorder %s24, 3
    %p171 = por %p169, %p170
    %p173 = scmp.ne.s32.totalorder %s158, %s172
    %p174 = scmp.eq.s32.totalorder %s24, 0
    %p175 = por %p173, %p174
    %s177 = sadd.s32 %s176, 1
    %p180 = scmp.eq.s32.totalorder %s18, 3
    %p181 = scmp.ne.s32.totalorder %s176, %s178
    %p182 = scmp.eq.s32.totalorder %s18, 0
    %p183 = por %p181, %p182
    %p184 = scmp.ne.s32.totalorder %s176, %s178
    %p185 = scmp.eq.s32.totalorder %s23, 3
    %p186 = por %p184, %p185
    %p187 = scmp.ne.s32.totalorder %s178, %s179
    %p188 = scmp.eq.s32.totalorder %s23, 0
    %p189 = por %p187, %p188
    %p190 = scmp.ne.s32.totalorder %s178, %s179
    %p191 = scmp.eq.s32.totalorder %s24, 3
    %p192 = por %p190, %p191
    %p194 = scmp.ne.s32.totalorder %s179, %s193
    %p195 = scmp.eq.s32.totalorder %s24, 0
    %p196 = por %p194, %p195
    %s198 = sadd.s32 %s197, 1
    %p201 = scmp.eq.s32.totalorder %s18, 3
    %p202 = scmp.ne.s32.totalorder %s197, %s199
    %p203 = scmp.eq.s32.totalorder %s18, 0
    %p204 = por %p202, %p203
    %p205 = scmp.ne.s32.totalorder %s197, %s199
    %p206 = scmp.eq.s32.totalorder %s23, 3
    %p207 = por %p205, %p206
    %p208 = scmp.ne.s32.totalorder %s199, %s200
    %p209 = scmp.eq.s32.totalorder %s23, 0
    %p210 = por %p208, %p209
    %p211 = scmp.ne.s32.totalorder %s199, %s200
    %p212 = scmp.eq.s32.totalorder %s24, 3
    %p213 = por %p211, %p212
    %p215 = scmp.ne.s32.totalorder %s200, %s214
    %p216 = scmp.eq.s32.totalorder %s24, 0
    %p217 = por %p215, %p216
    %s219 = sadd.s32 %s218, 1
    %p222 = scmp.eq.s32.totalorder %s18, 3
    %p223 = scmp.ne.s32.totalorder %s218, %s220
    %p224 = scmp.eq.s32.totalorder %s18, 0
    %p225 = por %p223, %p224
    %p226 = scmp.ne.s32.totalorder %s218, %s220
    %p227 = scmp.eq.s32.totalorder %s23, 3
    %p228 = por %p226, %p227
    %p229 = scmp.ne.s32.totalorder %s220, %s221
    %p230 = scmp.eq.s32.totalorder %s23, 0
    %p231 = por %p229, %p230
    %p232 = scmp.ne.s32.totalorder %s220, %s221
    %p233 = scmp.eq.s32.totalorder %s24, 3
    %p234 = por %p232, %p233
    %p236 = scmp.ne.s32.totalorder %s221, %s235
    %p237 = scmp.eq.s32.totalorder %s24, 0
    %p238 = por %p236, %p237
    %s240 = sadd.s32 %s239, 1
    %p243 = scmp.eq.s32.totalorder %s18, 3
    %p244 = scmp.ne.s32.totalorder %s239, %s241
    %p245 = scmp.eq.s32.totalorder %s18, 0
    %p246 = por %p244, %p245
    %p247 = scmp.ne.s32.totalorder %s239, %s241
    %p248 = scmp.eq.s32.totalorder %s23, 3
    %p249 = por %p247, %p248
    %p250 = scmp.ne.s32.totalorder %s241, %s242
    %p251 = scmp.eq.s32.totalorder %s23, 0
    %p252 = por %p250, %p251
    %p253 = scmp.ne.s32.totalorder %s241, %s242
    %p254 = scmp.eq.s32.totalorder %s24, 3
    %p255 = por %p253, %p254
    %p257 = scmp.ne.s32.totalorder %s242, %s256
    %p258 = scmp.eq.s32.totalorder %s24, 0
    %p259 = por %p257, %p258
    %s261 = sadd.s32 %s260, 1
    %p264 = scmp.eq.s32.totalorder %s18, 3
    %p265 = scmp.ne.s32.totalorder %s260, %s262
    %p266 = scmp.eq.s32.totalorder %s18, 0
    %p267 = por %p265, %p266
    %p268 = scmp.ne.s32.totalorder %s260, %s262
    %p269 = scmp.eq.s32.totalorder %s23, 3
    %p270 = por %p268, %p269
    %p271 = scmp.ne.s32.totalorder %s262, %s263
    %p272 = scmp.eq.s32.totalorder %s23, 0
    %p273 = por %p271, %p272
    %p274 = scmp.ne.s32.totalorder %s262, %s263
    %p275 = scmp.eq.s32.totalorder %s24, 3
    %p276 = por %p274, %p275
    %p278 = scmp.ne.s32.totalorder %s263, %s277
    %p279 = scmp.eq.s32.totalorder %s24, 0
    %p280 = por %p278, %p279
    %s281 = ssub.s32 %s26, %s33
    %p282 = scmp.eq.s32.totalorder %s281, 0
    %s284 = sadd.s32 %s283, 1
    %s285 = scalar_select %p282, %s283, %s284
    %p288 = pneg %p282
    %p289 = scmp.eq.s32.totalorder %s18, 3
    %p290 = por %p288, %p289
    %p291 = scmp.ne.s32.totalorder %s283, %s286
    %p292 = scmp.eq.s32.totalorder %s18, 0
    %p293 = por %p291, %p292
    %p294 = scmp.ne.s32.totalorder %s283, %s286
    %p295 = scmp.eq.s32.totalorder %s23, 3
    %p296 = por %p294, %p295
    %p297 = scmp.ne.s32.totalorder %s286, %s287
    %p298 = scmp.eq.s32.totalorder %s23, 0
    %p299 = por %p297, %p298
    %p300 = scmp.ne.s32.totalorder %s286, %s287
    %p301 = scmp.eq.s32.totalorder %s24, 3
    %p302 = por %p300, %p301
    %p304 = scmp.ne.s32.totalorder %s287, %s303
    %p305 = scmp.eq.s32.totalorder %s24, 0
    %p306 = por %p304, %p305
    %s307 = ssub.s32 %s25, %s37
    %s308 = ssub.s32 %s26, %s33
    %s309 = sor.u32 %s307, %s308
    %p310 = scmp.eq.s32.totalorder %s309, 0
    %s312 = sadd.s32 %s311, 1
    %s313 = scalar_select %p310, %s311, %s312
    %p316 = pneg %p310
    %p317 = scmp.eq.s32.totalorder %s18, 3
    %p318 = por %p316, %p317
    %p319 = scmp.ne.s32.totalorder %s311, %s314
    %p320 = scmp.eq.s32.totalorder %s18, 0
    %p321 = por %p319, %p320
    %p322 = scmp.ne.s32.totalorder %s311, %s314
    %p323 = scmp.eq.s32.totalorder %s23, 3
    %p324 = por %p322, %p323
    %p325 = scmp.ne.s32.totalorder %s314, %s315
    %p326 = scmp.eq.s32.totalorder %s23, 0
    %p327 = por %p325, %p326
    %p328 = scmp.ne.s32.totalorder %s314, %s315
    %p329 = scmp.eq.s32.totalorder %s24, 3
    %p330 = por %p328, %p329
    %p332 = scmp.ne.s32.totalorder %s315, %s331
    %p333 = scmp.eq.s32.totalorder %s24, 0
    %p334 = por %p332, %p333
    %p335 = scmp.le.s32.totalorder 1, %s18
    %p336 = scmp.lt.s32.totalorder %s18, 5
    %p337 = pnand %p335, %p336
    %p338 = pneg %p337
    // Predicated region
    $region9: #{swin_adaln_block.1} parent=5 // pred_check
      _
    $region10: #{swin_adaln_block.1} parent=5 // pred_check_branch
      %340 = sbr.rel (%p337) target = $region12
    $region11: #{swin_adaln_block.1} parent=5 // pred_region
      %s341 = ssub.s32 %s18, 1
      // Predicated region
      $region13: #{swin_adaln_block.1} parent=11 // pred_check
        %p342 = pneg %p105
      $region14: #{swin_adaln_block.1} parent=11 // pred_check_branch
        %344 = sbr.rel (%p342) target = $region16
      $region15: #{swin_adaln_block.1} parent=11 // pred_region
        _
      $region16: #{swin_adaln_block.1} parent=11 // pred_fallthru
        _
      // Predicated region
      $region17: #{swin_adaln_block.1} parent=11 // pred_check
        %p345 = pneg %p126
      $region18: #{swin_adaln_block.1} parent=11 // pred_check_branch
        %347 = sbr.rel (%p345) target = $region20
      $region19: #{swin_adaln_block.1} parent=11 // pred_region
        _
      $region20: #{swin_adaln_block.1} parent=11 // pred_fallthru
        _
      // Predicated region
      $region21: #{swin_adaln_block.1} parent=11 // pred_check
        %p348 = pneg %p147
      $region22: #{swin_adaln_block.1} parent=11 // pred_check_branch
        %350 = sbr.rel (%p348) target = $region24
      $region23: #{swin_adaln_block.1} parent=11 // pred_region
        _
      $region24: #{swin_adaln_block.1} parent=11 // pred_fallthru
        _
      // Predicated region
      $region25: #{swin_adaln_block.1} parent=11 // pred_check
        %p351 = pneg %p168
      $region26: #{swin_adaln_block.1} parent=11 // pred_check_branch
        %353 = sbr.rel (%p351) target = $region28
      $region27: #{swin_adaln_block.1} parent=11 // pred_region
        _
      $region28: #{swin_adaln_block.1} parent=11 // pred_fallthru
        _
      // Predicated region
      $region29: #{swin_adaln_block.1} parent=11 // pred_check
        %p354 = pneg %p189
      $region30: #{swin_adaln_block.1} parent=11 // pred_check_branch
        %356 = sbr.rel (%p354) target = $region32
      $region31: #{swin_adaln_block.1} parent=11 // pred_region
        _
      $region32: #{swin_adaln_block.1} parent=11 // pred_fallthru
        _
      // Predicated region
      $region33: #{swin_adaln_block.1} parent=11 // pred_check
        %p357 = pneg %p210
      $region34: #{swin_adaln_block.1} parent=11 // pred_check_branch
        %359 = sbr.rel (%p357) target = $region36
      $region35: #{swin_adaln_block.1} parent=11 // pred_region
        _
      $region36: #{swin_adaln_block.1} parent=11 // pred_fallthru
        _
      // Predicated region
      $region37: #{swin_adaln_block.1} parent=11 // pred_check
        %p360 = pneg %p231
      $region38: #{swin_adaln_block.1} parent=11 // pred_check_branch
        %362 = sbr.rel (%p360) target = $region40
      $region39: #{swin_adaln_block.1} parent=11 // pred_region
        _
      $region40: #{swin_adaln_block.1} parent=11 // pred_fallthru
        _
      // Predicated region
      $region41: #{swin_adaln_block.1} parent=11 // pred_check
        %p363 = pneg %p252
      $region42: #{swin_adaln_block.1} parent=11 // pred_check_branch
        %365 = sbr.rel (%p363) target = $region44
      $region43: #{swin_adaln_block.1} parent=11 // pred_region
        _
      $region44: #{swin_adaln_block.1} parent=11 // pred_fallthru
        _
      // Predicated region
      $region45: #{swin_adaln_block.1} parent=11 // pred_check
        %p366 = pneg %p273
      $region46: #{swin_adaln_block.1} parent=11 // pred_check_branch
        %368 = sbr.rel (%p366) target = $region48
      $region47: #{swin_adaln_block.1} parent=11 // pred_region
        _
      $region48: #{swin_adaln_block.1} parent=11 // pred_fallthru
        _
    $region12: #{swin_adaln_block.1} parent=5 // pred_fallthru
      _
    %p369 = scmp.lt.s32.totalorder %s18, 4
    // Predicated region
    $region49: #{swin_adaln_block.1} parent=5 // pred_check
      %p370 = pneg %p369
    $region50: #{swin_adaln_block.1} parent=5 // pred_check_branch
      %372 = sbr.rel (%p370) target = $region52
    $region51: #{swin_adaln_block.1} parent=5 // pred_region
      // Predicated region
      $region53: #{swin_adaln_block.1} parent=51 // pred_check
        %p373 = pneg %p52
      $region54: #{swin_adaln_block.1} parent=51 // pred_check_branch
        %375 = sbr.rel (%p373) target = $region56
      $region55: #{swin_adaln_block.1} parent=51 // pred_region
        %s376 = smul.u32 2, %s26
        %p377 = scmp.lt.s32.totalorder %s25, 1
        %s378 = scalar_select %p377, %s25, 1
        %p379 = scmp.lt.s32.totalorder %s376, 3
        %s380 = scalar_select %p379, %s376, 3
        %s381 = smul.addr %s380, 2
        %s382 = smul.addr %s378, 8
        %s383 = sadd.s32 %s381, %s382
        %s384 = smul.addr %s383, 8
        %s385 = scalar_lea.vmem %s0, %s384
        %s386 = smul.u32 2, %s26
      $region56: #{swin_adaln_block.1} parent=51 // pred_fallthru
        _
      // Predicated region
      $region57: #{swin_adaln_block.1} parent=51 // pred_check
        %p387 = pneg %p78
      $region58: #{swin_adaln_block.1} parent=51 // pred_check_branch
        %389 = sbr.rel (%p387) target = $region60
      $region59: #{swin_adaln_block.1} parent=51 // pred_region
        %p390 = scmp.lt.s32.totalorder %s25, 1
        %s391 = scalar_select %p390, %s25, 1
        %s392 = smul.addr %s391, 8
        %s393 = scalar_lea.vmem %s1, %s392
      $region60: #{swin_adaln_block.1} parent=51 // pred_fallthru
        _
      // Predicated region
      $region61: #{swin_adaln_block.1} parent=51 // pred_check
        %p394 = pneg %p293
      $region62: #{swin_adaln_block.1} parent=51 // pred_check_branch
        %396 = sbr.rel (%p394) target = $region64
      $region63: #{swin_adaln_block.1} parent=51 // pred_region
        %s397 = smul.u32 2, %s26
        %p398 = scmp.lt.s32.totalorder %s397, 3
        %s399 = scalar_select %p398, %s397, 3
        %s400 = smul.addr %s399, 2
        %s401 = smul.addr %s400, 8
        %s402 = scalar_lea.vmem %s11, %s401
        %s403 = smul.u32 2, %s26
      $region64: #{swin_adaln_block.1} parent=51 // pred_fallthru
        _
    $region52: #{swin_adaln_block.1} parent=5 // pred_fallthru
      _
    %p404 = scmp.le.s32.totalorder 1, %s18
    %p405 = scmp.lt.s32.totalorder %s18, 5
    %p406 = pnand %p404, %p405
    %p407 = pneg %p406
    // Predicated region
    $region65: #{swin_adaln_block.1} parent=5 // pred_check
      _
    $region66: #{swin_adaln_block.1} parent=5 // pred_check_branch
      %409 = sbr.rel (%p406) target = $region68
    $region67: #{swin_adaln_block.1} parent=5 // pred_region
      %s410 = ssub.s32 %s18, 1
      %s411 = smul.u32 2, %s28
      %p412 = scmp.lt.s32.totalorder %s27, 1
      %s413 = scalar_select %p412, %s27, 1
      %p414 = scmp.lt.s32.totalorder %s411, 3
      %s415 = scalar_select %p414, %s411, 3
      %s416 = smul.addr %s415, 2
      %s417 = smul.addr %s413, 8
      %s418 = sadd.s32 %s416, %s417
      %s419 = smul.addr %s418, 8
      %s420 = scalar_lea.vmem %s0, %s419
      %p421 = pneg %p58
      %p422 = pneg %p55
      %p423 = scmp.lt.s32.totalorder %s27, 1
      %s424 = scalar_select %p423, %s27, 1
      %s425 = smul.addr %s424, 8
      %s426 = scalar_lea.vmem %s1, %s425
      %p427 = pneg %p84
      %p428 = pneg %p81
      %p429 = pneg %p105
      %p430 = pneg %p102
      %p431 = pneg %p126
      %p432 = pneg %p123
      %p433 = pneg %p147
      %p434 = pneg %p144
      %p435 = pneg %p168
      %p436 = pneg %p165
      %p437 = pneg %p189
      %p438 = pneg %p186
      %p439 = pneg %p210
      %p440 = pneg %p207
      %p441 = pneg %p231
      %p442 = pneg %p228
      %p443 = pneg %p252
      %p444 = pneg %p249
      %p445 = pneg %p273
      %p446 = pneg %p270
      %s447 = smul.u32 2, %s28
      %p448 = scmp.lt.s32.totalorder %s447, 3
      %s449 = scalar_select %p448, %s447, 3
      %s450 = smul.addr %s449, 2
      %s451 = smul.addr %s450, 8
      %s452 = scalar_lea.vmem %s11, %s451
      %p453 = pneg %p299
      %p454 = pneg %p296
      %p455 = pneg %p327
      %p456 = pneg %p324
      %s457 = smul.u32 2, %s28
      %p458 = scmp.lt.s32.totalorder %s27, 1
      %s459 = scalar_select %p458, %s27, 1
      %p460 = scmp.lt.s32.totalorder %s457, 3
      %s461 = scalar_select %p460, %s457, 3
      %s462 = smul.addr %s461, 2
      %s463 = smul.addr %s459, 8
      %s464 = sadd.s32 %s462, %s463
      %s465 = smul.addr %s464, 8
      %s466 = scalar_lea.vmem %s12, %s465
      %s467 = smul.u32 2, %s28
      %p468 = scmp.lt.s32.totalorder %s27, 1
      %s469 = scalar_select %p468, %s27, 1
      %p470 = scmp.lt.s32.totalorder %s467, 3
      %s471 = scalar_select %p470, %s467, 3
      %s472 = smul.addr %s471, 2
      %s473 = smul.addr %s469, 8
      %s474 = sadd.s32 %s472, %s473
      %s475 = smul.addr %s474, 8
      %s476 = scalar_lea.vmem %s0, %s475
      %s477 = smul.u32 2, %s28
      %p478 = scmp.lt.s32.totalorder %s27, 1
      %s479 = scalar_select %p478, %s27, 1
      %s480 = smul.addr %s479, 8
      %s481 = scalar_lea.vmem %s1, %s480
      %s482 = smul.u32 2, %s28
      %p483 = scmp.lt.s32.totalorder %s482, 3
      %s484 = scalar_select %p483, %s482, 3
      %s485 = smul.addr %s484, 2
      %s486 = smul.addr %s485, 8
      %s487 = scalar_lea.vmem %s11, %s486
      %s488 = smul.u32 2, %s28
      %s489 = smul.u32 2, %s28
      %p490 = scmp.lt.s32.totalorder %s27, 1
      %s491 = scalar_select %p490, %s27, 1
      %p492 = scmp.lt.s32.totalorder %s489, 3
      %s493 = scalar_select %p492, %s489, 3
      %s494 = smul.addr %s493, 2
      %s495 = smul.addr %s491, 8
      %s496 = sadd.s32 %s494, %s495
      %s497 = smul.addr %s496, 8
      %s498 = scalar_lea.vmem %s12, %s497
      %s499 = smul.u32 2, %s28
      %v501 = vld [vmem:[%s476] sm:$0xff]
      %v502 = vld [vmem:[%s476 + $0x8] sm:$0xff]
      %v503 = vld [vmem:[%s476 + $0x10] sm:$0xff]
      %v504 = vld [vmem:[%s476 + $0x18] sm:$0xff]
      %v505 = vld [vmem:[%s481] sm:$0x3f]
      %vm506 = vcmask 261120
      %v507 = vsel %vm506, %v501, 0.0
      %508 = vadd.xlane.f32.xlu0 %v507
      %v509 = vpop.xlane.xlu0 %508
      %v510 = vsel %vm506, %v502, 0.0
      %511 = vadd.xlane.f32.xlu0 %v510
      %v512 = vpop.xlane.xlu0 %511
      %v513 = vsel %vm506, %v503, 0.0
      %514 = vadd.xlane.f32.xlu0 %v513
      %v515 = vpop.xlane.xlu0 %514
      %v516 = vsel %vm506, %v504, 0.0
      %517 = vadd.xlane.f32.xlu0 %v516
      %v518 = vpop.xlane.xlu0 %517
      %v519 = vrcp.pop 32.0
      %v520 = vmul.f32 %v509, %v519
      %v521 = vmul.f32 %v512, %v519
      %v522 = vmul.f32 %v515, %v519
      %v523 = vmul.f32 %v518, %v519
      %v524 = vsub.f32 %v501, %v520
      %v525 = vsub.f32 %v502, %v521
      %v526 = vsub.f32 %v503, %v522
      %v527 = vsub.f32 %v504, %v523
      %v528 = vmul.f32 %v524, %v524
      %v529 = vmul.f32 %v525, %v525
      %v530 = vmul.f32 %v526, %v526
      %v531 = vmul.f32 %v527, %v527
      %v532 = vsel %vm506, %v528, 0.0
      %533 = vadd.xlane.f32.xlu0 %v532
      %v534 = vpop.xlane.xlu0 %533
      %v535 = vsel %vm506, %v529, 0.0
      %536 = vadd.xlane.f32.xlu0 %v535
      %v537 = vpop.xlane.xlu0 %536
      %v538 = vsel %vm506, %v530, 0.0
      %539 = vadd.xlane.f32.xlu0 %v538
      %v540 = vpop.xlane.xlu0 %539
      %v541 = vsel %vm506, %v531, 0.0
      %542 = vadd.xlane.f32.xlu0 %v541
      %v543 = vpop.xlane.xlu0 %542
      %v544 = vmul.f32 %v534, %v519
      %v545 = vmul.f32 %v537, %v519
      %v546 = vmul.f32 %v540, %v519
      %v547 = vmul.f32 %v543, %v519
      %v548 = vadd.f32 %v544, 1e-06
      %v549 = vadd.f32 %v545, 1e-06
      %v550 = vadd.f32 %v546, 1e-06
      %v551 = vadd.f32 %v547, 1e-06
      %v552 = vrsqrt.pop %v548
      %v553 = vrsqrt.pop %v549
      %v554 = vrsqrt.pop %v550
      %v555 = vrsqrt.pop %v551
      %v556 = vmul.f32 %v524, %v552
      %v557 = vmul.f32 %v525, %v553
      %v558 = vmul.f32 %v526, %v554
      %v559 = vmul.f32 %v527, %v555
      %v560 = vadd.f32 %v505, 1.0
      %v561 = vlaneseq
      %v562 = vshrl.u32 %v561, 7
      %v563 = vsub.s32 1, %v562
      %v564 = vrot.slane %v560, %v563
      %v565 = vmul.f32 %v556, %v564
      %v566 = vmul.f32 %v557, %v564
      %v567 = vmul.f32 %v558, %v564
      %v568 = vmul.f32 %v559, %v564
      %v569 = vlaneseq
      %v570 = vshrl.u32 %v569, 7
      %v571 = vsub.s32 0, %v570
      %v572 = vrot.slane %v505, %v571
      %v573 = vadd.f32 %v565, %v572
      %v574 = vadd.f32 %v566, %v572
      %v575 = vadd.f32 %v567, %v572
      %v576 = vadd.f32 %v568, %v572
      %v577 = vpack.c.bf16 %v574, %v573
      %v578 = vpack.c.bf16 %v576, %v575
      %v579 = vld [vmem:[%s2] sm:$0xf]
      %v580 = vld [vmem:[%s2 + $0x4] sm:$0xf]
      %v581 = vld [vmem:[%s2 + $0x8] sm:$0xf]
      %v582 = vld [vmem:[%s2 + $0xc] sm:$0xf]
      %v583 = vld [vmem:[%s2 + $0x10] sm:$0xf]
      %v584 = vld [vmem:[%s2 + $0x14] sm:$0xf]
      %v585 = vld [vmem:[%s2 + $0x18] sm:$0xf]
      %v586 = vld [vmem:[%s2 + $0x1c] sm:$0xf]
      %v587 = vld [vmem:[%s2 + $0x20] sm:$0xf]
      %v588 = vld [vmem:[%s2 + $0x24] sm:$0xf]
      %v589 = vld [vmem:[%s2 + $0x28] sm:$0xf]
      %v590 = vld [vmem:[%s2 + $0x2c] sm:$0xf]
      %v591 = vld [vmem:[%s2 + $0x30] sm:$0xf]
      %v592 = vld [vmem:[%s2 + $0x34] sm:$0xf]
      %v593 = vld [vmem:[%s2 + $0x38] sm:$0xf]
      %v594 = vld [vmem:[%s2 + $0x3c] sm:$0xf]
      %v599 = vunpack.c.l.b16 %v579
      %v600 = vunpack.c.l.b16 %v580
      %v601 = vunpack.c.l.b16 %v581
      %v602 = vunpack.c.l.b16 %v582
      %v603 = vpack.c.b16 %v600, %v599
      %v604 = vpack.c.b16 %v602, %v601
      %v608 = vsel %vm506, %v577, 0
      %v611 = vsel %vm506, %v578, 0
      %613 = vmatprep.subr.bf16.mxu0 0
      %614 = vmatpush1.bf16.msra.mxu0 %v603
      %615 = vmatprep.subr.bf16.mxu0 0
      %616 = vmatpush1.bf16.msra.mxu0 %v604
      %617 = vmatprep.subr.bf16.mxu0 0
      %618 = vmatpush1.bf16.msra.mxu0 0
      %619 = vmatprep.subr.bf16.mxu0 0
      %620 = vmatpush1.bf16.msra.mxu0 0
      %621 = vmatprep.subr.bf16.mxu0 0
      %622 = vmatpush1.bf16.msra.mxu0 0
      %623 = vmatprep.subr.bf16.mxu0 0
      %624 = vmatpush1.bf16.msra.mxu0 0
      %625 = vmatprep.subr.bf16.mxu0 0
      %626 = vmatpush1.bf16.msra.mxu0 0
      %627 = vmatprep.subr.bf16.mxu0 0
      %628 = vmatpush1.bf16.msra.mxu0 0
      %629 = vmatprep.subr.bf16.mxu0 0
      %630 = vmatpush1.bf16.msra.mxu0 0
      %631 = vmatprep.subr.bf16.mxu0 0
      %632 = vmatpush1.bf16.msra.mxu0 0
      %633 = vmatprep.subr.bf16.mxu0 0
      %634 = vmatpush1.bf16.msra.mxu0 0
      %635 = vmatprep.subr.bf16.mxu0 0
      %636 = vmatpush1.bf16.msra.mxu0 0
      %637 = vmatprep.subr.bf16.mxu0 0
      %638 = vmatpush1.bf16.msra.mxu0 0
      %639 = vmatprep.subr.bf16.mxu0 0
      %640 = vmatpush1.bf16.msra.mxu0 0
      %641 = vmatprep.subr.bf16.mxu0 0
      %642 = vmatpush1.bf16.msra.mxu0 0
      %643 = vmatprep.subr.bf16.mxu0 0
      %644 = vmatpush1.bf16.msra.mxu0 0
      %645 = vmatprep.mubr.bf16.mxu0 0
      %646 = vmatmul.mubr.bf16.gmra.mrb[0].mxu0 %v608
      %v647 = vpop.f32.mrb[0].mxu0
      %v648 = vadd.f32 0.0, %v647
      %v649 = vpop.f32.mrb[0].mxu0
      %v650 = vpop.f32.mrb[0].mxu0
      %v651 = vadd.f32 0.0, %v650
      %v652 = vpop.f32.mrb[0].mxu0
      %653 = vmatprep.mubr.bf16.mxu0 0
      %654 = vmatmul.mubr.bf16.gmra.mrb[0].mxu0 %v611
      %v655 = vpop.f32.mrb[0].mxu0
      %v656 = vadd.f32 0.0, %v655
      %v657 = vpop.f32.mrb[0].mxu0
      %v658 = vpop.f32.mrb[0].mxu0
      %v659 = vadd.f32 0.0, %v658
      %v660 = vpop.f32.mrb[0].mxu0
      %661 = vdwg.mxu0
      %v666 = vunpack.c.l.b16 %v583
      %v667 = vunpack.c.l.b16 %v584
      %v668 = vunpack.c.l.b16 %v585
      %v669 = vunpack.c.l.b16 %v586
      %v670 = vpack.c.b16 %v667, %v666
      %v671 = vpack.c.b16 %v669, %v668
      %674 = vmatprep.subr.bf16.mxu0 0
      %675 = vmatpush1.bf16.msra.mxu0 %v670
      %676 = vmatprep.subr.bf16.mxu0 0
      %677 = vmatpush1.bf16.msra.mxu0 %v671
      %678 = vmatprep.subr.bf16.mxu0 0
      %679 = vmatpush1.bf16.msra.mxu0 0
      %680 = vmatprep.subr.bf16.mxu0 0
      %681 = vmatpush1.bf16.msra.mxu0 0
      %682 = vmatprep.subr.bf16.mxu0 0
      %683 = vmatpush1.bf16.msra.mxu0 0
      %684 = vmatprep.subr.bf16.mxu0 0
      %685 = vmatpush1.bf16.msra.mxu0 0
      %686 = vmatprep.subr.bf16.mxu0 0
      %687 = vmatpush1.bf16.msra.mxu0 0
      %688 = vmatprep.subr.bf16.mxu0 0
      %689 = vmatpush1.bf16.msra.mxu0 0
      %690 = vmatprep.subr.bf16.mxu0 0
      %691 = vmatpush1.bf16.msra.mxu0 0
      %692 = vmatprep.subr.bf16.mxu0 0
      %693 = vmatpush1.bf16.msra.mxu0 0
      %694 = vmatprep.subr.bf16.mxu0 0
      %695 = vmatpush1.bf16.msra.mxu0 0
      %696 = vmatprep.subr.bf16.mxu0 0
      %697 = vmatpush1.bf16.msra.mxu0 0
      %698 = vmatprep.subr.bf16.mxu0 0
      %699 = vmatpush1.bf16.msra.mxu0 0
      %700 = vmatprep.subr.bf16.mxu0 0
      %701 = vmatpush1.bf16.msra.mxu0 0
      %702 = vmatprep.subr.bf16.mxu0 0
      %703 = vmatpush1.bf16.msra.mxu0 0
      %704 = vmatprep.subr.bf16.mxu0 0
      %705 = vmatpush1.bf16.msra.mxu0 0
      %706 = vmatprep.mubr.bf16.mxu0 0
      %707 = vmatmul.mubr.bf16.gmra.mrb[0].mxu0 %v608
      %v708 = vpop.f32.mrb[0].mxu0
      %v709 = vadd.f32 0.0, %v708
      %v710 = vpop.f32.mrb[0].mxu0
      %v711 = vpop.f32.mrb[0].mxu0
      %v712 = vadd.f32 0.0, %v711
      %v713 = vpop.f32.mrb[0].mxu0
      %714 = vmatprep.mubr.bf16.mxu0 0
      %715 = vmatmul.mubr.bf16.gmra.mrb[0].mxu0 %v611
      %v716 = vpop.f32.mrb[0].mxu0
      %v717 = vadd.f32 0.0, %v716
      %v718 = vpop.f32.mrb[0].mxu0
      %v719 = vpop.f32.mrb[0].mxu0
      %v720 = vadd.f32 0.0, %v719
      %v721 = vpop.f32.mrb[0].mxu0
      %722 = vdwg.mxu0
      %v727 = vunpack.c.l.b16 %v587
      %v728 = vunpack.c.l.b16 %v588
      %v729 = vunpack.c.l.b16 %v589
      %v730 = vunpack.c.l.b16 %v590
      %v731 = vpack.c.b16 %v728, %v727
      %v732 = vpack.c.b16 %v730, %v729
      %735 = vmatprep.subr.bf16.mxu0 0
      %736 = vmatpush1.bf16.msra.mxu0 %v731
      %737 = vmatprep.subr.bf16.mxu0 0
      %738 = vmatpush1.bf16.msra.mxu0 %v732
      %739 = vmatprep.subr.bf16.mxu0 0
      %740 = vmatpush1.bf16.msra.mxu0 0
      %741 = vmatprep.subr.bf16.mxu0 0
      %742 = vmatpush1.bf16.msra.mxu0 0
      %743 = vmatprep.subr.bf16.mxu0 0
      %744 = vmatpush1.bf16.msra.mxu0 0
      %745 = vmatprep.subr.bf16.mxu0 0
      %746 = vmatpush1.bf16.msra.mxu0 0
      %747 = vmatprep.subr.bf16.mxu0 0
      %748 = vmatpush1.bf16.msra.mxu0 0
      %749 = vmatprep.subr.bf16.mxu0 0
      %750 = vmatpush1.bf16.msra.mxu0 0
      %751 = vmatprep.subr.bf16.mxu0 0
      %752 = vmatpush1.bf16.msra.mxu0 0
      %753 = vmatprep.subr.bf16.mxu0 0
      %754 = vmatpush1.bf16.msra.mxu0 0
      %755 = vmatprep.subr.bf16.mxu0 0
      %756 = vmatpush1.bf16.msra.mxu0 0
      %757 = vmatprep.subr.bf16.mxu0 0
      %758 = vmatpush1.bf16.msra.mxu0 0
      %759 = vmatprep.subr.bf16.mxu0 0
      %760 = vmatpush1.bf16.msra.mxu0 0
      %761 = vmatprep.subr.bf16.mxu0 0
      %762 = vmatpush1.bf16.msra.mxu0 0
      %763 = vmatprep.subr.bf16.mxu0 0
      %764 = vmatpush1.bf16.msra.mxu0 0
      %765 = vmatprep.subr.bf16.mxu0 0
      %766 = vmatpush1.bf16.msra.mxu0 0
      %767 = vmatprep.mubr.bf16.mxu0 0
      %768 = vmatmul.mubr.bf16.gmra.mrb[0].mxu0 %v608
      %v769 = vpop.f32.mrb[0].mxu0
      %v770 = vadd.f32 0.0, %v769
      %v771 = vpop.f32.mrb[0].mxu0
      %v772 = vpop.f32.mrb[0].mxu0
      %v773 = vadd.f32 0.0, %v772
      %v774 = vpop.f32.mrb[0].mxu0
      %775 = vmatprep.mubr.bf16.mxu0 0
      %776 = vmatmul.mubr.bf16.gmra.mrb[0].mxu0 %v611
      %v777 = vpop.f32.mrb[0].mxu0
      %v778 = vadd.f32 0.0, %v777
      %v779 = vpop.f32.mrb[0].mxu0
      %v780 = vpop.f32.mrb[0].mxu0
      %v781 = vadd.f32 0.0, %v780
      %v782 = vpop.f32.mrb[0].mxu0
      %783 = vdwg.mxu0
      %v788 = vunpack.c.l.b16 %v591
      %v789 = vunpack.c.l.b16 %v592
      %v790 = vunpack.c.l.b16 %v593
      %v791 = vunpack.c.l.b16 %v594
      %v792 = vpack.c.b16 %v789, %v788
      %v793 = vpack.c.b16 %v791, %v790
      %796 = vmatprep.subr.bf16.mxu0 0
      %797 = vmatpush1.bf16.msra.mxu0 %v792
      %798 = vmatprep.subr.bf16.mxu0 0
      %799 = vmatpush1.bf16.msra.mxu0 %v793
      %800 = vmatprep.subr.bf16.mxu0 0
      %801 = vmatpush1.bf16.msra.mxu0 0
      %802 = vmatprep.subr.bf16.mxu0 0
      %803 = vmatpush1.bf16.msra.mxu0 0
      %804 = vmatprep.subr.bf16.mxu0 0
      %805 = vmatpush1.bf16.msra.mxu0 0
      %806 = vmatprep.subr.bf16.mxu0 0
      %807 = vmatpush1.bf16.msra.mxu0 0
      %808 = vmatprep.subr.bf16.mxu0 0
      %809 = vmatpush1.bf16.msra.mxu0 0
      %810 = vmatprep.subr.bf16.mxu0 0
      %811 = vmatpush1.bf16.msra.mxu0 0
      %812 = vmatprep.subr.bf16.mxu0 0
      %813 = vmatpush1.bf16.msra.mxu0 0
      %814 = vmatprep.subr.bf16.mxu0 0
      %815 = vmatpush1.bf16.msra.mxu0 0
      %816 = vmatprep.subr.bf16.mxu0 0
      %817 = vmatpush1.bf16.msra.mxu0 0
      %818 = vmatprep.subr.bf16.mxu0 0
      %819 = vmatpush1.bf16.msra.mxu0 0
      %820 = vmatprep.subr.bf16.mxu0 0
      %821 = vmatpush1.bf16.msra.mxu0 0
      %822 = vmatprep.subr.bf16.mxu0 0
      %823 = vmatpush1.bf16.msra.mxu0 0
      %824 = vmatprep.subr.bf16.mxu0 0
      %825 = vmatpush1.bf16.msra.mxu0 0
      %826 = vmatprep.subr.bf16.mxu0 0
      %827 = vmatpush1.bf16.msra.mxu0 0
      %828 = vmatprep.mubr.bf16.mxu0 0
      %829 = vmatmul.mubr.bf16.gmra.mrb[0].mxu0 %v608
      %v830 = vpop.f32.mrb[0].mxu0
      %v831 = vadd.f32 0.0, %v830
      %v832 = vpop.f32.mrb[0].mxu0
      %v833 = vpop.f32.mrb[0].mxu0
      %v834 = vadd.f32 0.0, %v833
      %v835 = vpop.f32.mrb[0].mxu0
      %836 = vmatprep.mubr.bf16.mxu0 0
      %837 = vmatmul.mubr.bf16.gmra.mrb[0].mxu0 %v611
      %v838 = vpop.f32.mrb[0].mxu0
      %v839 = vadd.f32 0.0, %v838
      %v840 = vpop.f32.mrb[0].mxu0
      %v841 = vpop.f32.mrb[0].mxu0
      %v842 = vadd.f32 0.0, %v841
      %v843 = vpop.f32.mrb[0].mxu0
      %844 = vdwg.mxu0
      %v845 = vld [vmem:[%s3] sm:$0xf]
      %v846 = vld [vmem:[%s3 + $0x4] sm:$0xf]
      %v847 = vld [vmem:[%s3 + $0x8] sm:$0xf]
      %v848 = vld [vmem:[%s3 + $0xc] sm:$0xf]
      %v849 = vld [vmem:[%s3 + $0x10] sm:$0xf]
      %v850 = vld [vmem:[%s3 + $0x14] sm:$0xf]
      %v851 = vld [vmem:[%s3 + $0x18] sm:$0xf]
      %v852 = vld [vmem:[%s3 + $0x1c] sm:$0xf]
      %v853 = vld [vmem:[%s3 + $0x20] sm:$0xf]
      %v854 = vld [vmem:[%s3 + $0x24] sm:$0xf]
      %v855 = vld [vmem:[%s3 + $0x28] sm:$0xf]
      %v856 = vld [vmem:[%s3 + $0x2c] sm:$0xf]
      %v857 = vld [vmem:[%s3 + $0x30] sm:$0xf]
      %v858 = vld [vmem:[%s3 + $0x34] sm:$0xf]
      %v859 = vld [vmem:[%s3 + $0x38] sm:$0xf]
      %v860 = vld [vmem:[%s3 + $0x3c] sm:$0xf]
      %v865 = vunpack.c.l.b16 %v845
      %v866 = vunpack.c.l.b16 %v846
      %v867 = vunpack.c.l.b16 %v847
      %v868 = vunpack.c.l.b16 %v848
      %v869 = vpack.c.b16 %v866, %v865
      %v870 = vpack.c.b16 %v868, %v867
      %873 = vmatprep.subr.bf16.mxu0 0
      %874 = vmatpush1.bf16.msra.mxu0 %v869
      %875 = vmatprep.subr.bf16.mxu0 0
      %876 = vmatpush1.bf16.msra.mxu0 %v870
      %877 = vmatprep.subr.bf16.mxu0 0
      %878 = vmatpush1.bf16.msra.mxu0 0
      %879 = vmatprep.subr.bf16.mxu0 0
      %880 = vmatpush1.bf16.msra.mxu0 0
      %881 = vmatprep.subr.bf16.mxu0 0
      %882 = vmatpush1.bf16.msra.mxu0 0
      %883 = vmatprep.subr.bf16.mxu0 0
      %884 = vmatpush1.bf16.msra.mxu0 0
      %885 = vmatprep.subr.bf16.mxu0 0
      %886 = vmatpush1.bf16.msra.mxu0 0
      %887 = vmatprep.subr.bf16.mxu0 0
      %888 = vmatpush1.bf16.msra.mxu0 0
      %889 = vmatprep.subr.bf16.mxu0 0
      %890 = vmatpush1.bf16.msra.mxu0 0
      %891 = vmatprep.subr.bf16.mxu0 0
      %892 = vmatpush1.bf16.msra.mxu0 0
      %893 = vmatprep.subr.bf16.mxu0 0
      %894 = vmatpush1.bf16.msra.mxu0 0
      %895 = vmatprep.subr.bf16.mxu0 0
      %896 = vmatpush1.bf16.msra.mxu0 0
      %897 = vmatprep.subr.bf16.mxu0 0
      %898 = vmatpush1.bf16.msra.mxu0 0
      %899 = vmatprep.subr.bf16.mxu0 0
      %900 = vmatpush1.bf16.msra.mxu0 0
      %901 = vmatprep.subr.bf16.mxu0 0
      %902 = vmatpush1.bf16.msra.mxu0 0
      %903 = vmatprep.subr.bf16.mxu0 0
      %904 = vmatpush1.bf16.msra.mxu0 0
      %905 = vmatprep.mubr.bf16.mxu0 0
      %906 = vmatmul.mubr.bf16.gmra.mrb[0].mxu0 %v608
      %v907 = vpop.f32.mrb[0].mxu0
      %v908 = vadd.f32 0.0, %v907
      %v909 = vpop.f32.mrb[0].mxu0
      %v910 = vpop.f32.mrb[0].mxu0
      %v911 = vadd.f32 0.0, %v910
      %v912 = vpop.f32.mrb[0].mxu0
      %913 = vmatprep.mubr.bf16.mxu0 0
      %914 = vmatmul.mubr.bf16.gmra.mrb[0].mxu0 %v611
      %v915 = vpop.f32.mrb[0].mxu0
      %v916 = vadd.f32 0.0, %v915
      %v917 = vpop.f32.mrb[0].mxu0
      %v918 = vpop.f32.mrb[0].mxu0
      %v919 = vadd.f32 0.0, %v918
      %v920 = vpop.f32.mrb[0].mxu0
      %921 = vdwg.mxu0
      %v926 = vunpack.c.l.b16 %v849
      %v927 = vunpack.c.l.b16 %v850
      %v928 = vunpack.c.l.b16 %v851
      %v929 = vunpack.c.l.b16 %v852
      %v930 = vpack.c.b16 %v927, %v926
      %v931 = vpack.c.b16 %v929, %v928
      %934 = vmatprep.subr.bf16.mxu0 0
      %935 = vmatpush1.bf16.msra.mxu0 %v930
      %936 = vmatprep.subr.bf16.mxu0 0
      %937 = vmatpush1.bf16.msra.mxu0 %v931
      %938 = vmatprep.subr.bf16.mxu0 0
      %939 = vmatpush1.bf16.msra.mxu0 0
      %940 = vmatprep.subr.bf16.mxu0 0
      %941 = vmatpush1.bf16.msra.mxu0 0
      %942 = vmatprep.subr.bf16.mxu0 0
      %943 = vmatpush1.bf16.msra.mxu0 0
      %944 = vmatprep.subr.bf16.mxu0 0
      %945 = vmatpush1.bf16.msra.mxu0 0
      %946 = vmatprep.subr.bf16.mxu0 0
      %947 = vmatpush1.bf16.msra.mxu0 0
      %948 = vmatprep.subr.bf16.mxu0 0
      %949 = vmatpush1.bf16.msra.mxu0 0
      %950 = vmatprep.subr.bf16.mxu0 0
      %951 = vmatpush1.bf16.msra.mxu0 0
      %952 = vmatprep.subr.bf16.mxu0 0
      %953 = vmatpush1.bf16.msra.mxu0 0
      %954 = vmatprep.subr.bf16.mxu0 0
      %955 = vmatpush1.bf16.msra.mxu0 0
      %956 = vmatprep.subr.bf16.mxu0 0
      %957 = vmatpush1.bf16.msra.mxu0 0
      %958 = vmatprep.subr.bf16.mxu0 0
      %959 = vmatpush1.bf16.msra.mxu0 0
      %960 = vmatprep.subr.bf16.mxu0 0
      %961 = vmatpush1.bf16.msra.mxu0 0
      %962 = vmatprep.subr.bf16.mxu0 0
      %963 = vmatpush1.bf16.msra.mxu0 0
      %964 = vmatprep.subr.bf16.mxu0 0
      %965 = vmatpush1.bf16.msra.mxu0 0
      %966 = vmatprep.mubr.bf16.mxu0 0
      %967 = vmatmul.mubr.bf16.gmra.mrb[0].mxu0 %v608
      %v968 = vpop.f32.mrb[0].mxu0
      %v969 = vadd.f32 0.0, %v968
      %v970 = vpop.f32.mrb[0].mxu0
      %v971 = vpop.f32.mrb[0].mxu0
      %v972 = vadd.f32 0.0, %v971
      %v973 = vpop.f32.mrb[0].mxu0
      %974 = vmatprep.mubr.bf16.mxu0 0
      %975 = vmatmul.mubr.bf16.gmra.mrb[0].mxu0 %v611
      %v976 = vpop.f32.mrb[0].mxu0
      %v977 = vadd.f32 0.0, %v976
      %v978 = vpop.f32.mrb[0].mxu0
      %v979 = vpop.f32.mrb[0].mxu0
      %v980 = vadd.f32 0.0, %v979
      %v981 = vpop.f32.mrb[0].mxu0
      %982 = vdwg.mxu0
      %v987 = vunpack.c.l.b16 %v853
      %v988 = vunpack.c.l.b16 %v854
      %v989 = vunpack.c.l.b16 %v855
      %v990 = vunpack.c.l.b16 %v856
      %v991 = vpack.c.b16 %v988, %v987
      %v992 = vpack.c.b16 %v990, %v989
      %995 = vmatprep.subr.bf16.mxu0 0
      %996 = vmatpush1.bf16.msra.mxu0 %v991
      %997 = vmatprep.subr.bf16.mxu0 0
      %998 = vmatpush1.bf16.msra.mxu0 %v992
      %999 = vmatprep.subr.bf16.mxu0 0
      %1000 = vmatpush1.bf16.msra.mxu0 0
      %1001 = vmatprep.subr.bf16.mxu0 0
      %1002 = vmatpush1.bf16.msra.mxu0 0
      %1003 = vmatprep.subr.bf16.mxu0 0
      %1004 = vmatpush1.bf16.msra.mxu0 0
      %1005 = vmatprep.subr.bf16.mxu0 0
      %1006 = vmatpush1.bf16.msra.mxu0 0
      %1007 = vmatprep.subr.bf16.mxu0 0
      %1008 = vmatpush1.bf16.msra.mxu0 0
      %1009 = vmatprep.subr.bf16.mxu0 0
      %1010 = vmatpush1.bf16.msra.mxu0 0
      %1011 = vmatprep.subr.bf16.mxu0 0
      %1012 = vmatpush1.bf16.msra.mxu0 0
      %1013 = vmatprep.subr.bf16.mxu0 0
      %1014 = vmatpush1.bf16.msra.mxu0 0
      %1015 = vmatprep.subr.bf16.mxu0 0
      %1016 = vmatpush1.bf16.msra.mxu0 0
      %1017 = vmatprep.subr.bf16.mxu0 0
      %1018 = vmatpush1.bf16.msra.mxu0 0
      %1019 = vmatprep.subr.bf16.mxu0 0
      %1020 = vmatpush1.bf16.msra.mxu0 0
      %1021 = vmatprep.subr.bf16.mxu0 0
      %1022 = vmatpush1.bf16.msra.mxu0 0
      %1023 = vmatprep.subr.bf16.mxu0 0
      %1024 = vmatpush1.bf16.msra.mxu0 0
      %1025 = vmatprep.subr.bf16.mxu0 0
      %1026 = vmatpush1.bf16.msra.mxu0 0
      %1027 = vmatprep.mubr.bf16.mxu0 0
      %1028 = vmatmul.mubr.bf16.gmra.mrb[0].mxu0 %v608
      %v1029 = vpop.f32.mrb[0].mxu0
      %v1030 = vadd.f32 0.0, %v1029
      %v1031 = vpop.f32.mrb[0].mxu0
      %v1032 = vpop.f32.mrb[0].mxu0
      %v1033 = vadd.f32 0.0, %v1032
      %v1034 = vpop.f32.mrb[0].mxu0
      %1035 = vmatprep.mubr.bf16.mxu0 0
      %1036 = vmatmul.mubr.bf16.gmra.mrb[0].mxu0 %v611
      %v1037 = vpop.f32.mrb[0].mxu0
      %v1038 = vadd.f32 0.0, %v1037
      %v1039 = vpop.f32.mrb[0].mxu0
      %v1040 = vpop.f32.mrb[0].mxu0
      %v1041 = vadd.f32 0.0, %v1040
      %v1042 = vpop.f32.mrb[0].mxu0
      %1043 = vdwg.mxu0
      %v1048 = vunpack.c.l.b16 %v857
      %v1049 = vunpack.c.l.b16 %v858
      %v1050 = vunpack.c.l.b16 %v859
      %v1051 = vunpack.c.l.b16 %v860
      %v1052 = vpack.c.b16 %v1049, %v1048
      %v1053 = vpack.c.b16 %v1051, %v1050
      %1056 = vmatprep.subr.bf16.mxu0 0
      %1057 = vmatpush1.bf16.msra.mxu0 %v1052
      %1058 = vmatprep.subr.bf16.mxu0 0
      %1059 = vmatpush1.bf16.msra.mxu0 %v1053
      %1060 = vmatprep.subr.bf16.mxu0 0
      %1061 = vmatpush1.bf16.msra.mxu0 0
      %1062 = vmatprep.subr.bf16.mxu0 0
      %1063 = vmatpush1.bf16.msra.mxu0 0
      %1064 = vmatprep.subr.bf16.mxu0 0
      %1065 = vmatpush1.bf16.msra.mxu0 0
      %1066 = vmatprep.subr.bf16.mxu0 0
      %1067 = vmatpush1.bf16.msra.mxu0 0
      %1068 = vmatprep.subr.bf16.mxu0 0
      %1069 = vmatpush1.bf16.msra.mxu0 0
      %1070 = vmatprep.subr.bf16.mxu0 0
      %1071 = vmatpush1.bf16.msra.mxu0 0
      %1072 = vmatprep.subr.bf16.mxu0 0
      %1073 = vmatpush1.bf16.msra.mxu0 0
      %1074 = vmatprep.subr.bf16.mxu0 0
      %1075 = vmatpush1.bf16.msra.mxu0 0
      %1076 = vmatprep.subr.bf16.mxu0 0
      %1077 = vmatpush1.bf16.msra.mxu0 0
      %1078 = vmatprep.subr.bf16.mxu0 0
      %1079 = vmatpush1.bf16.msra.mxu0 0
      %1080 = vmatprep.subr.bf16.mxu0 0
      %1081 = vmatpush1.bf16.msra.mxu0 0
      %1082 = vmatprep.subr.bf16.mxu0 0
      %1083 = vmatpush1.bf16.msra.mxu0 0
      %1084 = vmatprep.subr.bf16.mxu0 0
      %1085 = vmatpush1.bf16.msra.mxu0 0
      %1086 = vmatprep.subr.bf16.mxu0 0
      %1087 = vmatpush1.bf16.msra.mxu0 0
      %1088 = vmatprep.mubr.bf16.mxu0 0
      %1089 = vmatmul.mubr.bf16.gmra.mrb[0].mxu0 %v608
      %v1090 = vpop.f32.mrb[0].mxu0
      %v1091 = vadd.f32 0.0, %v1090
      %v1092 = vpop.f32.mrb[0].mxu0
      %v1093 = vpop.f32.mrb[0].mxu0
      %v1094 = vadd.f32 0.0, %v1093
      %v1095 = vpop.f32.mrb[0].mxu0
      %1096 = vmatprep.mubr.bf16.mxu0 0
      %1097 = vmatmul.mubr.bf16.gmra.mrb[0].mxu0 %v611
      %v1098 = vpop.f32.mrb[0].mxu0
      %v1099 = vadd.f32 0.0, %v1098
      %v1100 = vpop.f32.mrb[0].mxu0
      %v1101 = vpop.f32.mrb[0].mxu0
      %v1102 = vadd.f32 0.0, %v1101
      %v1103 = vpop.f32.mrb[0].mxu0
      %1104 = vdwg.mxu0
      %v1105 = vld [vmem:[%s4] sm:$0xf]
      %v1106 = vld [vmem:[%s4 + $0x4] sm:$0xf]
      %v1107 = vld [vmem:[%s4 + $0x8] sm:$0xf]
      %v1108 = vld [vmem:[%s4 + $0xc] sm:$0xf]
      %v1109 = vld [vmem:[%s4 + $0x10] sm:$0xf]
      %v1110 = vld [vmem:[%s4 + $0x14] sm:$0xf]
      %v1111 = vld [vmem:[%s4 + $0x18] sm:$0xf]
      %v1112 = vld [vmem:[%s4 + $0x1c] sm:$0xf]
      %v1113 = vld [vmem:[%s4 + $0x20] sm:$0xf]
      %v1114 = vld [vmem:[%s4 + $0x24] sm:$0xf]
      %v1115 = vld [vmem:[%s4 + $0x28] sm:$0xf]
      %v1116 = vld [vmem:[%s4 + $0x2c] sm:$0xf]
      %v1117 = vld [vmem:[%s4 + $0x30] sm:$0xf]
      %v1118 = vld [vmem:[%s4 + $0x34] sm:$0xf]
      %v1119 = vld [vmem:[%s4 + $0x38] sm:$0xf]
      %v1120 = vld [vmem:[%s4 + $0x3c] sm:$0xf]
      %v1125 = vunpack.c.l.b16 %v1105
      %v1126 = vunpack.c.l.b16 %v1106
      %v1127 = vunpack.c.l.b16 %v1107
      %v1128 = vunpack.c.l.b16 %v1108
      %v1129 = vpack.c.b16 %v1126, %v1125
      %v1130 = vpack.c.b16 %v1128, %v1127
      %1133 = vmatprep.subr.bf16.mxu0 0
      %1134 = vmatpush1.bf16.msra.mxu0 %v1129
      %1135 = vmatprep.subr.bf16.mxu0 0
      %1136 = vmatpush1.bf16.msra.mxu0 %v1130
      %1137 = vmatprep.subr.bf16.mxu0 0
      %1138 = vmatpush1.bf16.msra.mxu0 0
      %1139 = vmatprep.subr.bf16.mxu0 0
      %1140 = vmatpush1.bf16.msra.mxu0 0
      %1141 = vmatprep.subr.bf16.mxu0 0
      %1142 = vmatpush1.bf16.msra.mxu0 0
      %1143 = vmatprep.subr.bf16.mxu0 0
      %1144 = vmatpush1.bf16.msra.mxu0 0
      %1145 = vmatprep.subr.bf16.mxu0 0
      %1146 = vmatpush1.bf16.msra.mxu0 0
      %1147 = vmatprep.subr.bf16.mxu0 0
      %1148 = vmatpush1.bf16.msra.mxu0 0
      %1149 = vmatprep.subr.bf16.mxu0 0
      %1150 = vmatpush1.bf16.msra.mxu0 0
      %1151 = vmatprep.subr.bf16.mxu0 0
      %1152 = vmatpush1.bf16.msra.mxu0 0
      %1153 = vmatprep.subr.bf16.mxu0 0
      %1154 = vmatpush1.bf16.msra.mxu0 0
      %1155 = vmatprep.subr.bf16.mxu0 0
      %1156 = vmatpush1.bf16.msra.mxu0 0
      %1157 = vmatprep.subr.bf16.mxu0 0
      %1158 = vmatpush1.bf16.msra.mxu0 0
      %1159 = vmatprep.subr.bf16.mxu0 0
      %1160 = vmatpush1.bf16.msra.mxu0 0
      %1161 = vmatprep.subr.bf16.mxu0 0
      %1162 = vmatpush1.bf16.msra.mxu0 0
      %1163 = vmatprep.subr.bf16.mxu0 0
      %1164 = vmatpush1.bf16.msra.mxu0 0
      %1165 = vmatprep.mubr.bf16.mxu0 0
      %1166 = vmatmul.mubr.bf16.gmra.mrb[0].mxu0 %v608
      %v1167 = vpop.f32.mrb[0].mxu0
      %v1168 = vadd.f32 0.0, %v1167
      %v1169 = vpop.f32.mrb[0].mxu0
      %v1170 = vpop.f32.mrb[0].mxu0
      %v1171 = vadd.f32 0.0, %v1170
      %v1172 = vpop.f32.mrb[0].mxu0
      %1173 = vmatprep.mubr.bf16.mxu0 0
      %1174 = vmatmul.mubr.bf16.gmra.mrb[0].mxu0 %v611
      %v1175 = vpop.f32.mrb[0].mxu0
      %v1176 = vadd.f32 0.0, %v1175
      %v1177 = vpop.f32.mrb[0].mxu0
      %v1178 = vpop.f32.mrb[0].mxu0
      %v1179 = vadd.f32 0.0, %v1178
      %v1180 = vpop.f32.mrb[0].mxu0
      %1181 = vdwg.mxu0
      %v1186 = vunpack.c.l.b16 %v1109
      %v1187 = vunpack.c.l.b16 %v1110
      %v1188 = vunpack.c.l.b16 %v1111
      %v1189 = vunpack.c.l.b16 %v1112
      %v1190 = vpack.c.b16 %v1187, %v1186
      %v1191 = vpack.c.b16 %v1189, %v1188
      %1194 = vmatprep.subr.bf16.mxu0 0
      %1195 = vmatpush1.bf16.msra.mxu0 %v1190
      %1196 = vmatprep.subr.bf16.mxu0 0
      %1197 = vmatpush1.bf16.msra.mxu0 %v1191
      %1198 = vmatprep.subr.bf16.mxu0 0
      %1199 = vmatpush1.bf16.msra.mxu0 0
      %1200 = vmatprep.subr.bf16.mxu0 0
      %1201 = vmatpush1.bf16.msra.mxu0 0
      %1202 = vmatprep.subr.bf16.mxu0 0
      %1203 = vmatpush1.bf16.msra.mxu0 0
      %1204 = vmatprep.subr.bf16.mxu0 0
      %1205 = vmatpush1.bf16.msra.mxu0 0
      %1206 = vmatprep.subr.bf16.mxu0 0
      %1207 = vmatpush1.bf16.msra.mxu0 0
      %1208 = vmatprep.subr.bf16.mxu0 0
      %1209 = vmatpush1.bf16.msra.mxu0 0
      %1210 = vmatprep.subr.bf16.mxu0 0
      %1211 = vmatpush1.bf16.msra.mxu0 0
      %1212 = vmatprep.subr.bf16.mxu0 0
      %1213 = vmatpush1.bf16.msra.mxu0 0
      %1214 = vmatprep.subr.bf16.mxu0 0
      %1215 = vmatpush1.bf16.msra.mxu0 0
      %1216 = vmatprep.subr.bf16.mxu0 0
      %1217 = vmatpush1.bf16.msra.mxu0 0
      %1218 = vmatprep.subr.bf16.mxu0 0
      %1219 = vmatpush1.bf16.msra.mxu0 0
      %1220 = vmatprep.subr.bf16.mxu0 0
      %1221 = vmatpush1.bf16.msra.mxu0 0
      %1222 = vmatprep.subr.bf16.mxu0 0
      %1223 = vmatpush1.bf16.msra.mxu0 0
      %1224 = vmatprep.subr.bf16.mxu0 0
      %1225 = vmatpush1.bf16.msra.mxu0 0
      %1226 = vmatprep.mubr.bf16.mxu0 0
      %1227 = vmatmul.mubr.bf16.gmra.mrb[0].mxu0 %v608
      %v1228 = vpop.f32.mrb[0].mxu0
      %v1229 = vadd.f32 0.0, %v1228
      %v1230 = vpop.f32.mrb[0].mxu0
      %v1231 = vpop.f32.mrb[0].mxu0
      %v1232 = vadd.f32 0.0, %v1231
      %v1233 = vpop.f32.mrb[0].mxu0
      %1234 = vmatprep.mubr.bf16.mxu0 0
      %1235 = vmatmul.mubr.bf16.gmra.mrb[0].mxu0 %v611
      %v1236 = vpop.f32.mrb[0].mxu0
      %v1237 = vadd.f32 0.0, %v1236
      %v1238 = vpop.f32.mrb[0].mxu0
      %v1239 = vpop.f32.mrb[0].mxu0
      %v1240 = vadd.f32 0.0, %v1239
      %v1241 = vpop.f32.mrb[0].mxu0
      %1242 = vdwg.mxu0
      %v1247 = vunpack.c.l.b16 %v1113
      %v1248 = vunpack.c.l.b16 %v1114
      %v1249 = vunpack.c.l.b16 %v1115
      %v1250 = vunpack.c.l.b16 %v1116
      %v1251 = vpack.c.b16 %v1248, %v1247
      %v1252 = vpack.c.b16 %v1250, %v1249
      %1255 = vmatprep.subr.bf16.mxu0 0
      %1256 = vmatpush1.bf16.msra.mxu0 %v1251
      %1257 = vmatprep.subr.bf16.mxu0 0
      %1258 = vmatpush1.bf16.msra.mxu0 %v1252
      %1259 = vmatprep.subr.bf16.mxu0 0
      %1260 = vmatpush1.bf16.msra.mxu0 0
      %1261 = vmatprep.subr.bf16.mxu0 0
      %1262 = vmatpush1.bf16.msra.mxu0 0
      %1263 = vmatprep.subr.bf16.mxu0 0
      %1264 = vmatpush1.bf16.msra.mxu0 0
      %1265 = vmatprep.subr.bf16.mxu0 0
      %1266 = vmatpush1.bf16.msra.mxu0 0
      %1267 = vmatprep.subr.bf16.mxu0 0
      %1268 = vmatpush1.bf16.msra.mxu0 0
      %1269 = vmatprep.subr.bf16.mxu0 0
      %1270 = vmatpush1.bf16.msra.mxu0 0
      %1271 = vmatprep.subr.bf16.mxu0 0
      %1272 = vmatpush1.bf16.msra.mxu0 0
      %1273 = vmatprep.subr.bf16.mxu0 0
      %1274 = vmatpush1.bf16.msra.mxu0 0
      %1275 = vmatprep.subr.bf16.mxu0 0
      %1276 = vmatpush1.bf16.msra.mxu0 0
      %1277 = vmatprep.subr.bf16.mxu0 0
      %1278 = vmatpush1.bf16.msra.mxu0 0
      %1279 = vmatprep.subr.bf16.mxu0 0
      %1280 = vmatpush1.bf16.msra.mxu0 0
      %1281 = vmatprep.subr.bf16.mxu0 0
      %1282 = vmatpush1.bf16.msra.mxu0 0
      %1283 = vmatprep.subr.bf16.mxu0 0
      %1284 = vmatpush1.bf16.msra.mxu0 0
      %1285 = vmatprep.subr.bf16.mxu0 0
      %1286 = vmatpush1.bf16.msra.mxu0 0
      %1287 = vmatprep.mubr.bf16.mxu0 0
      %1288 = vmatmul.mubr.bf16.gmra.mrb[0].mxu0 %v608
      %v1289 = vpop.f32.mrb[0].mxu0
      %v1290 = vadd.f32 0.0, %v1289
      %v1291 = vpop.f32.mrb[0].mxu0
      %v1292 = vpop.f32.mrb[0].mxu0
      %v1293 = vadd.f32 0.0, %v1292
      %v1294 = vpop.f32.mrb[0].mxu0
      %1295 = vmatprep.mubr.bf16.mxu0 0
      %1296 = vmatmul.mubr.bf16.gmra.mrb[0].mxu0 %v611
      %v1297 = vpop.f32.mrb[0].mxu0
      %v1298 = vadd.f32 0.0, %v1297
      %v1299 = vpop.f32.mrb[0].mxu0
      %v1300 = vpop.f32.mrb[0].mxu0
      %v1301 = vadd.f32 0.0, %v1300
      %v1302 = vpop.f32.mrb[0].mxu0
      %1303 = vdwg.mxu0
      %v1308 = vunpack.c.l.b16 %v1117
      %v1309 = vunpack.c.l.b16 %v1118
      %v1310 = vunpack.c.l.b16 %v1119
      %v1311 = vunpack.c.l.b16 %v1120
      %v1312 = vpack.c.b16 %v1309, %v1308
      %v1313 = vpack.c.b16 %v1311, %v1310
      %1316 = vmatprep.subr.bf16.mxu0 0
      %1317 = vmatpush1.bf16.msra.mxu0 %v1312
      %1318 = vmatprep.subr.bf16.mxu0 0
      %1319 = vmatpush1.bf16.msra.mxu0 %v1313
      %1320 = vmatprep.subr.bf16.mxu0 0
      %1321 = vmatpush1.bf16.msra.mxu0 0
      %1322 = vmatprep.subr.bf16.mxu0 0
      %1323 = vmatpush1.bf16.msra.mxu0 0
      %1324 = vmatprep.subr.bf16.mxu0 0
      %1325 = vmatpush1.bf16.msra.mxu0 0
      %1326 = vmatprep.subr.bf16.mxu0 0
      %1327 = vmatpush1.bf16.msra.mxu0 0
      %1328 = vmatprep.subr.bf16.mxu0 0
      %1329 = vmatpush1.bf16.msra.mxu0 0
      %1330 = vmatprep.subr.bf16.mxu0 0
      %1331 = vmatpush1.bf16.msra.mxu0 0
      %1332 = vmatprep.subr.bf16.mxu0 0
      %1333 = vmatpush1.bf16.msra.mxu0 0
      %1334 = vmatprep.subr.bf16.mxu0 0
      %1335 = vmatpush1.bf16.msra.mxu0 0
      %1336 = vmatprep.subr.bf16.mxu0 0
      %1337 = vmatpush1.bf16.msra.mxu0 0
      %1338 = vmatprep.subr.bf16.mxu0 0
      %1339 = vmatpush1.bf16.msra.mxu0 0
      %1340 = vmatprep.subr.bf16.mxu0 0
      %1341 = vmatpush1.bf16.msra.mxu0 0
      %1342 = vmatprep.subr.bf16.mxu0 0
      %1343 = vmatpush1.bf16.msra.mxu0 0
      %1344 = vmatprep.subr.bf16.mxu0 0
      %1345 = vmatpush1.bf16.msra.mxu0 0
      %1346 = vmatprep.subr.bf16.mxu0 0
      %1347 = vmatpush1.bf16.msra.mxu0 0
      %1348 = vmatprep.mubr.bf16.mxu0 0
      %1349 = vmatmul.mubr.bf16.gmra.mrb[0].mxu0 %v608
      %v1350 = vpop.f32.mrb[0].mxu0
      %v1351 = vadd.f32 0.0, %v1350
      %v1352 = vpop.f32.mrb[0].mxu0
      %v1353 = vpop.f32.mrb[0].mxu0
      %v1354 = vadd.f32 0.0, %v1353
      %v1355 = vpop.f32.mrb[0].mxu0
      %1356 = vmatprep.mubr.bf16.mxu0 0
      %1357 = vmatmul.mubr.bf16.gmra.mrb[0].mxu0 %v611
      %v1358 = vpop.f32.mrb[0].mxu0
      %v1359 = vadd.f32 0.0, %v1358
      %v1360 = vpop.f32.mrb[0].mxu0
      %v1361 = vpop.f32.mrb[0].mxu0
      %v1362 = vadd.f32 0.0, %v1361
      %v1363 = vpop.f32.mrb[0].mxu0
      %1364 = vdwg.mxu0
      %v1365 = vmul.f32 %v648, 0.35355338
      %v1366 = vmul.f32 %v651, 0.35355338
      %v1367 = vmul.f32 %v656, 0.35355338
      %v1368 = vmul.f32 %v659, 0.35355338
      %v1369 = vmul.f32 %v709, 0.35355338
      %v1370 = vmul.f32 %v712, 0.35355338
      %v1371 = vmul.f32 %v717, 0.35355338
      %v1372 = vmul.f32 %v720, 0.35355338
      %v1373 = vmul.f32 %v770, 0.35355338
      %v1374 = vmul.f32 %v773, 0.35355338
      %v1375 = vmul.f32 %v778, 0.35355338
      %v1376 = vmul.f32 %v781, 0.35355338
      %v1377 = vmul.f32 %v831, 0.35355338
      %v1378 = vmul.f32 %v834, 0.35355338
      %v1379 = vmul.f32 %v839, 0.35355338
      %v1380 = vmul.f32 %v842, 0.35355338
      %v1381 = vpack.c.bf16 %v1366, %v1365
      %v1382 = vpack.c.bf16 %v1368, %v1367
      %v1383 = vpack.c.bf16 %v1370, %v1369
      %v1384 = vpack.c.bf16 %v1372, %v1371
      %v1385 = vpack.c.bf16 %v1374, %v1373
      %v1386 = vpack.c.bf16 %v1376, %v1375
      %v1387 = vpack.c.bf16 %v1378, %v1377
      %v1388 = vpack.c.bf16 %v1380, %v1379
      %v1389 = vpack.c.bf16 %v911, %v908
      %v1390 = vpack.c.bf16 %v919, %v916
      %v1391 = vpack.c.bf16 %v972, %v969
      %v1392 = vpack.c.bf16 %v980, %v977
      %v1393 = vpack.c.bf16 %v1033, %v1030
      %v1394 = vpack.c.bf16 %v1041, %v1038
      %v1395 = vpack.c.bf16 %v1094, %v1091
      %v1396 = vpack.c.bf16 %v1102, %v1099
      %v1397 = vpack.c.bf16 %v1171, %v1168
      %v1398 = vpack.c.bf16 %v1179, %v1176
      %v1399 = vpack.c.bf16 %v1232, %v1229
      %v1400 = vpack.c.bf16 %v1240, %v1237
      %v1401 = vpack.c.bf16 %v1293, %v1290
      %v1402 = vpack.c.bf16 %v1301, %v1298
      %v1403 = vpack.c.bf16 %v1354, %v1351
      %v1404 = vpack.c.bf16 %v1362, %v1359
      %v1405 = vld [vmem:[%s487] sm:$0xff]
      %v1406 = vld [vmem:[%s487 + $0x8] sm:$0xff]
      %v1407 = vld [vmem:[%s487 + $0x10] sm:$0xff]
      %v1408 = vld [vmem:[%s487 + $0x18] sm:$0xff]
      %vm1409 = vcmask 64512
      %v1411 = vsel %vm1409, %v1381, 0
      %v1414 = vsel %vm1409, %v1389, 0
      %1416 = vmatprep.subr.bf16.mxu0 0
      %1417 = vmatpush1.bf16.xpose.msra.mxu0 %v1414
      %1418 = vmatprep.subr.bf16.mxu0 0
      %1419 = vmatpush1.bf16.xpose.msra.mxu0 0
      %1420 = vmatprep.subr.bf16.mxu0 0
      %1421 = vmatpush1.bf16.xpose.msra.mxu0 0
      %1422 = vmatprep.subr.bf16.mxu0 0
      %1423 = vmatpush1.bf16.xpose.msra.mxu0 0
      %1424 = vmatprep.subr.bf16.mxu0 0
      %1425 = vmatpush1.bf16.xpose.msra.mxu0 0
      %1426 = vmatprep.subr.bf16.mxu0 0
      %1427 = vmatpush1.bf16.xpose.msra.mxu0 0
      %1428 = vmatprep.subr.bf16.mxu0 0
      %1429 = vmatpush1.bf16.xpose.msra.mxu0 0
      %1430 = vmatprep.subr.bf16.mxu0 0
      %1431 = vmatpush1.bf16.xpose.msra.mxu0 0
      %1432 = vmatprep.subr.bf16.mxu0 0
      %1433 = vmatpush1.bf16.xpose.msra.mxu0 0
      %1434 = vmatprep.subr.bf16.mxu0 0
      %1435 = vmatpush1.bf16.xpose.msra.mxu0 0
      %1436 = vmatprep.subr.bf16.mxu0 0
      %1437 = vmatpush1.bf16.xpose.msra.mxu0 0
      %1438 = vmatprep.subr.bf16.mxu0 0
      %1439 = vmatpush1.bf16.xpose.msra.mxu0 0
      %1440 = vmatprep.subr.bf16.mxu0 0
      %1441 = vmatpush1.bf16.xpose.msra.mxu0 0
      %1442 = vmatprep.subr.bf16.mxu0 0
      %1443 = vmatpush1.bf16.xpose.msra.mxu0 0
      %1444 = vmatprep.subr.bf16.mxu0 0
      %1445 = vmatpush1.bf16.xpose.msra.mxu0 0
      %1446 = vmatprep.subr.bf16.mxu0 0
      %1447 = vmatpush1.bf16.xpose.msra.mxu0 0
      %1448 = vmatprep.mubr.bf16.mxu0 0
      %1449 = vmatmul.mubr.bf16.gmra.mrb[0].mxu0 %v1411
      %v1450 = vpop.f32.mrb[0].mxu0
      %v1451 = vadd.f32 %v1405, %v1450
      %v1452 = vpop.f32.mrb[0].mxu0
      %v1453 = vpop.f32.mrb[0].mxu0
      %v1454 = vadd.f32 %v1406, %v1453
      %v1455 = vpop.f32.mrb[0].mxu0
      %1456 = vdwg.mxu0
      %v1458 = vsel %vm1409, %v1382, 0
      %v1461 = vsel %vm1409, %v1390, 0
      %1463 = vmatprep.subr.bf16.mxu0 0
      %1464 = vmatpush1.bf16.xpose.msra.mxu0 %v1461
      %1465 = vmatprep.subr.bf16.mxu0 0
      %1466 = vmatpush1.bf16.xpose.msra.mxu0 0
      %1467 = vmatprep.subr.bf16.mxu0 0
      %1468 = vmatpush1.bf16.xpose.msra.mxu0 0
      %1469 = vmatprep.subr.bf16.mxu0 0
      %1470 = vmatpush1.bf16.xpose.msra.mxu0 0
      %1471 = vmatprep.subr.bf16.mxu0 0
      %1472 = vmatpush1.bf16.xpose.msra.mxu0 0
      %1473 = vmatprep.subr.bf16.mxu0 0
      %1474 = vmatpush1.bf16.xpose.msra.mxu0 0
      %1475 = vmatprep.subr.bf16.mxu0 0
      %1476 = vmatpush1.bf16.xpose.msra.mxu0 0
      %1477 = vmatprep.subr.bf16.mxu0 0
      %1478 = vmatpush1.bf16.xpose.msra.mxu0 0
      %1479 = vmatprep.subr.bf16.mxu0 0
      %1480 = vmatpush1.bf16.xpose.msra.mxu0 0
      %1481 = vmatprep.subr.bf16.mxu0 0
      %1482 = vmatpush1.bf16.xpose.msra.mxu0 0
      %1483 = vmatprep.subr.bf16.mxu0 0
      %1484 = vmatpush1.bf16.xpose.msra.mxu0 0
      %1485 = vmatprep.subr.bf16.mxu0 0
      %1486 = vmatpush1.bf16.xpose.msra.mxu0 0
      %1487 = vmatprep.subr.bf16.mxu0 0
      %1488 = vmatpush1.bf16.xpose.msra.mxu0 0
      %1489 = vmatprep.subr.bf16.mxu0 0
      %1490 = vmatpush1.bf16.xpose.msra.mxu0 0
      %1491 = vmatprep.subr.bf16.mxu0 0
      %1492 = vmatpush1.bf16.xpose.msra.mxu0 0
      %1493 = vmatprep.subr.bf16.mxu0 0
      %1494 = vmatpush1.bf16.xpose.msra.mxu0 0
      %1495 = vmatprep.mubr.bf16.mxu0 0
      %1496 = vmatmul.mubr.bf16.gmra.mrb[0].mxu0 %v1458
      %v1497 = vpop.f32.mrb[0].mxu0
      %v1498 = vadd.f32 %v1407, %v1497
      %v1499 = vpop.f32.mrb[0].mxu0
      %v1500 = vpop.f32.mrb[0].mxu0
      %v1501 = vadd.f32 %v1408, %v1500
      %v1502 = vpop.f32.mrb[0].mxu0
      %1503 = vdwg.mxu0
      %v1505 = vsel %vm1409, %v1383, 0
      %v1508 = vsel %vm1409, %v1391, 0
      %1510 = vmatprep.subr.bf16.mxu0 0
      %1511 = vmatpush1.bf16.xpose.msra.mxu0 %v1508
      %1512 = vmatprep.subr.bf16.mxu0 0
      %1513 = vmatpush1.bf16.xpose.msra.mxu0 0
      %1514 = vmatprep.subr.bf16.mxu0 0
      %1515 = vmatpush1.bf16.xpose.msra.mxu0 0
      %1516 = vmatprep.subr.bf16.mxu0 0
      %1517 = vmatpush1.bf16.xpose.msra.mxu0 0
      %1518 = vmatprep.subr.bf16.mxu0 0
      %1519 = vmatpush1.bf16.xpose.msra.mxu0 0
      %1520 = vmatprep.subr.bf16.mxu0 0
      %1521 = vmatpush1.bf16.xpose.msra.mxu0 0
      %1522 = vmatprep.subr.bf16.mxu0 0
      %1523 = vmatpush1.bf16.xpose.msra.mxu0 0
      %1524 = vmatprep.subr.bf16.mxu0 0
      %1525 = vmatpush1.bf16.xpose.msra.mxu0 0
      %1526 = vmatprep.subr.bf16.mxu0 0
      %1527 = vmatpush1.bf16.xpose.msra.mxu0 0
      %1528 = vmatprep.subr.bf16.mxu0 0
      %1529 = vmatpush1.bf16.xpose.msra.mxu0 0
      %1530 = vmatprep.subr.bf16.mxu0 0
      %1531 = vmatpush1.bf16.xpose.msra.mxu0 0
      %1532 = vmatprep.subr.bf16.mxu0 0
      %1533 = vmatpush1.bf16.xpose.msra.mxu0 0
      %1534 = vmatprep.subr.bf16.mxu0 0
      %1535 = vmatpush1.bf16.xpose.msra.mxu0 0
      %1536 = vmatprep.subr.bf16.mxu0 0
      %1537 = vmatpush1.bf16.xpose.msra.mxu0 0
      %1538 = vmatprep.subr.bf16.mxu0 0
      %1539 = vmatpush1.bf16.xpose.msra.mxu0 0
      %1540 = vmatprep.subr.bf16.mxu0 0
      %1541 = vmatpush1.bf16.xpose.msra.mxu0 0
      %1542 = vmatprep.mubr.bf16.mxu0 0
      %1543 = vmatmul.mubr.bf16.gmra.mrb[0].mxu0 %v1505
      %v1544 = vpop.f32.mrb[0].mxu0
      %v1545 = vadd.f32 %v1405, %v1544
      %v1546 = vpop.f32.mrb[0].mxu0
      %v1547 = vpop.f32.mrb[0].mxu0
      %v1548 = vadd.f32 %v1406, %v1547
      %v1549 = vpop.f32.mrb[0].mxu0
      %1550 = vdwg.mxu0
      %v1552 = vsel %vm1409, %v1384, 0
      %v1555 = vsel %vm1409, %v1392, 0
      %1557 = vmatprep.subr.bf16.mxu0 0
      %1558 = vmatpush1.bf16.xpose.msra.mxu0 %v1555
      %1559 = vmatprep.subr.bf16.mxu0 0
      %1560 = vmatpush1.bf16.xpose.msra.mxu0 0
      %1561 = vmatprep.subr.bf16.mxu0 0
      %1562 = vmatpush1.bf16.xpose.msra.mxu0 0
      %1563 = vmatprep.subr.bf16.mxu0 0
      %1564 = vmatpush1.bf16.xpose.msra.mxu0 0
      %1565 = vmatprep.subr.bf16.mxu0 0
      %1566 = vmatpush1.bf16.xpose.msra.mxu0 0
      %1567 = vmatprep.subr.bf16.mxu0 0
      %1568 = vmatpush1.bf16.xpose.msra.mxu0 0
      %1569 = vmatprep.subr.bf16.mxu0 0
      %1570 = vmatpush1.bf16.xpose.msra.mxu0 0
      %1571 = vmatprep.subr.bf16.mxu0 0
      %1572 = vmatpush1.bf16.xpose.msra.mxu0 0
      %1573 = vmatprep.subr.bf16.mxu0 0
      %1574 = vmatpush1.bf16.xpose.msra.mxu0 0
      %1575 = vmatprep.subr.bf16.mxu0 0
      %1576 = vmatpush1.bf16.xpose.msra.mxu0 0
      %1577 = vmatprep.subr.bf16.mxu0 0
      %1578 = vmatpush1.bf16.xpose.msra.mxu0 0
      %1579 = vmatprep.subr.bf16.mxu0 0
      %1580 = vmatpush1.bf16.xpose.msra.mxu0 0
      %1581 = vmatprep.subr.bf16.mxu0 0
      %1582 = vmatpush1.bf16.xpose.msra.mxu0 0
      %1583 = vmatprep.subr.bf16.mxu0 0
      %1584 = vmatpush1.bf16.xpose.msra.mxu0 0
      %1585 = vmatprep.subr.bf16.mxu0 0
      %1586 = vmatpush1.bf16.xpose.msra.mxu0 0
      %1587 = vmatprep.subr.bf16.mxu0 0
      %1588 = vmatpush1.bf16.xpose.msra.mxu0 0
      %1589 = vmatprep.mubr.bf16.mxu0 0
      %1590 = vmatmul.mubr.bf16.gmra.mrb[0].mxu0 %v1552
      %v1591 = vpop.f32.mrb[0].mxu0
      %v1592 = vadd.f32 %v1407, %v1591
      %v1593 = vpop.f32.mrb[0].mxu0
      %v1594 = vpop.f32.mrb[0].mxu0
      %v1595 = vadd.f32 %v1408, %v1594
      %v1596 = vpop.f32.mrb[0].mxu0
      %1597 = vdwg.mxu0
      %v1599 = vsel %vm1409, %v1385, 0
      %v1602 = vsel %vm1409, %v1393, 0
      %1604 = vmatprep.subr.bf16.mxu0 0
      %1605 = vmatpush1.bf16.xpose.msra.mxu0 %v1602
      %1606 = vmatprep.subr.bf16.mxu0 0
      %1607 = vmatpush1.bf16.xpose.msra.mxu0 0
      %1608 = vmatprep.subr.bf16.mxu0 0
      %1609 = vmatpush1.bf16.xpose.msra.mxu0 0
      %1610 = vmatprep.subr.bf16.mxu0 0
      %1611 = vmatpush1.bf16.xpose.msra.mxu0 0
      %1612 = vmatprep.subr.bf16.mxu0 0
      %1613 = vmatpush1.bf16.xpose.msra.mxu0 0
      %1614 = vmatprep.subr.bf16.mxu0 0
      %1615 = vmatpush1.bf16.xpose.msra.mxu0 0
      %1616 = vmatprep.subr.bf16.mxu0 0
      %1617 = vmatpush1.bf16.xpose.msra.mxu0 0
      %1618 = vmatprep.subr.bf16.mxu0 0
      %1619 = vmatpush1.bf16.xpose.msra.mxu0 0
      %1620 = vmatprep.subr.bf16.mxu0 0
      %1621 = vmatpush1.bf16.xpose.msra.mxu0 0
      %1622 = vmatprep.subr.bf16.mxu0 0
      %1623 = vmatpush1.bf16.xpose.msra.mxu0 0
      %1624 = vmatprep.subr.bf16.mxu0 0
      %1625 = vmatpush1.bf16.xpose.msra.mxu0 0
      %1626 = vmatprep.subr.bf16.mxu0 0
      %1627 = vmatpush1.bf16.xpose.msra.mxu0 0
      %1628 = vmatprep.subr.bf16.mxu0 0
      %1629 = vmatpush1.bf16.xpose.msra.mxu0 0
      %1630 = vmatprep.subr.bf16.mxu0 0
      %1631 = vmatpush1.bf16.xpose.msra.mxu0 0
      %1632 = vmatprep.subr.bf16.mxu0 0
      %1633 = vmatpush1.bf16.xpose.msra.mxu0 0
      %1634 = vmatprep.subr.bf16.mxu0 0
      %1635 = vmatpush1.bf16.xpose.msra.mxu0 0
      %1636 = vmatprep.mubr.bf16.mxu0 0
      %1637 = vmatmul.mubr.bf16.gmra.mrb[0].mxu0 %v1599
      %v1638 = vpop.f32.mrb[0].mxu0
      %v1639 = vadd.f32 %v1405, %v1638
      %v1640 = vpop.f32.mrb[0].mxu0
      %v1641 = vpop.f32.mrb[0].mxu0
      %v1642 = vadd.f32 %v1406, %v1641
      %v1643 = vpop.f32.mrb[0].mxu0
      %1644 = vdwg.mxu0
      %v1646 = vsel %vm1409, %v1386, 0
      %v1649 = vsel %vm1409, %v1394, 0
      %1651 = vmatprep.subr.bf16.mxu0 0
      %1652 = vmatpush1.bf16.xpose.msra.mxu0 %v1649
      %1653 = vmatprep.subr.bf16.mxu0 0
      %1654 = vmatpush1.bf16.xpose.msra.mxu0 0
      %1655 = vmatprep.subr.bf16.mxu0 0
      %1656 = vmatpush1.bf16.xpose.msra.mxu0 0
      %1657 = vmatprep.subr.bf16.mxu0 0
      %1658 = vmatpush1.bf16.xpose.msra.mxu0 0
      %1659 = vmatprep.subr.bf16.mxu0 0
      %1660 = vmatpush1.bf16.xpose.msra.mxu0 0
      %1661 = vmatprep.subr.bf16.mxu0 0
      %1662 = vmatpush1.bf16.xpose.msra.mxu0 0
      %1663 = vmatprep.subr.bf16.mxu0 0
      %1664 = vmatpush1.bf16.xpose.msra.mxu0 0
      %1665 = vmatprep.subr.bf16.mxu0 0
      %1666 = vmatpush1.bf16.xpose.msra.mxu0 0
      %1667 = vmatprep.subr.bf16.mxu0 0
      %1668 = vmatpush1.bf16.xpose.msra.mxu0 0
      %1669 = vmatprep.subr.bf16.mxu0 0
      %1670 = vmatpush1.bf16.xpose.msra.mxu0 0
      %1671 = vmatprep.subr.bf16.mxu0 0
      %1672 = vmatpush1.bf16.xpose.msra.mxu0 0
      %1673 = vmatprep.subr.bf16.mxu0 0
      %1674 = vmatpush1.bf16.xpose.msra.mxu0 0
      %1675 = vmatprep.subr.bf16.mxu0 0
      %1676 = vmatpush1.bf16.xpose.msra.mxu0 0
      %1677 = vmatprep.subr.bf16.mxu0 0
      %1678 = vmatpush1.bf16.xpose.msra.mxu0 0
      %1679 = vmatprep.subr.bf16.mxu0 0
      %1680 = vmatpush1.bf16.xpose.msra.mxu0 0
      %1681 = vmatprep.subr.bf16.mxu0 0
      %1682 = vmatpush1.bf16.xpose.msra.mxu0 0
      %1683 = vmatprep.mubr.bf16.mxu0 0
      %1684 = vmatmul.mubr.bf16.gmra.mrb[0].mxu0 %v1646
      %v1685 = vpop.f32.mrb[0].mxu0
      %v1686 = vadd.f32 %v1407, %v1685
      %v1687 = vpop.f32.mrb[0].mxu0
      %v1688 = vpop.f32.mrb[0].mxu0
      %v1689 = vadd.f32 %v1408, %v1688
      %v1690 = vpop.f32.mrb[0].mxu0
      %1691 = vdwg.mxu0
      %v1693 = vsel %vm1409, %v1387, 0
      %v1696 = vsel %vm1409, %v1395, 0
      %1698 = vmatprep.subr.bf16.mxu0 0
      %1699 = vmatpush1.bf16.xpose.msra.mxu0 %v1696
      %1700 = vmatprep.subr.bf16.mxu0 0
      %1701 = vmatpush1.bf16.xpose.msra.mxu0 0
      %1702 = vmatprep.subr.bf16.mxu0 0
      %1703 = vmatpush1.bf16.xpose.msra.mxu0 0
      %1704 = vmatprep.subr.bf16.mxu0 0
      %1705 = vmatpush1.bf16.xpose.msra.mxu0 0
      %1706 = vmatprep.subr.bf16.mxu0 0
      %1707 = vmatpush1.bf16.xpose.msra.mxu0 0
      %1708 = vmatprep.subr.bf16.mxu0 0
      %1709 = vmatpush1.bf16.xpose.msra.mxu0 0
      %1710 = vmatprep.subr.bf16.mxu0 0
      %1711 = vmatpush1.bf16.xpose.msra.mxu0 0
      %1712 = vmatprep.subr.bf16.mxu0 0
      %1713 = vmatpush1.bf16.xpose.msra.mxu0 0
      %1714 = vmatprep.subr.bf16.mxu0 0
      %1715 = vmatpush1.bf16.xpose.msra.mxu0 0
      %1716 = vmatprep.subr.bf16.mxu0 0
      %1717 = vmatpush1.bf16.xpose.msra.mxu0 0
      %1718 = vmatprep.subr.bf16.mxu0 0
      %1719 = vmatpush1.bf16.xpose.msra.mxu0 0
      %1720 = vmatprep.subr.bf16.mxu0 0
      %1721 = vmatpush1.bf16.xpose.msra.mxu0 0
      %1722 = vmatprep.subr.bf16.mxu0 0
      %1723 = vmatpush1.bf16.xpose.msra.mxu0 0
      %1724 = vmatprep.subr.bf16.mxu0 0
      %1725 = vmatpush1.bf16.xpose.msra.mxu0 0
      %1726 = vmatprep.subr.bf16.mxu0 0
      %1727 = vmatpush1.bf16.xpose.msra.mxu0 0
      %1728 = vmatprep.subr.bf16.mxu0 0
      %1729 = vmatpush1.bf16.xpose.msra.mxu0 0
      %1730 = vmatprep.mubr.bf16.mxu0 0
      %1731 = vmatmul.mubr.bf16.gmra.mrb[0].mxu0 %v1693
      %v1732 = vpop.f32.mrb[0].mxu0
      %v1733 = vadd.f32 %v1405, %v1732
      %v1734 = vpop.f32.mrb[0].mxu0
      %v1735 = vpop.f32.mrb[0].mxu0
      %v1736 = vadd.f32 %v1406, %v1735
      %v1737 = vpop.f32.mrb[0].mxu0
      %1738 = vdwg.mxu0
      %v1740 = vsel %vm1409, %v1388, 0
      %v1743 = vsel %vm1409, %v1396, 0
      %1745 = vmatprep.subr.bf16.mxu0 0
      %1746 = vmatpush1.bf16.xpose.msra.mxu0 %v1743
      %1747 = vmatprep.subr.bf16.mxu0 0
      %1748 = vmatpush1.bf16.xpose.msra.mxu0 0
      %1749 = vmatprep.subr.bf16.mxu0 0
      %1750 = vmatpush1.bf16.xpose.msra.mxu0 0
      %1751 = vmatprep.subr.bf16.mxu0 0
      %1752 = vmatpush1.bf16.xpose.msra.mxu0 0
      %1753 = vmatprep.subr.bf16.mxu0 0
      %1754 = vmatpush1.bf16.xpose.msra.mxu0 0
      %1755 = vmatprep.subr.bf16.mxu0 0
      %1756 = vmatpush1.bf16.xpose.msra.mxu0 0
      %1757 = vmatprep.subr.bf16.mxu0 0
      %1758 = vmatpush1.bf16.xpose.msra.mxu0 0
      %1759 = vmatprep.subr.bf16.mxu0 0
      %1760 = vmatpush1.bf16.xpose.msra.mxu0 0
      %1761 = vmatprep.subr.bf16.mxu0 0
      %1762 = vmatpush1.bf16.xpose.msra.mxu0 0
      %1763 = vmatprep.subr.bf16.mxu0 0
      %1764 = vmatpush1.bf16.xpose.msra.mxu0 0
      %1765 = vmatprep.subr.bf16.mxu0 0
      %1766 = vmatpush1.bf16.xpose.msra.mxu0 0
      %1767 = vmatprep.subr.bf16.mxu0 0
      %1768 = vmatpush1.bf16.xpose.msra.mxu0 0
      %1769 = vmatprep.subr.bf16.mxu0 0
      %1770 = vmatpush1.bf16.xpose.msra.mxu0 0
      %1771 = vmatprep.subr.bf16.mxu0 0
      %1772 = vmatpush1.bf16.xpose.msra.mxu0 0
      %1773 = vmatprep.subr.bf16.mxu0 0
      %1774 = vmatpush1.bf16.xpose.msra.mxu0 0
      %1775 = vmatprep.subr.bf16.mxu0 0
      %1776 = vmatpush1.bf16.xpose.msra.mxu0 0
      %1777 = vmatprep.mubr.bf16.mxu0 0
      %1778 = vmatmul.mubr.bf16.gmra.mrb[0].mxu0 %v1740
      %v1779 = vpop.f32.mrb[0].mxu0
      %v1780 = vadd.f32 %v1407, %v1779
      %v1781 = vpop.f32.mrb[0].mxu0
      %v1782 = vpop.f32.mrb[0].mxu0
      %v1783 = vadd.f32 %v1408, %v1782
      %v1784 = vpop.f32.mrb[0].mxu0
      %1785 = vdwg.mxu0
      %vm1786 = vcmask 130048
      %v1787 = vsel %vm1786, %v1451, -inf
      %1788 = vmax.xlane.f32.xlu0 %v1787
      %v1789 = vpop.xlane.xlu0 %1788
      %v1790 = vsel %vm1786, %v1454, -inf
      %1791 = vmax.xlane.f32.xlu0 %v1790
      %v1792 = vpop.xlane.xlu0 %1791
      %v1793 = vsel %vm1786, %v1498, -inf
      %1794 = vmax.xlane.f32.xlu0 %v1793
      %v1795 = vpop.xlane.xlu0 %1794
      %v1796 = vsel %vm1786, %v1501, -inf
      %1797 = vmax.xlane.f32.xlu0 %v1796
      %v1798 = vpop.xlane.xlu0 %1797
      %v1799 = vsel %vm1786, %v1545, -inf
      %1800 = vmax.xlane.f32.xlu0 %v1799
      %v1801 = vpop.xlane.xlu0 %1800
      %v1802 = vsel %vm1786, %v1548, -inf
      %1803 = vmax.xlane.f32.xlu0 %v1802
      %v1804 = vpop.xlane.xlu0 %1803
      %v1805 = vsel %vm1786, %v1592, -inf
      %1806 = vmax.xlane.f32.xlu0 %v1805
      %v1807 = vpop.xlane.xlu0 %1806
      %v1808 = vsel %vm1786, %v1595, -inf
      %1809 = vmax.xlane.f32.xlu0 %v1808
      %v1810 = vpop.xlane.xlu0 %1809
      %v1811 = vsel %vm1786, %v1639, -inf
      %1812 = vmax.xlane.f32.xlu0 %v1811
      %v1813 = vpop.xlane.xlu0 %1812
      %v1814 = vsel %vm1786, %v1642, -inf
      %1815 = vmax.xlane.f32.xlu0 %v1814
      %v1816 = vpop.xlane.xlu0 %1815
      %v1817 = vsel %vm1786, %v1686, -inf
      %1818 = vmax.xlane.f32.xlu0 %v1817
      %v1819 = vpop.xlane.xlu0 %1818
      %v1820 = vsel %vm1786, %v1689, -inf
      %1821 = vmax.xlane.f32.xlu0 %v1820
      %v1822 = vpop.xlane.xlu0 %1821
      %v1823 = vsel %vm1786, %v1733, -inf
      %1824 = vmax.xlane.f32.xlu0 %v1823
      %v1825 = vpop.xlane.xlu0 %1824
      %v1826 = vsel %vm1786, %v1736, -inf
      %1827 = vmax.xlane.f32.xlu0 %v1826
      %v1828 = vpop.xlane.xlu0 %1827
      %v1829 = vsel %vm1786, %v1780, -inf
      %1830 = vmax.xlane.f32.xlu0 %v1829
      %v1831 = vpop.xlane.xlu0 %1830
      %v1832 = vsel %vm1786, %v1783, -inf
      %1833 = vmax.xlane.f32.xlu0 %v1832
      %v1834 = vpop.xlane.xlu0 %1833
      %v1835 = vsub.f32 %v1451, %v1789
      %v1836 = vsub.f32 %v1454, %v1792
      %v1837 = vsub.f32 %v1498, %v1795
      %v1838 = vsub.f32 %v1501, %v1798
      %v1839 = vsub.f32 %v1545, %v1801
      %v1840 = vsub.f32 %v1548, %v1804
      %v1841 = vsub.f32 %v1592, %v1807
      %v1842 = vsub.f32 %v1595, %v1810
      %v1843 = vsub.f32 %v1639, %v1813
      %v1844 = vsub.f32 %v1642, %v1816
      %v1845 = vsub.f32 %v1686, %v1819
      %v1846 = vsub.f32 %v1689, %v1822
      %v1847 = vsub.f32 %v1733, %v1825
      %v1848 = vsub.f32 %v1736, %v1828
      %v1849 = vsub.f32 %v1780, %v1831
      %v1850 = vsub.f32 %v1783, %v1834
      %v1851 = vmul.f32 %v1835, 1.442695
      %v1852 = vpow.pop %v1851
      %v1853 = vmul.f32 %v1836, 1.442695
      %v1854 = vpow.pop %v1853
      %v1855 = vmul.f32 %v1837, 1.442695
      %v1856 = vpow.pop %v1855
      %v1857 = vmul.f32 %v1838, 1.442695
      %v1858 = vpow.pop %v1857
      %v1859 = vmul.f32 %v1839, 1.442695
      %v1860 = vpow.pop %v1859
      %v1861 = vmul.f32 %v1840, 1.442695
      %v1862 = vpow.pop %v1861
      %v1863 = vmul.f32 %v1841, 1.442695
      %v1864 = vpow.pop %v1863
      %v1865 = vmul.f32 %v1842, 1.442695
      %v1866 = vpow.pop %v1865
      %v1867 = vmul.f32 %v1843, 1.442695
      %v1868 = vpow.pop %v1867
      %v1869 = vmul.f32 %v1844, 1.442695
      %v1870 = vpow.pop %v1869
      %v1871 = vmul.f32 %v1845, 1.442695
      %v1872 = vpow.pop %v1871
      %v1873 = vmul.f32 %v1846, 1.442695
      %v1874 = vpow.pop %v1873
      %v1875 = vmul.f32 %v1847, 1.442695
      %v1876 = vpow.pop %v1875
      %v1877 = vmul.f32 %v1848, 1.442695
      %v1878 = vpow.pop %v1877
      %v1879 = vmul.f32 %v1849, 1.442695
      %v1880 = vpow.pop %v1879
      %v1881 = vmul.f32 %v1850, 1.442695
      %v1882 = vpow.pop %v1881
      %v1883 = vsel %vm1786, %v1852, 0.0
      %1884 = vadd.xlane.f32.xlu0 %v1883
      %v1885 = vpop.xlane.xlu0 %1884
      %v1886 = vsel %vm1786, %v1854, 0.0
      %1887 = vadd.xlane.f32.xlu0 %v1886
      %v1888 = vpop.xlane.xlu0 %1887
      %v1889 = vsel %vm1786, %v1856, 0.0
      %1890 = vadd.xlane.f32.xlu0 %v1889
      %v1891 = vpop.xlane.xlu0 %1890
      %v1892 = vsel %vm1786, %v1858, 0.0
      %1893 = vadd.xlane.f32.xlu0 %v1892
      %v1894 = vpop.xlane.xlu0 %1893
      %v1895 = vsel %vm1786, %v1860, 0.0
      %1896 = vadd.xlane.f32.xlu0 %v1895
      %v1897 = vpop.xlane.xlu0 %1896
      %v1898 = vsel %vm1786, %v1862, 0.0
      %1899 = vadd.xlane.f32.xlu0 %v1898
      %v1900 = vpop.xlane.xlu0 %1899
      %v1901 = vsel %vm1786, %v1864, 0.0
      %1902 = vadd.xlane.f32.xlu0 %v1901
      %v1903 = vpop.xlane.xlu0 %1902
      %v1904 = vsel %vm1786, %v1866, 0.0
      %1905 = vadd.xlane.f32.xlu0 %v1904
      %v1906 = vpop.xlane.xlu0 %1905
      %v1907 = vsel %vm1786, %v1868, 0.0
      %1908 = vadd.xlane.f32.xlu0 %v1907
      %v1909 = vpop.xlane.xlu0 %1908
      %v1910 = vsel %vm1786, %v1870, 0.0
      %1911 = vadd.xlane.f32.xlu0 %v1910
      %v1912 = vpop.xlane.xlu0 %1911
      %v1913 = vsel %vm1786, %v1872, 0.0
      %1914 = vadd.xlane.f32.xlu0 %v1913
      %v1915 = vpop.xlane.xlu0 %1914
      %v1916 = vsel %vm1786, %v1874, 0.0
      %1917 = vadd.xlane.f32.xlu0 %v1916
      %v1918 = vpop.xlane.xlu0 %1917
      %v1919 = vsel %vm1786, %v1876, 0.0
      %1920 = vadd.xlane.f32.xlu0 %v1919
      %v1921 = vpop.xlane.xlu0 %1920
      %v1922 = vsel %vm1786, %v1878, 0.0
      %1923 = vadd.xlane.f32.xlu0 %v1922
      %v1924 = vpop.xlane.xlu0 %1923
      %v1925 = vsel %vm1786, %v1880, 0.0
      %1926 = vadd.xlane.f32.xlu0 %v1925
      %v1927 = vpop.xlane.xlu0 %1926
      %v1928 = vsel %vm1786, %v1882, 0.0
      %1929 = vadd.xlane.f32.xlu0 %v1928
      %v1930 = vpop.xlane.xlu0 %1929
      %v1931 = vrcp.pop %v1885
      %v1932 = vrcp.pop %v1888
      %v1933 = vrcp.pop %v1891
      %v1934 = vrcp.pop %v1894
      %v1935 = vrcp.pop %v1897
      %v1936 = vrcp.pop %v1900
      %v1937 = vrcp.pop %v1903
      %v1938 = vrcp.pop %v1906
      %v1939 = vrcp.pop %v1909
      %v1940 = vrcp.pop %v1912
      %v1941 = vrcp.pop %v1915
      %v1942 = vrcp.pop %v1918
      %v1943 = vrcp.pop %v1921
      %v1944 = vrcp.pop %v1924
      %v1945 = vrcp.pop %v1927
      %v1946 = vrcp.pop %v1930
      %v1947 = vmul.f32 %v1852, %v1931
      %v1948 = vmul.f32 %v1854, %v1932
      %v1949 = vmul.f32 %v1856, %v1933
      %v1950 = vmul.f32 %v1858, %v1934
      %v1951 = vmul.f32 %v1860, %v1935
      %v1952 = vmul.f32 %v1862, %v1936
      %v1953 = vmul.f32 %v1864, %v1937
      %v1954 = vmul.f32 %v1866, %v1938
      %v1955 = vmul.f32 %v1868, %v1939
      %v1956 = vmul.f32 %v1870, %v1940
      %v1957 = vmul.f32 %v1872, %v1941
      %v1958 = vmul.f32 %v1874, %v1942
      %v1959 = vmul.f32 %v1876, %v1943
      %v1960 = vmul.f32 %v1878, %v1944
      %v1961 = vmul.f32 %v1880, %v1945
      %v1962 = vmul.f32 %v1882, %v1946
      %v1963 = vpack.c.bf16 %v1948, %v1947
      %v1964 = vpack.c.bf16 %v1950, %v1949
      %v1965 = vpack.c.bf16 %v1952, %v1951
      %v1966 = vpack.c.bf16 %v1954, %v1953
      %v1967 = vpack.c.bf16 %v1956, %v1955
      %v1968 = vpack.c.bf16 %v1958, %v1957
      %v1969 = vpack.c.bf16 %v1960, %v1959
      %v1970 = vpack.c.bf16 %v1962, %v1961
      %v1972 = vsel %vm1786, %v1963, 0
      %1974 = vmatprep.subr.bf16.mxu0 0
      %1975 = vmatpush1.bf16.msra.mxu0 %v1397
      %1976 = vmatprep.subr.bf16.mxu0 0
      %1977 = vmatpush1.bf16.msra.mxu0 0
      %1978 = vmatprep.subr.bf16.mxu0 0
      %1979 = vmatpush1.bf16.msra.mxu0 0
      %1980 = vmatprep.subr.bf16.mxu0 0
      %1981 = vmatpush1.bf16.msra.mxu0 0
      %1982 = vmatprep.subr.bf16.mxu0 0
      %1983 = vmatpush1.bf16.msra.mxu0 0
      %1984 = vmatprep.subr.bf16.mxu0 0
      %1985 = vmatpush1.bf16.msra.mxu0 0
      %1986 = vmatprep.subr.bf16.mxu0 0
      %1987 = vmatpush1.bf16.msra.mxu0 0
      %1988 = vmatprep.subr.bf16.mxu0 0
      %1989 = vmatpush1.bf16.msra.mxu0 0
      %1990 = vmatprep.subr.bf16.mxu0 0
      %1991 = vmatpush1.bf16.msra.mxu0 0
      %1992 = vmatprep.subr.bf16.mxu0 0
      %1993 = vmatpush1.bf16.msra.mxu0 0
      %1994 = vmatprep.subr.bf16.mxu0 0
      %1995 = vmatpush1.bf16.msra.mxu0 0
      %1996 = vmatprep.subr.bf16.mxu0 0
      %1997 = vmatpush1.bf16.msra.mxu0 0
      %1998 = vmatprep.subr.bf16.mxu0 0
      %1999 = vmatpush1.bf16.msra.mxu0 0
      %2000 = vmatprep.subr.bf16.mxu0 0
      %2001 = vmatpush1.bf16.msra.mxu0 0
      %2002 = vmatprep.subr.bf16.mxu0 0
      %2003 = vmatpush1.bf16.msra.mxu0 0
      %2004 = vmatprep.subr.bf16.mxu0 0
      %2005 = vmatpush1.bf16.msra.mxu0 0
      %2006 = vmatprep.mubr.bf16.mxu0 0
      %2007 = vmatmul.mubr.bf16.gmra.mrb[0].mxu0 %v1972
      %v2008 = vpop.f32.mrb[0].mxu0
      %v2009 = vadd.f32 0.0, %v2008
      %v2010 = vpop.f32.mrb[0].mxu0
      %v2011 = vpop.f32.mrb[0].mxu0
      %v2012 = vadd.f32 0.0, %v2011
      %v2013 = vpop.f32.mrb[0].mxu0
      %2014 = vdwg.mxu0
      %v2016 = vsel %vm1786, %v1964, 0
      %2018 = vmatprep.subr.bf16.mxu0 0
      %2019 = vmatpush1.bf16.msra.mxu0 %v1398
      %2020 = vmatprep.subr.bf16.mxu0 0
      %2021 = vmatpush1.bf16.msra.mxu0 0
      %2022 = vmatprep.subr.bf16.mxu0 0
      %2023 = vmatpush1.bf16.msra.mxu0 0
      %2024 = vmatprep.subr.bf16.mxu0 0
      %2025 = vmatpush1.bf16.msra.mxu0 0
      %2026 = vmatprep.subr.bf16.mxu0 0
      %2027 = vmatpush1.bf16.msra.mxu0 0
      %2028 = vmatprep.subr.bf16.mxu0 0
      %2029 = vmatpush1.bf16.msra.mxu0 0
      %2030 = vmatprep.subr.bf16.mxu0 0
      %2031 = vmatpush1.bf16.msra.mxu0 0
      %2032 = vmatprep.subr.bf16.mxu0 0
      %2033 = vmatpush1.bf16.msra.mxu0 0
      %2034 = vmatprep.subr.bf16.mxu0 0
      %2035 = vmatpush1.bf16.msra.mxu0 0
      %2036 = vmatprep.subr.bf16.mxu0 0
      %2037 = vmatpush1.bf16.msra.mxu0 0
      %2038 = vmatprep.subr.bf16.mxu0 0
      %2039 = vmatpush1.bf16.msra.mxu0 0
      %2040 = vmatprep.subr.bf16.mxu0 0
      %2041 = vmatpush1.bf16.msra.mxu0 0
      %2042 = vmatprep.subr.bf16.mxu0 0
      %2043 = vmatpush1.bf16.msra.mxu0 0
      %2044 = vmatprep.subr.bf16.mxu0 0
      %2045 = vmatpush1.bf16.msra.mxu0 0
      %2046 = vmatprep.subr.bf16.mxu0 0
      %2047 = vmatpush1.bf16.msra.mxu0 0
      %2048 = vmatprep.subr.bf16.mxu0 0
      %2049 = vmatpush1.bf16.msra.mxu0 0
      %2050 = vmatprep.mubr.bf16.mxu0 0
      %2051 = vmatmul.mubr.bf16.gmra.mrb[0].mxu0 %v2016
      %v2052 = vpop.f32.mrb[0].mxu0
      %v2053 = vadd.f32 0.0, %v2052
      %v2054 = vpop.f32.mrb[0].mxu0
      %v2055 = vpop.f32.mrb[0].mxu0
      %v2056 = vadd.f32 0.0, %v2055
      %v2057 = vpop.f32.mrb[0].mxu0
      %2058 = vdwg.mxu0
      %v2060 = vsel %vm1786, %v1965, 0
      %2062 = vmatprep.subr.bf16.mxu0 0
      %2063 = vmatpush1.bf16.msra.mxu0 %v1399
      %2064 = vmatprep.subr.bf16.mxu0 0
      %2065 = vmatpush1.bf16.msra.mxu0 0
      %2066 = vmatprep.subr.bf16.mxu0 0
      %2067 = vmatpush1.bf16.msra.mxu0 0
      %2068 = vmatprep.subr.bf16.mxu0 0
      %2069 = vmatpush1.bf16.msra.mxu0 0
      %2070 = vmatprep.subr.bf16.mxu0 0
      %2071 = vmatpush1.bf16.msra.mxu0 0
      %2072 = vmatprep.subr.bf16.mxu0 0
      %2073 = vmatpush1.bf16.msra.mxu0 0
      %2074 = vmatprep.subr.bf16.mxu0 0
      %2075 = vmatpush1.bf16.msra.mxu0 0
      %2076 = vmatprep.subr.bf16.mxu0 0
      %2077 = vmatpush1.bf16.msra.mxu0 0
      %2078 = vmatprep.subr.bf16.mxu0 0
      %2079 = vmatpush1.bf16.msra.mxu0 0
      %2080 = vmatprep.subr.bf16.mxu0 0
      %2081 = vmatpush1.bf16.msra.mxu0 0
      %2082 = vmatprep.subr.bf16.mxu0 0
      %2083 = vmatpush1.bf16.msra.mxu0 0
      %2084 = vmatprep.subr.bf16.mxu0 0
      %2085 = vmatpush1.bf16.msra.mxu0 0
      %2086 = vmatprep.subr.bf16.mxu0 0
      %2087 = vmatpush1.bf16.msra.mxu0 0
      %2088 = vmatprep.subr.bf16.mxu0 0
      %2089 = vmatpush1.bf16.msra.mxu0 0
      %2090 = vmatprep.subr.bf16.mxu0 0
      %2091 = vmatpush1.bf16.msra.mxu0 0
      %2092 = vmatprep.subr.bf16.mxu0 0
      %2093 = vmatpush1.bf16.msra.mxu0 0
      %2094 = vmatprep.mubr.bf16.mxu0 0
      %2095 = vmatmul.mubr.bf16.gmra.mrb[0].mxu0 %v2060
      %v2096 = vpop.f32.mrb[0].mxu0
      %v2097 = vadd.f32 0.0, %v2096
      %v2098 = vpop.f32.mrb[0].mxu0
      %v2099 = vpop.f32.mrb[0].mxu0
      %v2100 = vadd.f32 0.0, %v2099
      %v2101 = vpop.f32.mrb[0].mxu0
      %2102 = vdwg.mxu0
      %v2104 = vsel %vm1786, %v1966, 0
      %2106 = vmatprep.subr.bf16.mxu0 0
      %2107 = vmatpush1.bf16.msra.mxu0 %v1400
      %2108 = vmatprep.subr.bf16.mxu0 0
      %2109 = vmatpush1.bf16.msra.mxu0 0
      %2110 = vmatprep.subr.bf16.mxu0 0
      %2111 = vmatpush1.bf16.msra.mxu0 0
      %2112 = vmatprep.subr.bf16.mxu0 0
      %2113 = vmatpush1.bf16.msra.mxu0 0
      %2114 = vmatprep.subr.bf16.mxu0 0
      %2115 = vmatpush1.bf16.msra.mxu0 0
      %2116 = vmatprep.subr.bf16.mxu0 0
      %2117 = vmatpush1.bf16.msra.mxu0 0
      %2118 = vmatprep.subr.bf16.mxu0 0
      %2119 = vmatpush1.bf16.msra.mxu0 0
      %2120 = vmatprep.subr.bf16.mxu0 0
      %2121 = vmatpush1.bf16.msra.mxu0 0
      %2122 = vmatprep.subr.bf16.mxu0 0
      %2123 = vmatpush1.bf16.msra.mxu0 0
      %2124 = vmatprep.subr.bf16.mxu0 0
      %2125 = vmatpush1.bf16.msra.mxu0 0
      %2126 = vmatprep.subr.bf16.mxu0 0
      %2127 = vmatpush1.bf16.msra.mxu0 0
      %2128 = vmatprep.subr.bf16.mxu0 0
      %2129 = vmatpush1.bf16.msra.mxu0 0
      %2130 = vmatprep.subr.bf16.mxu0 0
      %2131 = vmatpush1.bf16.msra.mxu0 0
      %2132 = vmatprep.subr.bf16.mxu0 0
      %2133 = vmatpush1.bf16.msra.mxu0 0
      %2134 = vmatprep.subr.bf16.mxu0 0
      %2135 = vmatpush1.bf16.msra.mxu0 0
      %2136 = vmatprep.subr.bf16.mxu0 0
      %2137 = vmatpush1.bf16.msra.mxu0 0
      %2138 = vmatprep.mubr.bf16.mxu0 0
      %2139 = vmatmul.mubr.bf16.gmra.mrb[0].mxu0 %v2104
      %v2140 = vpop.f32.mrb[0].mxu0
      %v2141 = vadd.f32 0.0, %v2140
      %v2142 = vpop.f32.mrb[0].mxu0
      %v2143 = vpop.f32.mrb[0].mxu0
      %v2144 = vadd.f32 0.0, %v2143
      %v2145 = vpop.f32.mrb[0].mxu0
      %2146 = vdwg.mxu0
      %v2148 = vsel %vm1786, %v1967, 0
      %2150 = vmatprep.subr.bf16.mxu0 0
      %2151 = vmatpush1.bf16.msra.mxu0 %v1401
      %2152 = vmatprep.subr.bf16.mxu0 0
      %2153 = vmatpush1.bf16.msra.mxu0 0
      %2154 = vmatprep.subr.bf16.mxu0 0
      %2155 = vmatpush1.bf16.msra.mxu0 0
      %2156 = vmatprep.subr.bf16.mxu0 0
      %2157 = vmatpush1.bf16.msra.mxu0 0
      %2158 = vmatprep.subr.bf16.mxu0 0
      %2159 = vmatpush1.bf16.msra.mxu0 0
      %2160 = vmatprep.subr.bf16.mxu0 0
      %2161 = vmatpush1.bf16.msra.mxu0 0
      %2162 = vmatprep.subr.bf16.mxu0 0
      %2163 = vmatpush1.bf16.msra.mxu0 0
      %2164 = vmatprep.subr.bf16.mxu0 0
      %2165 = vmatpush1.bf16.msra.mxu0 0
      %2166 = vmatprep.subr.bf16.mxu0 0
      %2167 = vmatpush1.bf16.msra.mxu0 0
      %2168 = vmatprep.subr.bf16.mxu0 0
      %2169 = vmatpush1.bf16.msra.mxu0 0
      %2170 = vmatprep.subr.bf16.mxu0 0
      %2171 = vmatpush1.bf16.msra.mxu0 0
      %2172 = vmatprep.subr.bf16.mxu0 0
      %2173 = vmatpush1.bf16.msra.mxu0 0
      %2174 = vmatprep.subr.bf16.mxu0 0
      %2175 = vmatpush1.bf16.msra.mxu0 0
      %2176 = vmatprep.subr.bf16.mxu0 0
      %2177 = vmatpush1.bf16.msra.mxu0 0
      %2178 = vmatprep.subr.bf16.mxu0 0
      %2179 = vmatpush1.bf16.msra.mxu0 0
      %2180 = vmatprep.subr.bf16.mxu0 0
      %2181 = vmatpush1.bf16.msra.mxu0 0
      %2182 = vmatprep.mubr.bf16.mxu0 0
      %2183 = vmatmul.mubr.bf16.gmra.mrb[0].mxu0 %v2148
      %v2184 = vpop.f32.mrb[0].mxu0
      %v2185 = vadd.f32 0.0, %v2184
      %v2186 = vpop.f32.mrb[0].mxu0
      %v2187 = vpop.f32.mrb[0].mxu0
      %v2188 = vadd.f32 0.0, %v2187
      %v2189 = vpop.f32.mrb[0].mxu0
      %2190 = vdwg.mxu0
      %v2192 = vsel %vm1786, %v1968, 0
      %2194 = vmatprep.subr.bf16.mxu0 0
      %2195 = vmatpush1.bf16.msra.mxu0 %v1402
      %2196 = vmatprep.subr.bf16.mxu0 0
      %2197 = vmatpush1.bf16.msra.mxu0 0
      %2198 = vmatprep.subr.bf16.mxu0 0
      %2199 = vmatpush1.bf16.msra.mxu0 0
      %2200 = vmatprep.subr.bf16.mxu0 0
      %2201 = vmatpush1.bf16.msra.mxu0 0
      %2202 = vmatprep.subr.bf16.mxu0 0
      %2203 = vmatpush1.bf16.msra.mxu0 0
      %2204 = vmatprep.subr.bf16.mxu0 0
      %2205 = vmatpush1.bf16.msra.mxu0 0
      %2206 = vmatprep.subr.bf16.mxu0 0
      %2207 = vmatpush1.bf16.msra.mxu0 0
      %2208 = vmatprep.subr.bf16.mxu0 0
      %2209 = vmatpush1.bf16.msra.mxu0 0
      %2210 = vmatprep.subr.bf16.mxu0 0
      %2211 = vmatpush1.bf16.msra.mxu0 0
      %2212 = vmatprep.subr.bf16.mxu0 0
      %2213 = vmatpush1.bf16.msra.mxu0 0
      %2214 = vmatprep.subr.bf16.mxu0 0
      %2215 = vmatpush1.bf16.msra.mxu0 0
      %2216 = vmatprep.subr.bf16.mxu0 0
      %2217 = vmatpush1.bf16.msra.mxu0 0
      %2218 = vmatprep.subr.bf16.mxu0 0
      %2219 = vmatpush1.bf16.msra.mxu0 0
      %2220 = vmatprep.subr.bf16.mxu0 0
      %2221 = vmatpush1.bf16.msra.mxu0 0
      %2222 = vmatprep.subr.bf16.mxu0 0
      %2223 = vmatpush1.bf16.msra.mxu0 0
      %2224 = vmatprep.subr.bf16.mxu0 0
      %2225 = vmatpush1.bf16.msra.mxu0 0
      %2226 = vmatprep.mubr.bf16.mxu0 0
      %2227 = vmatmul.mubr.bf16.gmra.mrb[0].mxu0 %v2192
      %v2228 = vpop.f32.mrb[0].mxu0
      %v2229 = vadd.f32 0.0, %v2228
      %v2230 = vpop.f32.mrb[0].mxu0
      %v2231 = vpop.f32.mrb[0].mxu0
      %v2232 = vadd.f32 0.0, %v2231
      %v2233 = vpop.f32.mrb[0].mxu0
      %2234 = vdwg.mxu0
      %v2236 = vsel %vm1786, %v1969, 0
      %2238 = vmatprep.subr.bf16.mxu0 0
      %2239 = vmatpush1.bf16.msra.mxu0 %v1403
      %2240 = vmatprep.subr.bf16.mxu0 0
      %2241 = vmatpush1.bf16.msra.mxu0 0
      %2242 = vmatprep.subr.bf16.mxu0 0
      %2243 = vmatpush1.bf16.msra.mxu0 0
      %2244 = vmatprep.subr.bf16.mxu0 0
      %2245 = vmatpush1.bf16.msra.mxu0 0
      %2246 = vmatprep.subr.bf16.mxu0 0
      %2247 = vmatpush1.bf16.msra.mxu0 0
      %2248 = vmatprep.subr.bf16.mxu0 0
      %2249 = vmatpush1.bf16.msra.mxu0 0
      %2250 = vmatprep.subr.bf16.mxu0 0
      %2251 = vmatpush1.bf16.msra.mxu0 0
      %2252 = vmatprep.subr.bf16.mxu0 0
      %2253 = vmatpush1.bf16.msra.mxu0 0
      %2254 = vmatprep.subr.bf16.mxu0 0
      %2255 = vmatpush1.bf16.msra.mxu0 0
      %2256 = vmatprep.subr.bf16.mxu0 0
      %2257 = vmatpush1.bf16.msra.mxu0 0
      %2258 = vmatprep.subr.bf16.mxu0 0
      %2259 = vmatpush1.bf16.msra.mxu0 0
      %2260 = vmatprep.subr.bf16.mxu0 0
      %2261 = vmatpush1.bf16.msra.mxu0 0
      %2262 = vmatprep.subr.bf16.mxu0 0
      %2263 = vmatpush1.bf16.msra.mxu0 0
      %2264 = vmatprep.subr.bf16.mxu0 0
      %2265 = vmatpush1.bf16.msra.mxu0 0
      %2266 = vmatprep.subr.bf16.mxu0 0
      %2267 = vmatpush1.bf16.msra.mxu0 0
      %2268 = vmatprep.subr.bf16.mxu0 0
      %2269 = vmatpush1.bf16.msra.mxu0 0
      %2270 = vmatprep.mubr.bf16.mxu0 0
      %2271 = vmatmul.mubr.bf16.gmra.mrb[0].mxu0 %v2236
      %v2272 = vpop.f32.mrb[0].mxu0
      %v2273 = vadd.f32 0.0, %v2272
      %v2274 = vpop.f32.mrb[0].mxu0
      %v2275 = vpop.f32.mrb[0].mxu0
      %v2276 = vadd.f32 0.0, %v2275
      %v2277 = vpop.f32.mrb[0].mxu0
      %2278 = vdwg.mxu0
      %v2280 = vsel %vm1786, %v1970, 0
      %2282 = vmatprep.subr.bf16.mxu0 0
      %2283 = vmatpush1.bf16.msra.mxu0 %v1404
      %2284 = vmatprep.subr.bf16.mxu0 0
      %2285 = vmatpush1.bf16.msra.mxu0 0
      %2286 = vmatprep.subr.bf16.mxu0 0
      %2287 = vmatpush1.bf16.msra.mxu0 0
      %2288 = vmatprep.subr.bf16.mxu0 0
      %2289 = vmatpush1.bf16.msra.mxu0 0
      %2290 = vmatprep.subr.bf16.mxu0 0
      %2291 = vmatpush1.bf16.msra.mxu0 0
      %2292 = vmatprep.subr.bf16.mxu0 0
      %2293 = vmatpush1.bf16.msra.mxu0 0
      %2294 = vmatprep.subr.bf16.mxu0 0
      %2295 = vmatpush1.bf16.msra.mxu0 0
      %2296 = vmatprep.subr.bf16.mxu0 0
      %2297 = vmatpush1.bf16.msra.mxu0 0
      %2298 = vmatprep.subr.bf16.mxu0 0
      %2299 = vmatpush1.bf16.msra.mxu0 0
      %2300 = vmatprep.subr.bf16.mxu0 0
      %2301 = vmatpush1.bf16.msra.mxu0 0
      %2302 = vmatprep.subr.bf16.mxu0 0
      %2303 = vmatpush1.bf16.msra.mxu0 0
      %2304 = vmatprep.subr.bf16.mxu0 0
      %2305 = vmatpush1.bf16.msra.mxu0 0
      %2306 = vmatprep.subr.bf16.mxu0 0
      %2307 = vmatpush1.bf16.msra.mxu0 0
      %2308 = vmatprep.subr.bf16.mxu0 0
      %2309 = vmatpush1.bf16.msra.mxu0 0
      %2310 = vmatprep.subr.bf16.mxu0 0
      %2311 = vmatpush1.bf16.msra.mxu0 0
      %2312 = vmatprep.subr.bf16.mxu0 0
      %2313 = vmatpush1.bf16.msra.mxu0 0
      %2314 = vmatprep.mubr.bf16.mxu0 0
      %2315 = vmatmul.mubr.bf16.gmra.mrb[0].mxu0 %v2280
      %v2316 = vpop.f32.mrb[0].mxu0
      %v2317 = vadd.f32 0.0, %v2316
      %v2318 = vpop.f32.mrb[0].mxu0
      %v2319 = vpop.f32.mrb[0].mxu0
      %v2320 = vadd.f32 0.0, %v2319
      %v2321 = vpop.f32.mrb[0].mxu0
      %2322 = vdwg.mxu0
      %v2323 = vpack.c.bf16 %v2012, %v2009
      %v2324 = vpack.c.bf16 %v2056, %v2053
      %v2325 = vpack.c.bf16 %v2100, %v2097
      %v2326 = vpack.c.bf16 %v2144, %v2141
      %v2327 = vpack.c.bf16 %v2188, %v2185
      %v2328 = vpack.c.bf16 %v2232, %v2229
      %v2329 = vpack.c.bf16 %v2276, %v2273
      %v2330 = vpack.c.bf16 %v2320, %v2317
      %v2331 = vld [vmem:[%s5] sm:$0xf]
      %v2332 = vld [vmem:[%s5 + $0x4] sm:$0xf]
      %v2333 = vld [vmem:[%s5 + $0x8] sm:$0xf]
      %v2334 = vld [vmem:[%s5 + $0xc] sm:$0xf]
      %v2336 = vsel %vm1409, %v2323, 0
      %v2339 = vsel %vm1409, %v2324, 0
      %vm2341 = vcmask 1043456
      %v2343 = vsel %vm2341, %v2331, 0
      %2345 = vmatprep.subr.bf16.mxu0 0
      %2346 = vmatpush1.bf16.msra.mxu0 %v2343
      %2347 = vmatprep.subr.bf16.mxu0 0
      %2348 = vmatpush1.bf16.msra.mxu0 0
      %2349 = vmatprep.subr.bf16.mxu0 0
      %2350 = vmatpush1.bf16.msra.mxu0 0
      %2351 = vmatprep.subr.bf16.mxu0 0
      %2352 = vmatpush1.bf16.msra.mxu0 0
      %2353 = vmatprep.subr.bf16.mxu0 0
      %2354 = vmatpush1.bf16.msra.mxu0 0
      %2355 = vmatprep.subr.bf16.mxu0 0
      %2356 = vmatpush1.bf16.msra.mxu0 0
      %2357 = vmatprep.subr.bf16.mxu0 0
      %2358 = vmatpush1.bf16.msra.mxu0 0
      %2359 = vmatprep.subr.bf16.mxu0 0
      %2360 = vmatpush1.bf16.msra.mxu0 0
      %2361 = vmatprep.subr.bf16.mxu0 0
      %2362 = vmatpush1.bf16.msra.mxu0 0
      %2363 = vmatprep.subr.bf16.mxu0 0
      %2364 = vmatpush1.bf16.msra.mxu0 0
      %2365 = vmatprep.subr.bf16.mxu0 0
      %2366 = vmatpush1.bf16.msra.mxu0 0
      %2367 = vmatprep.subr.bf16.mxu0 0
      %2368 = vmatpush1.bf16.msra.mxu0 0
      %2369 = vmatprep.subr.bf16.mxu0 0
      %2370 = vmatpush1.bf16.msra.mxu0 0
      %2371 = vmatprep.subr.bf16.mxu0 0
      %2372 = vmatpush1.bf16.msra.mxu0 0
      %2373 = vmatprep.subr.bf16.mxu0 0
      %2374 = vmatpush1.bf16.msra.mxu0 0
      %2375 = vmatprep.subr.bf16.mxu0 0
      %2376 = vmatpush1.bf16.msra.mxu0 0
      %2377 = vmatprep.mubr.bf16.mxu0 0
      %2378 = vmatmul.mubr.bf16.gmra.mrb[0].mxu0 %v2336
      %v2379 = vpop.f32.mrb[0].mxu0
      %v2380 = vadd.f32 0.0, %v2379
      %v2381 = vpop.f32.mrb[0].mxu0
      %v2382 = vpop.f32.mrb[0].mxu0
      %v2383 = vadd.f32 0.0, %v2382
      %v2384 = vpop.f32.mrb[0].mxu0
      %2385 = vmatprep.mubr.bf16.mxu0 0
      %2386 = vmatmul.mubr.bf16.gmra.mrb[0].mxu0 %v2339
      %v2387 = vpop.f32.mrb[0].mxu0
      %v2388 = vadd.f32 0.0, %v2387
      %v2389 = vpop.f32.mrb[0].mxu0
      %v2390 = vpop.f32.mrb[0].mxu0
      %v2391 = vadd.f32 0.0, %v2390
      %v2392 = vpop.f32.mrb[0].mxu0
      %2393 = vdwg.mxu0
      %v2395 = vsel %vm1409, %v2325, 0
      %v2398 = vsel %vm1409, %v2326, 0
      %v2401 = vsel %vm2341, %v2332, 0
      %2403 = vmatprep.subr.bf16.mxu0 0
      %2404 = vmatpush1.bf16.msra.mxu0 %v2401
      %2405 = vmatprep.subr.bf16.mxu0 0
      %2406 = vmatpush1.bf16.msra.mxu0 0
      %2407 = vmatprep.subr.bf16.mxu0 0
      %2408 = vmatpush1.bf16.msra.mxu0 0
      %2409 = vmatprep.subr.bf16.mxu0 0
      %2410 = vmatpush1.bf16.msra.mxu0 0
      %2411 = vmatprep.subr.bf16.mxu0 0
      %2412 = vmatpush1.bf16.msra.mxu0 0
      %2413 = vmatprep.subr.bf16.mxu0 0
      %2414 = vmatpush1.bf16.msra.mxu0 0
      %2415 = vmatprep.subr.bf16.mxu0 0
      %2416 = vmatpush1.bf16.msra.mxu0 0
      %2417 = vmatprep.subr.bf16.mxu0 0
      %2418 = vmatpush1.bf16.msra.mxu0 0
      %2419 = vmatprep.subr.bf16.mxu0 0
      %2420 = vmatpush1.bf16.msra.mxu0 0
      %2421 = vmatprep.subr.bf16.mxu0 0
      %2422 = vmatpush1.bf16.msra.mxu0 0
      %2423 = vmatprep.subr.bf16.mxu0 0
      %2424 = vmatpush1.bf16.msra.mxu0 0
      %2425 = vmatprep.subr.bf16.mxu0 0
      %2426 = vmatpush1.bf16.msra.mxu0 0
      %2427 = vmatprep.subr.bf16.mxu0 0
      %2428 = vmatpush1.bf16.msra.mxu0 0
      %2429 = vmatprep.subr.bf16.mxu0 0
      %2430 = vmatpush1.bf16.msra.mxu0 0
      %2431 = vmatprep.subr.bf16.mxu0 0
      %2432 = vmatpush1.bf16.msra.mxu0 0
      %2433 = vmatprep.subr.bf16.mxu0 0
      %2434 = vmatpush1.bf16.msra.mxu0 0
      %2435 = vmatprep.mubr.bf16.mxu0 0
      %2436 = vmatmul.mubr.bf16.gmra.mrb[0].mxu0 %v2395
      %v2437 = vpop.f32.mrb[0].mxu0
      %v2438 = vadd.f32 0.0, %v2437
      %v2439 = vpop.f32.mrb[0].mxu0
      %v2440 = vpop.f32.mrb[0].mxu0
      %v2441 = vadd.f32 0.0, %v2440
      %v2442 = vpop.f32.mrb[0].mxu0
      %2443 = vmatprep.mubr.bf16.mxu0 0
      %2444 = vmatmul.mubr.bf16.gmra.mrb[0].mxu0 %v2398
      %v2445 = vpop.f32.mrb[0].mxu0
      %v2446 = vadd.f32 0.0, %v2445
      %v2447 = vpop.f32.mrb[0].mxu0
      %v2448 = vpop.f32.mrb[0].mxu0
      %v2449 = vadd.f32 0.0, %v2448
      %v2450 = vpop.f32.mrb[0].mxu0
      %2451 = vdwg.mxu0
      %v2453 = vsel %vm1409, %v2327, 0
      %v2456 = vsel %vm1409, %v2328, 0
      %v2459 = vsel %vm2341, %v2333, 0
      %2461 = vmatprep.subr.bf16.mxu0 0
      %2462 = vmatpush1.bf16.msra.mxu0 %v2459
      %2463 = vmatprep.subr.bf16.mxu0 0
      %2464 = vmatpush1.bf16.msra.mxu0 0
      %2465 = vmatprep.subr.bf16.mxu0 0
      %2466 = vmatpush1.bf16.msra.mxu0 0
      %2467 = vmatprep.subr.bf16.mxu0 0
      %2468 = vmatpush1.bf16.msra.mxu0 0
      %2469 = vmatprep.subr.bf16.mxu0 0
      %2470 = vmatpush1.bf16.msra.mxu0 0
      %2471 = vmatprep.subr.bf16.mxu0 0
      %2472 = vmatpush1.bf16.msra.mxu0 0
      %2473 = vmatprep.subr.bf16.mxu0 0
      %2474 = vmatpush1.bf16.msra.mxu0 0
      %2475 = vmatprep.subr.bf16.mxu0 0
      %2476 = vmatpush1.bf16.msra.mxu0 0
      %2477 = vmatprep.subr.bf16.mxu0 0
      %2478 = vmatpush1.bf16.msra.mxu0 0
      %2479 = vmatprep.subr.bf16.mxu0 0
      %2480 = vmatpush1.bf16.msra.mxu0 0
      %2481 = vmatprep.subr.bf16.mxu0 0
      %2482 = vmatpush1.bf16.msra.mxu0 0
      %2483 = vmatprep.subr.bf16.mxu0 0
      %2484 = vmatpush1.bf16.msra.mxu0 0
      %2485 = vmatprep.subr.bf16.mxu0 0
      %2486 = vmatpush1.bf16.msra.mxu0 0
      %2487 = vmatprep.subr.bf16.mxu0 0
      %2488 = vmatpush1.bf16.msra.mxu0 0
      %2489 = vmatprep.subr.bf16.mxu0 0
      %2490 = vmatpush1.bf16.msra.mxu0 0
      %2491 = vmatprep.subr.bf16.mxu0 0
      %2492 = vmatpush1.bf16.msra.mxu0 0
      %2493 = vmatprep.mubr.bf16.mxu0 0
      %2494 = vmatmul.mubr.bf16.gmra.mrb[0].mxu0 %v2453
      %v2495 = vpop.f32.mrb[0].mxu0
      %v2496 = vadd.f32 0.0, %v2495
      %v2497 = vpop.f32.mrb[0].mxu0
      %v2498 = vpop.f32.mrb[0].mxu0
      %v2499 = vadd.f32 0.0, %v2498
      %v2500 = vpop.f32.mrb[0].mxu0
      %2501 = vmatprep.mubr.bf16.mxu0 0
      %2502 = vmatmul.mubr.bf16.gmra.mrb[0].mxu0 %v2456
      %v2503 = vpop.f32.mrb[0].mxu0
      %v2504 = vadd.f32 0.0, %v2503
      %v2505 = vpop.f32.mrb[0].mxu0
      %v2506 = vpop.f32.mrb[0].mxu0
      %v2507 = vadd.f32 0.0, %v2506
      %v2508 = vpop.f32.mrb[0].mxu0
      %2509 = vdwg.mxu0
      %v2511 = vsel %vm1409, %v2329, 0
      %v2514 = vsel %vm1409, %v2330, 0
      %v2517 = vsel %vm2341, %v2334, 0
      %2519 = vmatprep.subr.bf16.mxu0 0
      %2520 = vmatpush1.bf16.msra.mxu0 %v2517
      %2521 = vmatprep.subr.bf16.mxu0 0
      %2522 = vmatpush1.bf16.msra.mxu0 0
      %2523 = vmatprep.subr.bf16.mxu0 0
      %2524 = vmatpush1.bf16.msra.mxu0 0
      %2525 = vmatprep.subr.bf16.mxu0 0
      %2526 = vmatpush1.bf16.msra.mxu0 0
      %2527 = vmatprep.subr.bf16.mxu0 0
      %2528 = vmatpush1.bf16.msra.mxu0 0
      %2529 = vmatprep.subr.bf16.mxu0 0
      %2530 = vmatpush1.bf16.msra.mxu0 0
      %2531 = vmatprep.subr.bf16.mxu0 0
      %2532 = vmatpush1.bf16.msra.mxu0 0
      %2533 = vmatprep.subr.bf16.mxu0 0
      %2534 = vmatpush1.bf16.msra.mxu0 0
      %2535 = vmatprep.subr.bf16.mxu0 0
      %2536 = vmatpush1.bf16.msra.mxu0 0
      %2537 = vmatprep.subr.bf16.mxu0 0
      %2538 = vmatpush1.bf16.msra.mxu0 0
      %2539 = vmatprep.subr.bf16.mxu0 0
      %2540 = vmatpush1.bf16.msra.mxu0 0
      %2541 = vmatprep.subr.bf16.mxu0 0
      %2542 = vmatpush1.bf16.msra.mxu0 0
      %2543 = vmatprep.subr.bf16.mxu0 0
      %2544 = vmatpush1.bf16.msra.mxu0 0
      %2545 = vmatprep.subr.bf16.mxu0 0
      %2546 = vmatpush1.bf16.msra.mxu0 0
      %2547 = vmatprep.subr.bf16.mxu0 0
      %2548 = vmatpush1.bf16.msra.mxu0 0
      %2549 = vmatprep.subr.bf16.mxu0 0
      %2550 = vmatpush1.bf16.msra.mxu0 0
      %2551 = vmatprep.mubr.bf16.mxu0 0
      %2552 = vmatmul.mubr.bf16.gmra.mrb[0].mxu0 %v2511
      %v2553 = vpop.f32.mrb[0].mxu0
      %v2554 = vadd.f32 0.0, %v2553
      %v2555 = vpop.f32.mrb[0].mxu0
      %v2556 = vpop.f32.mrb[0].mxu0
      %v2557 = vadd.f32 0.0, %v2556
      %v2558 = vpop.f32.mrb[0].mxu0
      %2559 = vmatprep.mubr.bf16.mxu0 0
      %2560 = vmatmul.mubr.bf16.gmra.mrb[0].mxu0 %v2514
      %v2561 = vpop.f32.mrb[0].mxu0
      %v2562 = vadd.f32 0.0, %v2561
      %v2563 = vpop.f32.mrb[0].mxu0
      %v2564 = vpop.f32.mrb[0].mxu0
      %v2565 = vadd.f32 0.0, %v2564
      %v2566 = vpop.f32.mrb[0].mxu0
      %2567 = vdwg.mxu0
      %v2568 = vsel %vm506, %v2380, 0.0
      %v2569 = vsel %vm506, %v2438, 0.0
      %v2570 = vadd.f32 %v2568, %v2569
      %v2571 = vsel %vm506, %v2496, 0.0
      %v2572 = vadd.f32 %v2570, %v2571
      %v2573 = vsel %vm506, %v2554, 0.0
      %v2574 = vadd.f32 %v2572, %v2573
      %v2575 = vsel %vm506, %v2383, 0.0
      %v2576 = vsel %vm506, %v2441, 0.0
      %v2577 = vadd.f32 %v2575, %v2576
      %v2578 = vsel %vm506, %v2499, 0.0
      %v2579 = vadd.f32 %v2577, %v2578
      %v2580 = vsel %vm506, %v2557, 0.0
      %v2581 = vadd.f32 %v2579, %v2580
      %v2582 = vsel %vm506, %v2388, 0.0
      %v2583 = vsel %vm506, %v2446, 0.0
      %v2584 = vadd.f32 %v2582, %v2583
      %v2585 = vsel %vm506, %v2504, 0.0
      %v2586 = vadd.f32 %v2584, %v2585
      %v2587 = vsel %vm506, %v2562, 0.0
      %v2588 = vadd.f32 %v2586, %v2587
      %v2589 = vsel %vm506, %v2391, 0.0
      %v2590 = vsel %vm506, %v2449, 0.0
      %v2591 = vadd.f32 %v2589, %v2590
      %v2592 = vsel %vm506, %v2507, 0.0
      %v2593 = vadd.f32 %v2591, %v2592
      %v2594 = vsel %vm506, %v2565, 0.0
      %v2595 = vadd.f32 %v2593, %v2594
      %v2596 = vld [vmem:[%s6] sm:$0x1]
      %v2598 = vlaneseq
      %v2599 = vshrl.u32 %v2598, 7
      %v2600 = vsub.s32 0, %v2599
      %v2601 = vrot.slane %v2596, %v2600
      %v2603 = vadd.f32 %v2574, %v2601
      %v2604 = vadd.f32 %v2581, %v2601
      %v2605 = vadd.f32 %v2588, %v2601
      %v2606 = vadd.f32 %v2595, %v2601
      %v2607 = vlaneseq
      %v2608 = vshrl.u32 %v2607, 7
      %v2609 = vsub.s32 2, %v2608
      %v2610 = vrot.slane %v505, %v2609
      %v2611 = vmul.f32 %v2610, %v2603
      %v2612 = vmul.f32 %v2610, %v2604
      %v2613 = vmul.f32 %v2610, %v2605
      %v2614 = vmul.f32 %v2610, %v2606
      %v2615 = vadd.f32 %v501, %v2611
      %v2616 = vadd.f32 %v502, %v2612
      %v2617 = vadd.f32 %v503, %v2613
      %v2618 = vadd.f32 %v504, %v2614
      %v2619 = vsel %vm506, %v2615, 0.0
      %2620 = vadd.xlane.f32.xlu0 %v2619
      %v2621 = vpop.xlane.xlu0 %2620
      %v2622 = vsel %vm506, %v2616, 0.0
      %2623 = vadd.xlane.f32.xlu0 %v2622
      %v2624 = vpop.xlane.xlu0 %2623
      %v2625 = vsel %vm506, %v2617, 0.0
      %2626 = vadd.xlane.f32.xlu0 %v2625
      %v2627 = vpop.xlane.xlu0 %2626
      %v2628 = vsel %vm506, %v2618, 0.0
      %2629 = vadd.xlane.f32.xlu0 %v2628
      %v2630 = vpop.xlane.xlu0 %2629
      %v2631 = vmul.f32 %v2621, %v519
      %v2632 = vmul.f32 %v2624, %v519
      %v2633 = vmul.f32 %v2627, %v519
      %v2634 = vmul.f32 %v2630, %v519
      %v2635 = vsub.f32 %v2615, %v2631
      %v2636 = vsub.f32 %v2616, %v2632
      %v2637 = vsub.f32 %v2617, %v2633
      %v2638 = vsub.f32 %v2618, %v2634
      %v2639 = vmul.f32 %v2635, %v2635
      %v2640 = vmul.f32 %v2636, %v2636
      %v2641 = vmul.f32 %v2637, %v2637
      %v2642 = vmul.f32 %v2638, %v2638
      %v2643 = vsel %vm506, %v2639, 0.0
      %2644 = vadd.xlane.f32.xlu0 %v2643
      %v2645 = vpop.xlane.xlu0 %2644
      %v2646 = vsel %vm506, %v2640, 0.0
      %2647 = vadd.xlane.f32.xlu0 %v2646
      %v2648 = vpop.xlane.xlu0 %2647
      %v2649 = vsel %vm506, %v2641, 0.0
      %2650 = vadd.xlane.f32.xlu0 %v2649
      %v2651 = vpop.xlane.xlu0 %2650
      %v2652 = vsel %vm506, %v2642, 0.0
      %2653 = vadd.xlane.f32.xlu0 %v2652
      %v2654 = vpop.xlane.xlu0 %2653
      %v2655 = vmul.f32 %v2645, %v519
      %v2656 = vmul.f32 %v2648, %v519
      %v2657 = vmul.f32 %v2651, %v519
      %v2658 = vmul.f32 %v2654, %v519
      %v2659 = vadd.f32 %v2655, 1e-06
      %v2660 = vadd.f32 %v2656, 1e-06
      %v2661 = vadd.f32 %v2657, 1e-06
      %v2662 = vadd.f32 %v2658, 1e-06
      %v2663 = vrsqrt.pop %v2659
      %v2664 = vrsqrt.pop %v2660
      %v2665 = vrsqrt.pop %v2661
      %v2666 = vrsqrt.pop %v2662
      %v2667 = vmul.f32 %v2635, %v2663
      %v2668 = vmul.f32 %v2636, %v2664
      %v2669 = vmul.f32 %v2637, %v2665
      %v2670 = vmul.f32 %v2638, %v2666
      %v2671 = vlaneseq
      %v2672 = vshrl.u32 %v2671, 7
      %v2673 = vsub.s32 4, %v2672
      %v2674 = vrot.slane %v560, %v2673
      %v2675 = vmul.f32 %v2667, %v2674
      %v2676 = vmul.f32 %v2668, %v2674
      %v2677 = vmul.f32 %v2669, %v2674
      %v2678 = vmul.f32 %v2670, %v2674
      %v2679 = vlaneseq
      %v2680 = vshrl.u32 %v2679, 7
      %v2681 = vsub.s32 3, %v2680
      %v2682 = vrot.slane %v505, %v2681
      %v2683 = vadd.f32 %v2675, %v2682
      %v2684 = vadd.f32 %v2676, %v2682
      %v2685 = vadd.f32 %v2677, %v2682
      %v2686 = vadd.f32 %v2678, %v2682
      %v2687 = vpack.c.bf16 %v2684, %v2683
      %v2688 = vpack.c.bf16 %v2686, %v2685
      %v2689 = vld [vmem:[%s7] sm:$0xf]
      %v2690 = vld [vmem:[%s7 + $0x4] sm:$0xf]
      %v2691 = vld [vmem:[%s7 + $0x8] sm:$0xf]
      %v2692 = vld [vmem:[%s7 + $0xc] sm:$0xf]
      %v2693 = vld [vmem:[%s8] sm:$0x1]
      %v2695 = vlaneseq
      %v2696 = vshrl.u32 %v2695, 7
      %v2697 = vsub.s32 0, %v2696
      %v2698 = vrot.slane %v2693, %v2697
      %v2704 = vunpack.c.l.b16 %v2689
      %v2705 = vunpack.c.l.b16 %v2690
      %v2706 = vunpack.c.l.b16 %v2691
      %v2707 = vunpack.c.l.b16 %v2692
      %v2708 = vpack.c.b16 %v2705, %v2704
      %v2709 = vpack.c.b16 %v2707, %v2706
      %v2713 = vsel %vm506, %v2687, 0
      %v2716 = vsel %vm506, %v2688, 0
      %2718 = vmatprep.subr.bf16.mxu0 0
      %2719 = vmatpush1.bf16.msra.mxu0 %v2708
      %2720 = vmatprep.subr.bf16.mxu0 0
      %2721 = vmatpush1.bf16.msra.mxu0 %v2709
      %2722 = vmatprep.subr.bf16.mxu0 0
      %2723 = vmatpush1.bf16.msra.mxu0 0
      %2724 = vmatprep.subr.bf16.mxu0 0
      %2725 = vmatpush1.bf16.msra.mxu0 0
      %2726 = vmatprep.subr.bf16.mxu0 0
      %2727 = vmatpush1.bf16.msra.mxu0 0
      %2728 = vmatprep.subr.bf16.mxu0 0
      %2729 = vmatpush1.bf16.msra.mxu0 0
      %2730 = vmatprep.subr.bf16.mxu0 0
      %2731 = vmatpush1.bf16.msra.mxu0 0
      %2732 = vmatprep.subr.bf16.mxu0 0
      %2733 = vmatpush1.bf16.msra.mxu0 0
      %2734 = vmatprep.subr.bf16.mxu0 0
      %2735 = vmatpush1.bf16.msra.mxu0 0
      %2736 = vmatprep.subr.bf16.mxu0 0
      %2737 = vmatpush1.bf16.msra.mxu0 0
      %2738 = vmatprep.subr.bf16.mxu0 0
      %2739 = vmatpush1.bf16.msra.mxu0 0
      %2740 = vmatprep.subr.bf16.mxu0 0
      %2741 = vmatpush1.bf16.msra.mxu0 0
      %2742 = vmatprep.subr.bf16.mxu0 0
      %2743 = vmatpush1.bf16.msra.mxu0 0
      %2744 = vmatprep.subr.bf16.mxu0 0
      %2745 = vmatpush1.bf16.msra.mxu0 0
      %2746 = vmatprep.subr.bf16.mxu0 0
      %2747 = vmatpush1.bf16.msra.mxu0 0
      %2748 = vmatprep.subr.bf16.mxu0 0
      %2749 = vmatpush1.bf16.msra.mxu0 0
      %2750 = vmatprep.mubr.bf16.mxu0 0
      %2751 = vmatmul.mubr.bf16.gmra.mrb[0].mxu0 %v2713
      %v2752 = vpop.f32.mrb[0].mxu0
      %v2753 = vadd.f32 %v2698, %v2752
      %v2754 = vpop.f32.mrb[0].mxu0
      %v2755 = vpop.f32.mrb[0].mxu0
      %v2756 = vadd.f32 %v2698, %v2755
      %v2757 = vpop.f32.mrb[0].mxu0
      %2758 = vmatprep.mubr.bf16.mxu0 0
      %2759 = vmatmul.mubr.bf16.gmra.mrb[0].mxu0 %v2716
      %v2760 = vpop.f32.mrb[0].mxu0
      %v2761 = vadd.f32 %v2698, %v2760
      %v2762 = vpop.f32.mrb[0].mxu0
      %v2763 = vpop.f32.mrb[0].mxu0
      %v2764 = vadd.f32 %v2698, %v2763
      %v2765 = vpop.f32.mrb[0].mxu0
      %2766 = vdwg.mxu0
      %v2767 = vmul.f32 %v2753, 0.5
      %v2768 = vmul.f32 %v2756, 0.5
      %v2769 = vmul.f32 %v2761, 0.5
      %v2770 = vmul.f32 %v2764, 0.5
      %v2771 = vmul.f32 %v2753, 0.70710677
      %v2772 = vmul.f32 %v2756, 0.70710677
      %v2773 = vmul.f32 %v2761, 0.70710677
      %v2774 = vmul.f32 %v2764, 0.70710677
      %v2775 = verf.f32.pop %v2771
      %v2776 = verf.f32.pop %v2772
      %v2777 = verf.f32.pop %v2773
      %v2778 = verf.f32.pop %v2774
      %v2779 = vadd.f32 %v2775, 1.0
      %v2780 = vadd.f32 %v2776, 1.0
      %v2781 = vadd.f32 %v2777, 1.0
      %v2782 = vadd.f32 %v2778, 1.0
      %v2783 = vmul.f32 %v2767, %v2779
      %v2784 = vmul.f32 %v2768, %v2780
      %v2785 = vmul.f32 %v2769, %v2781
      %v2786 = vmul.f32 %v2770, %v2782
      %v2787 = vpack.c.bf16 %v2784, %v2783
      %v2788 = vpack.c.bf16 %v2786, %v2785
      %v2789 = vld [vmem:[%s9] sm:$0xf]
      %v2790 = vld [vmem:[%s9 + $0x4] sm:$0xf]
      %v2791 = vld [vmem:[%s9 + $0x8] sm:$0xf]
      %v2792 = vld [vmem:[%s9 + $0xc] sm:$0xf]
      %v2793 = vld [vmem:[%s9 + $0x10] sm:$0xf]
      %v2794 = vld [vmem:[%s9 + $0x14] sm:$0xf]
      %v2795 = vld [vmem:[%s9 + $0x18] sm:$0xf]
      %v2796 = vld [vmem:[%s9 + $0x1c] sm:$0xf]
      %v2797 = vld [vmem:[%s9 + $0x20] sm:$0xf]
      %v2798 = vld [vmem:[%s9 + $0x24] sm:$0xf]
      %v2799 = vld [vmem:[%s9 + $0x28] sm:$0xf]
      %v2800 = vld [vmem:[%s9 + $0x2c] sm:$0xf]
      %v2801 = vld [vmem:[%s9 + $0x30] sm:$0xf]
      %v2802 = vld [vmem:[%s9 + $0x34] sm:$0xf]
      %v2803 = vld [vmem:[%s9 + $0x38] sm:$0xf]
      %v2804 = vld [vmem:[%s9 + $0x3c] sm:$0xf]
      %v2805 = vld [vmem:[%s10] sm:$0x1]
      %v2807 = vlaneseq
      %v2808 = vshrl.u32 %v2807, 7
      %v2809 = vsub.s32 0, %v2808
      %v2810 = vrot.slane %v2805, %v2809
      %v2828 = vunpack.c.l.b16 %v2789
      %v2829 = vunpack.c.l.b16 %v2790
      %v2830 = vunpack.c.l.b16 %v2791
      %v2831 = vunpack.c.l.b16 %v2792
      %v2832 = vunpack.c.l.b16 %v2793
      %v2833 = vunpack.c.l.b16 %v2794
      %v2834 = vunpack.c.l.b16 %v2795
      %v2835 = vunpack.c.l.b16 %v2796
      %v2836 = vunpack.c.l.b16 %v2797
      %v2837 = vunpack.c.l.b16 %v2798
      %v2838 = vunpack.c.l.b16 %v2799
      %v2839 = vunpack.c.l.b16 %v2800
      %v2840 = vunpack.c.l.b16 %v2801
      %v2841 = vunpack.c.l.b16 %v2802
      %v2842 = vunpack.c.l.b16 %v2803
      %v2843 = vunpack.c.l.b16 %v2804
      %v2844 = vpack.c.b16 %v2829, %v2828
      %v2845 = vpack.c.b16 %v2831, %v2830
      %v2846 = vpack.c.b16 %v2833, %v2832
      %v2847 = vpack.c.b16 %v2835, %v2834
      %v2848 = vpack.c.b16 %v2837, %v2836
      %v2849 = vpack.c.b16 %v2839, %v2838
      %v2850 = vpack.c.b16 %v2841, %v2840
      %v2851 = vpack.c.b16 %v2843, %v2842
      %2860 = vmatprep.subr.bf16.mxu0 0
      %2861 = vmatpush1.bf16.msra.mxu0 %v2844
      %2862 = vmatprep.subr.bf16.mxu0 0
      %2863 = vmatpush1.bf16.msra.mxu0 %v2845
      %2864 = vmatprep.subr.bf16.mxu0 0
      %2865 = vmatpush1.bf16.msra.mxu0 %v2846
      %2866 = vmatprep.subr.bf16.mxu0 0
      %2867 = vmatpush1.bf16.msra.mxu0 %v2847
      %2868 = vmatprep.subr.bf16.mxu0 0
      %2869 = vmatpush1.bf16.msra.mxu0 %v2848
      %2870 = vmatprep.subr.bf16.mxu0 0
      %2871 = vmatpush1.bf16.msra.mxu0 %v2849
      %2872 = vmatprep.subr.bf16.mxu0 0
      %2873 = vmatpush1.bf16.msra.mxu0 %v2850
      %2874 = vmatprep.subr.bf16.mxu0 0
      %2875 = vmatpush1.bf16.msra.mxu0 %v2851
      %2876 = vmatprep.subr.bf16.mxu0 0
      %2877 = vmatpush1.bf16.msra.mxu0 0
      %2878 = vmatprep.subr.bf16.mxu0 0
      %2879 = vmatpush1.bf16.msra.mxu0 0
      %2880 = vmatprep.subr.bf16.mxu0 0
      %2881 = vmatpush1.bf16.msra.mxu0 0
      %2882 = vmatprep.subr.bf16.mxu0 0
      %2883 = vmatpush1.bf16.msra.mxu0 0
      %2884 = vmatprep.subr.bf16.mxu0 0
      %2885 = vmatpush1.bf16.msra.mxu0 0
      %2886 = vmatprep.subr.bf16.mxu0 0
      %2887 = vmatpush1.bf16.msra.mxu0 0
      %2888 = vmatprep.subr.bf16.mxu0 0
      %2889 = vmatpush1.bf16.msra.mxu0 0
      %2890 = vmatprep.subr.bf16.mxu0 0
      %2891 = vmatpush1.bf16.msra.mxu0 0
      %2892 = vmatprep.mubr.bf16.mxu0 0
      %2893 = vmatmul.mubr.bf16.gmra.mrb[0].mxu0 %v2787
      %v2894 = vpop.f32.mrb[0].mxu0
      %v2895 = vadd.f32 %v2810, %v2894
      %v2896 = vpop.f32.mrb[0].mxu0
      %v2897 = vpop.f32.mrb[0].mxu0
      %v2898 = vadd.f32 %v2810, %v2897
      %v2899 = vpop.f32.mrb[0].mxu0
      %2900 = vmatprep.mubr.bf16.mxu0 0
      %2901 = vmatmul.mubr.bf16.gmra.mrb[0].mxu0 %v2788
      %v2902 = vpop.f32.mrb[0].mxu0
      %v2903 = vadd.f32 %v2810, %v2902
      %v2904 = vpop.f32.mrb[0].mxu0
      %v2905 = vpop.f32.mrb[0].mxu0
      %v2906 = vadd.f32 %v2810, %v2905
      %v2907 = vpop.f32.mrb[0].mxu0
      %2908 = vdwg.mxu0
      %v2909 = vlaneseq
      %v2910 = vshrl.u32 %v2909, 7
      %v2911 = vsub.s32 5, %v2910
      %v2912 = vrot.slane %v505, %v2911
      %v2913 = vmul.f32 %v2912, %v2895
      %v2914 = vmul.f32 %v2912, %v2898
      %v2915 = vmul.f32 %v2912, %v2903
      %v2916 = vmul.f32 %v2912, %v2906
      %v2917 = vadd.f32 %v2615, %v2913
      %v2918 = vadd.f32 %v2616, %v2914
      %v2919 = vadd.f32 %v2617, %v2915
      %v2920 = vadd.f32 %v2618, %v2916
      %2921 = vst.msk [vmem:[%s498] sm:$0xff] %vm506, %v2917
      %2922 = vst.msk [vmem:[%s498 + $0x8] sm:$0xff] %vm506, %v2918
      %2923 = vst.msk [vmem:[%s498 + $0x10] sm:$0xff] %vm506, %v2919
      %2924 = vst.msk [vmem:[%s498 + $0x18] sm:$0xff] %vm506, %v2920
      %s2925 = smul.u32 2, %s28
      %p2926 = scmp.lt.s32.totalorder %s27, 1
      %s2927 = scalar_select %p2926, %s27, 1
      %p2928 = scmp.lt.s32.totalorder %s2925, 3
      %s2929 = scalar_select %p2928, %s2925, 3
      %s2930 = smul.addr %s2929, 2
      %s2931 = smul.addr %s2927, 8
      %s2932 = sadd.s32 %s2930, %s2931
      %s2933 = smul.addr %s2932, 8
      %s2934 = scalar_lea.vmem %s12, %s2933
      // Predicated region
      $region69: #{swin_adaln_block.1} parent=67 // pred_check
        %p2935 = pneg %p324
      $region70: #{swin_adaln_block.1} parent=67 // pred_check_branch
        %2937 = sbr.rel (%p2935) target = $region72
      $region71: #{swin_adaln_block.1} parent=67 // pred_region
        %s2938 = smul.u32 2, %s28
      $region72: #{swin_adaln_block.1} parent=67 // pred_fallthru
        _
    $region68: #{swin_adaln_block.1} parent=5 // pred_fallthru
      _
    %p2939 = scmp.le.s32.totalorder 2, %s18
    // Predicated region
    $region73: #{swin_adaln_block.1} parent=5 // pred_check
      %p2940 = pneg %p2939
    $region74: #{swin_adaln_block.1} parent=5 // pred_check_branch
      %2942 = sbr.rel (%p2940) target = $region76
    $region75: #{swin_adaln_block.1} parent=5 // pred_region
      %s2943 = ssub.s32 %s18, 2
      // Predicated region
      $region77: #{swin_adaln_block.1} parent=75 // pred_check
        %p2944 = pneg %p330
      $region78: #{swin_adaln_block.1} parent=75 // pred_check_branch
        %2946 = sbr.rel (%p2944) target = $region80
      $region79: #{swin_adaln_block.1} parent=75 // pred_region
        %s2947 = smul.u32 2, %s30
        %p2948 = scmp.lt.s32.totalorder %s29, 1
        %s2949 = scalar_select %p2948, %s29, 1
        %p2950 = scmp.lt.s32.totalorder %s2947, 3
        %s2951 = scalar_select %p2950, %s2947, 3
        %s2952 = smul.addr %s2951, 2
        %s2953 = smul.addr %s2949, 8
        %s2954 = sadd.s32 %s2952, %s2953
        %s2955 = smul.addr %s2954, 8
        %s2956 = scalar_lea.vmem %s12, %s2955
      $region80: #{swin_adaln_block.1} parent=75 // pred_fallthru
        _
    $region76: #{swin_adaln_block.1} parent=5 // pred_fallthru
      _
  $region6: #{swin_adaln_block.1} parent=0 // loop_footer
    %s22 = sadd.s32 1, %s18
  $region7: #{swin_adaln_block.1} parent=0 // loop_footer_branch
    %17 = sbr.rel target = $region3
  $region8: #{swin_adaln_block.1} parent=0 // loop_exit
    _

</llo_original>
